<compile_context>
chip_gen: v7x
topology: tpu7x:2x2x1
jax: 0.10.0
libtpu: 0.0.40
codegen_flags: <defaults>
</compile_context>

<pallas_src>
import numpy as np
import jax
import jax.numpy as jnp
from jax.experimental import pallas as pl
from jax.experimental.pallas import tpu as pltpu

# ----- module hyper-parameters (consistent with BasicLayer1D) -----
DIM = 32                    # dim
NUM_HEADS = 4               # num_heads
HEAD_DIM = DIM // NUM_HEADS
WINDOW = 8                  # window_size = (8,)
SHIFT = WINDOW // 2         # shift_size for odd blocks
DEPTH = 2                   # depth
MLP_RATIO = 4.0
MLP_HIDDEN = int(DIM * MLP_RATIO)
EPS = 1e-5                  # nn.LayerNorm default eps
NEG_INF = -1e30             # "not attended" additive mask (exp -> exactly 0 in f32)
# qkv_bias=False (BasicLayer1D default), all dropouts / drop_path = 0, downsample=None


def _layernorm(x, g, b):
    mu = jnp.mean(x, axis=-1, keepdims=True)
    var = jnp.mean((x - mu) ** 2, axis=-1, keepdims=True)
    return (x - mu) * jax.lax.rsqrt(var + EPS) * g + b


def _gelu(x):
    # torch.nn.GELU default = exact (erf-based)
    return 0.5 * x * (1.0 + jax.lax.erf(x * np.float32(1.0 / np.sqrt(2.0))))


# ---------------- fused kernel: DEPTH Swin blocks for BT batch elements ----------------

def fused_layer_kernel(x_ref, bias_ref,
                       g1_ref, b1_ref, wqkv_ref, wproj_ref, bproj_ref,
                       g2_ref, b2_ref,
                       w1_ref, bm1_ref, w2_ref, bm2_ref,
                       o_ref):
    m = x_ref.shape[0]                               # M = BT * H rows (static)
    x = x_ref[...]                                   # (M, C) tokens of BT batch elements

    for d in range(DEPTH):                           # static unroll over the fused blocks
        # --- attention branch: norm1 -> qkv -> block-diagonal MHA -> proj -> residual ---
        y = _layernorm(x, g1_ref[d], b1_ref[d])
        # q-scale already folded into the first DIM columns of wqkv (wrapper side)
        qkv = jnp.dot(y, wqkv_ref[d], preferred_element_type=jnp.float32)    # (M, 3*DIM)

        # head-major layout: rows ordered (head, batch, position) -> groups of H rows
        def head_major(base):
            return jnp.concatenate(
                [qkv[:, base + h * HEAD_DIM: base + (h + 1) * HEAD_DIM]
                 for h in range(NUM_HEADS)], axis=0)                          # (NH*M, HD)

        q = head_major(0)
        k = head_major(DIM)
        v = head_major(2 * DIM)

        # ONE block-diagonal score matmul over all (batch, head, window) groups; the
        # precomputed bias holds rel-pos bias + shift mask inside a group's window and
        # -1e30 everywhere else (cross-window / cross-head / cross-batch).
        s = jnp.einsum('md,nd->mn', q, k,
                       preferred_element_type=jnp.float32)                    # (NH*M, NH*M)
        s = s + bias_ref[d]
        s = s - jnp.max(s, axis=-1, keepdims=True)
        p = jnp.exp(s)
        # exact reciprocal keeps 1e-4 parity with the f32 reference (approx=True is the
        # EUP fast path if the tolerance is relaxed)
        p = p * pl.reciprocal(jnp.sum(p, axis=-1, keepdims=True), approx=False)

        o = jnp.dot(p, v, preferred_element_type=jnp.float32)                 # (NH*M, HD)
        # head merge back to (M, C) with columns ordered (head, head_dim), then ONE proj
        o_merged = jnp.concatenate(
            [o[h * m:(h + 1) * m, :] for h in range(NUM_HEADS)], axis=1)      # (M, C)
        attn_out = jnp.dot(o_merged, wproj_ref[d],
                           preferred_element_type=jnp.float32) + bproj_ref[d]

        x = x + attn_out                             # residual (drop_path is identity)

        # --- MLP branch: norm2 -> Linear -> GELU -> Linear -> residual ---
        y2 = _layernorm(x, g2_ref[d], b2_ref[d])
        h1 = _gelu(jnp.dot(y2, w1_ref[d], preferred_element_type=jnp.float32) + bm1_ref[d])
        x = x + jnp.dot(h1, w2_ref[d], preferred_element_type=jnp.float32) + bm2_ref[d]

    o_ref[...] = x


# ---------------- wrapper: param restructuring + combined bias + pallas_call ----------------

def _build_full_bias(rpb_table, H, shift, bt):
    """Combined additive attention bias of shape (bt*NH*H, bt*NH*H), in ORIGINAL token
    coordinates, for score rows/cols ordered (head, batch, position).

    Same-(batch,head,window) pairs get rel-pos bias + Swin shift mask; every other pair
    gets NEG_INF, so dense attention with this bias equals roll(-shift) -> window
    attention -> roll(+shift) done independently per batch element and head."""
    pos = np.arange(H)
    ip = (pos - shift) % H                           # shifted position of each original token
    win = ip // WINDOW
    intra = ip % WINDOW
    same_window = win[:, None] == win[None, :]
    rel_idx = intra[:, None] - intra[None, :] + WINDOW - 1       # (H, H), in [0, 2W-2]

    if shift > 0:                                    # BasicLayer1D.compute_mask segment labels
        label = np.zeros((H,), np.float32)
        label[H - WINDOW:H - shift] = 1.0
        label[H - shift:] = 2.0
        lab = label[ip]                              # labels evaluated at shifted positions
        shift_mask = np.where(lab[:, None] != lab[None, :], -100.0, 0.0)
    else:
        shift_mask = np.zeros((H, H), np.float32)

    add = np.where(same_window, shift_mask, NEG_INF).astype(np.float32)       # (H, H)
    rpb = rpb_table[rel_idx.reshape(-1)].reshape(H, H, NUM_HEADS)             # gather (jnp)
    per_head = jnp.transpose(rpb, (2, 0, 1)).astype(jnp.float32) + jnp.asarray(add)[None]

    # block-diagonal over groups g = head*bt + b  (matches the kernel's row ordering)
    G = NUM_HEADS * bt
    per_group = jnp.repeat(per_head, bt, axis=0)                              # (G, H, H)
    full = jnp.full((G, H, G, H), NEG_INF, dtype=jnp.float32)
    gidx = jnp.arange(G)
    full = full.at[gidx, :, gidx, :].set(per_group)
    return full.reshape(G * H, G * H)


def basic_layer_1d(x_bch, blocks, batch_tile=None):
    """BasicLayer1D.forward. x_bch: (B, C, H) -> (B, C, H). downsample=None.

    batch_tile: batch elements folded into one grid step (default = B, i.e. one step on
    single-TC v5e/v6e; use ceil(B/2) on v7x so both TensorCores get a parallel step)."""
    B, C, H = x_bch.shape
    assert C == DIM
    # TODO(synk): H % WINDOW != 0 (padding) and H <= WINDOW (window shrinking) are not
    #             handled; the example uses H = 16.
    assert H % WINDOW == 0 and H > WINDOW
    bt = B if batch_tile is None else batch_tile
    assert B % bt == 0

    x = jnp.transpose(x_bch, (0, 2, 1)).reshape(B * H, C)       # b c h -> (b h) c

    scale = np.float32(HEAD_DIM ** -0.5)
    bias_all = jnp.stack([_build_full_bias(p['rpb_table'], H,
                                           0 if i % 2 == 0 else SHIFT, bt)
                          for i, p in enumerate(blocks)])                     # (D, G*H, G*H)
    g1s = jnp.stack([p['g1'] for p in blocks])                                # (D, 1, C)
    b1s = jnp.stack([p['b1'] for p in blocks])
    wqkvs = jnp.stack([jnp.concatenate([p['wqkv'][:, :DIM] * scale,           # fold q-scale
                                        p['wqkv'][:, DIM:]], axis=1)
                       for p in blocks])                                      # (D, C, 3C)
    wprojs = jnp.stack([p['wproj'] for p in blocks])                          # (D, C, C)
    bprojs = jnp.stack([p['bproj'] for p in blocks])                          # (D, 1, C)
    g2s = jnp.stack([p['g2'] for p in blocks])
    b2s = jnp.stack([p['b2'] for p in blocks])
    w1s = jnp.stack([p['w1'] for p in blocks])                                # (D, C, MH)
    bm1s = jnp.stack([p['bm1'] for p in blocks])                              # (D, 1, MH)
    w2s = jnp.stack([p['w2'] for p in blocks])                                # (D, MH, C)
    bm2s = jnp.stack([p['bm2'] for p in blocks])                              # (D, 1, C)

    GH = bt * NUM_HEADS * H
    full = lambda *shape: pl.BlockSpec(shape, lambda b: (0,) * len(shape))

    out = pl.pallas_call(
        fused_layer_kernel,
        out_shape=jax.ShapeDtypeStruct((B * H, C), jnp.float32),
        grid=(B // bt,),
        in_specs=[
            pl.BlockSpec((bt * H, C), lambda b: (b, 0)),           # activations (BT batches)
            full(DEPTH, GH, GH),                                   # combined attn bias
            full(DEPTH, 1, C), full(DEPTH, 1, C),                  # norm1 gamma, beta
            full(DEPTH, C, 3 * C),                                 # qkv weight (scaled q)
            full(DEPTH, C, C),                                     # proj weight
            full(DEPTH, 1, C),                                     # proj bias
            full(DEPTH, 1, C), full(DEPTH, 1, C),                  # norm2 gamma, beta
            full(DEPTH, C, MLP_HIDDEN), full(DEPTH, 1, MLP_HIDDEN),# mlp fc1 w, b
            full(DEPTH, MLP_HIDDEN, C), full(DEPTH, 1, C),         # mlp fc2 w, b
        ],
        out_specs=pl.BlockSpec((bt * H, C), lambda b: (b, 0)),
        compiler_params=pltpu.CompilerParams(
            dimension_semantics=("parallel",)),
    )(x, bias_all, g1s, b1s, wqkvs, wprojs, bprojs, g2s, b2s, w1s, bm1s, w2s, bm2s)

    return jnp.transpose(out.reshape(B, H, C), (0, 2, 1))         # (b h) c -> b c h


# ---------------- pure-JAX reference (mirrors the torch windowed computation) ----------------

def compute_mask_np(hp, window, shift):
    img = np.zeros((hp,), np.float32)
    cnt = 0
    for sl in (slice(-window), slice(-window, -shift), slice(-shift, None)):
        img[sl] = cnt
        cnt += 1
    mw = img.reshape(hp // window, window)                    # (nw, ws)
    diff = mw[:, None, :] - mw[:, :, None]                    # (nw, ws, ws)
    return np.where(diff != 0, -100.0, 0.0).astype(np.float32)


def rel_pos_bias(table):
    idx = np.arange(WINDOW)
    rel = idx[:, None] - idx[None, :] + WINDOW - 1            # (ws, ws)
    bias = table[rel.reshape(-1)].reshape(WINDOW, WINDOW, NUM_HEADS)
    return jnp.transpose(bias, (2, 0, 1))


def _ref_block(x, p, bias, mask, shift):
    B, H, C = x.shape
    shortcut = x
    y = _layernorm(x, p['g1'], p['b1'])
    if shift > 0:
        y = jnp.roll(y, -shift, axis=1)
    nw = H // WINDOW
    xw = y.reshape(B * nw, WINDOW, C)
    qkv = xw @ p['wqkv']
    qkv = qkv.reshape(B * nw, WINDOW, 3, NUM_HEADS, HEAD_DIM).transpose(2, 0, 3, 1, 4)
    q, k, v = qkv[0] * (HEAD_DIM ** -0.5), qkv[1], qkv[2]
    attn = jnp.einsum('bhqd,bhkd->bhqk', q, k) + bias[None]
    attn = attn + jnp.tile(mask, (B, 1, 1))[:, None]
    attn = jax.nn.softmax(attn, axis=-1)
    out = jnp.einsum('bhqk,bhkd->bhqd', attn, v).transpose(0, 2, 1, 3).reshape(B * nw, WINDOW, C)
    out = (out @ p['wproj'] + p['bproj']).reshape(B, H, C)
    if shift > 0:
        out = jnp.roll(out, shift, axis=1)
    x1 = shortcut + out
    y2 = _layernorm(x1, p['g2'], p['b2'])
    return x1 + (_gelu(y2 @ p['w1'] + p['bm1']) @ p['w2'] + p['bm2'])


def basic_layer_1d_ref(x_bch, blocks):
    x = jnp.transpose(x_bch, (0, 2, 1))
    H = x.shape[1]
    mask_shift = jnp.asarray(compute_mask_np(H, WINDOW, SHIFT))
    mask_zero = jnp.zeros_like(mask_shift)
    for i, p in enumerate(blocks):
        s = 0 if i % 2 == 0 else SHIFT
        x = _ref_block(x, p, rel_pos_bias(p['rpb_table']),
                       mask_zero if s == 0 else mask_shift, s)
    return jnp.transpose(x, (0, 2, 1))


# ---------------- main ----------------

if __name__ == "__main__":
    key = jax.random.PRNGKey(0)
    B, C, H = 2, DIM, 16                           # BasicLayer1D input is (B, C, H)
    key, xk = jax.random.split(key)
    x = jax.random.normal(xk, (B, C, H), jnp.float32)

    blocks = []
    for i in range(DEPTH):
        key, *ks = jax.random.split(key, 10)
        blocks.append({
            'g1':   jnp.ones((1, DIM), jnp.float32),
            'b1':   jnp.zeros((1, DIM), jnp.float32),
            'wqkv': 0.05 * jax.random.normal(ks[0], (DIM, 3 * DIM), jnp.float32),
            'wproj': 0.05 * jax.random.normal(ks[1], (DIM, DIM), jnp.float32),
            'bproj': 0.05 * jax.random.normal(ks[2], (1, DIM), jnp.float32),
            'g2':   jnp.ones((1, DIM), jnp.float32),
            'b2':   jnp.zeros((1, DIM), jnp.float32),
            'w1':   0.05 * jax.random.normal(ks[3], (DIM, MLP_HIDDEN), jnp.float32),
            'bm1':  0.05 * jax.random.normal(ks[4], (1, MLP_HIDDEN), jnp.float32),
            'w2':   0.05 * jax.random.normal(ks[5], (MLP_HIDDEN, DIM), jnp.float32),
            'bm2':  0.05 * jax.random.normal(ks[6], (1, DIM), jnp.float32),
            # relative_position_bias_table, trunc_normal(std=0.02)-style init
            'rpb_table': 0.02 * jax.random.normal(ks[7], (2 * WINDOW - 1, NUM_HEADS), jnp.float32),
        })

    out = jax.block_until_ready(basic_layer_1d(x, blocks))
    ref = jax.block_until_ready(basic_layer_1d_ref(x, blocks))

    assert out.shape == (B, C, H)
    np.testing.assert_allclose(np.asarray(out), np.asarray(ref), rtol=1e-4, atol=1e-4)
    print("KERNEL_OK")
</pallas_src>

<mosaic_0001>
module attributes {stable_mosaic.version = 11 : i64} {
  func.func @fused_layer_kernel(%arg0: i32, %arg1: memref<32x32xf32, #tpu.memory_space<vmem>>, %arg2: memref<2x128x128xf32, #tpu.memory_space<vmem>>, %arg3: memref<2x1x32xf32, #tpu.memory_space<vmem>>, %arg4: memref<2x1x32xf32, #tpu.memory_space<vmem>>, %arg5: memref<2x32x96xf32, #tpu.memory_space<vmem>>, %arg6: memref<2x32x32xf32, #tpu.memory_space<vmem>>, %arg7: memref<2x1x32xf32, #tpu.memory_space<vmem>>, %arg8: memref<2x1x32xf32, #tpu.memory_space<vmem>>, %arg9: memref<2x1x32xf32, #tpu.memory_space<vmem>>, %arg10: memref<2x32x128xf32, #tpu.memory_space<vmem>>, %arg11: memref<2x1x128xf32, #tpu.memory_space<vmem>>, %arg12: memref<2x128x32xf32, #tpu.memory_space<vmem>>, %arg13: memref<2x1x32xf32, #tpu.memory_space<vmem>>, %arg14: memref<32x32xf32, #tpu.memory_space<vmem>>) attributes {dimension_semantics = [#tpu.dimension_semantics<parallel>], iteration_bounds = array<i64: 1>, scalar_prefetch = 0 : i64, scratch_operands = 0 : i64, tpu.core_type = #tpu.core_type<tc>, window_params = [{transform_indices = @transform_0, window_bounds = array<i64: 32, 32>}, {pipeline_mode = #tpu.pipeline_mode<synchronous>, transform_indices = @transform_1, window_bounds = array<i64: 2, 128, 128>}, {pipeline_mode = #tpu.pipeline_mode<synchronous>, transform_indices = @transform_2, window_bounds = array<i64: 2, 1, 32>}, {pipeline_mode = #tpu.pipeline_mode<synchronous>, transform_indices = @transform_3, window_bounds = array<i64: 2, 1, 32>}, {pipeline_mode = #tpu.pipeline_mode<synchronous>, transform_indices = @transform_4, window_bounds = array<i64: 2, 32, 96>}, {pipeline_mode = #tpu.pipeline_mode<synchronous>, transform_indices = @transform_5, window_bounds = array<i64: 2, 32, 32>}, {pipeline_mode = #tpu.pipeline_mode<synchronous>, transform_indices = @transform_6, window_bounds = array<i64: 2, 1, 32>}, {pipeline_mode = #tpu.pipeline_mode<synchronous>, transform_indices = @transform_7, window_bounds = array<i64: 2, 1, 32>}, {pipeline_mode = #tpu.pipeline_mode<synchronous>, transform_indices = @transform_8, window_bounds = array<i64: 2, 1, 32>}, {pipeline_mode = #tpu.pipeline_mode<synchronous>, transform_indices = @transform_9, window_bounds = array<i64: 2, 32, 128>}, {pipeline_mode = #tpu.pipeline_mode<synchronous>, transform_indices = @transform_10, window_bounds = array<i64: 2, 1, 128>}, {pipeline_mode = #tpu.pipeline_mode<synchronous>, transform_indices = @transform_11, window_bounds = array<i64: 2, 128, 32>}, {pipeline_mode = #tpu.pipeline_mode<synchronous>, transform_indices = @transform_12, window_bounds = array<i64: 2, 1, 32>}, {transform_indices = @transform_13, window_bounds = array<i64: 32, 32>}]} {
    %c0 = arith.constant 0 : index
    %c0_0 = arith.constant 0 : index
    %0 = vector.load %arg1[%c0, %c0_0] : memref<32x32xf32, #tpu.memory_space<vmem>>, vector<32x32xf32>
    %c0_1 = arith.constant 0 : index
    %c0_2 = arith.constant 0 : index
    %c0_3 = arith.constant 0 : index
    %1 = vector.load %arg3[%c0_1, %c0_2, %c0_3] : memref<2x1x32xf32, #tpu.memory_space<vmem>>, vector<1x1x32xf32>
    %2 = vector.shape_cast %1 : vector<1x1x32xf32> to vector<1x32xf32>
    %c0_4 = arith.constant 0 : index
    %c0_5 = arith.constant 0 : index
    %c0_6 = arith.constant 0 : index
    %3 = vector.load %arg4[%c0_4, %c0_5, %c0_6] : memref<2x1x32xf32, #tpu.memory_space<vmem>>, vector<1x1x32xf32>
    %4 = vector.shape_cast %3 : vector<1x1x32xf32> to vector<1x32xf32>
    %cst = arith.constant dense<0.000000e+00> : vector<32xf32>
    %5 = vector.multi_reduction <add>, %0, %cst [1] : vector<32x32xf32> to vector<32xf32>
    %6 = vector.shape_cast %5 : vector<32xf32> to vector<32x1xf32>
    %cst_7 = arith.constant 3.200000e+01 : f32
    %7 = vector.broadcast %cst_7 : f32 to vector<32x1xf32>
    %8 = arith.divf %6, %7 : vector<32x1xf32>
    %9 = vector.broadcast %8 : vector<32x1xf32> to vector<32x32xf32>
    %10 = arith.subf %0, %9 : vector<32x32xf32>
    %11 = arith.mulf %10, %10 : vector<32x32xf32>
    %cst_8 = arith.constant dense<0.000000e+00> : vector<32xf32>
    %12 = vector.multi_reduction <add>, %11, %cst_8 [1] : vector<32x32xf32> to vector<32xf32>
    %13 = vector.shape_cast %12 : vector<32xf32> to vector<32x1xf32>
    %cst_9 = arith.constant 3.200000e+01 : f32
    %14 = vector.broadcast %cst_9 : f32 to vector<32x1xf32>
    %15 = arith.divf %13, %14 : vector<32x1xf32>
    %16 = vector.broadcast %8 : vector<32x1xf32> to vector<32x32xf32>
    %17 = arith.subf %0, %16 : vector<32x32xf32>
    %cst_10 = arith.constant 9.99999974E-6 : f32
    %18 = vector.broadcast %cst_10 : f32 to vector<32x1xf32>
    %19 = arith.addf %15, %18 : vector<32x1xf32>
    %20 = math.rsqrt %19 : vector<32x1xf32>
    %21 = vector.broadcast %20 : vector<32x1xf32> to vector<32x32xf32>
    %22 = arith.mulf %17, %21 : vector<32x32xf32>
    %23 = vector.broadcast %2 : vector<1x32xf32> to vector<32x32xf32>
    %24 = arith.mulf %22, %23 : vector<32x32xf32>
    %25 = vector.broadcast %4 : vector<1x32xf32> to vector<32x32xf32>
    %26 = arith.addf %24, %25 : vector<32x32xf32>
    %c0_11 = arith.constant 0 : index
    %c0_12 = arith.constant 0 : index
    %c0_13 = arith.constant 0 : index
    %27 = vector.load %arg5[%c0_11, %c0_12, %c0_13] : memref<2x32x96xf32, #tpu.memory_space<vmem>>, vector<1x32x96xf32>
    %28 = vector.shape_cast %27 : vector<1x32x96xf32> to vector<32x96xf32>
    %cst_14 = arith.constant dense<0.000000e+00> : vector<32x96xf32>
    %29 = tpu.matmul %26, %28, %cst_14 {dimension_numbers = #tpu.dot_dimension_numbers<[1], [0], [0], [1], [0, 0, 1, 1], [], []>} : vector<32x32xf32>, vector<32x96xf32>, vector<32x96xf32> -> vector<32x96xf32>
    %30 = vector.extract_strided_slice %29 {offsets = [0, 0], sizes = [32, 8], strides = [1, 1]} : vector<32x96xf32> to vector<32x8xf32>
    %31 = vector.extract_strided_slice %29 {offsets = [0, 8], sizes = [32, 8], strides = [1, 1]} : vector<32x96xf32> to vector<32x8xf32>
    %32 = vector.extract_strided_slice %29 {offsets = [0, 16], sizes = [32, 8], strides = [1, 1]} : vector<32x96xf32> to vector<32x8xf32>
    %33 = vector.extract_strided_slice %29 {offsets = [0, 24], sizes = [32, 8], strides = [1, 1]} : vector<32x96xf32> to vector<32x8xf32>
    %34 = tpu.concatenate %30, %31, %32, %33 in 0 : vector<32x8xf32>, vector<32x8xf32>, vector<32x8xf32>, vector<32x8xf32> -> vector<128x8xf32>
    %35 = vector.extract_strided_slice %29 {offsets = [0, 32], sizes = [32, 8], strides = [1, 1]} : vector<32x96xf32> to vector<32x8xf32>
    %36 = vector.extract_strided_slice %29 {offsets = [0, 40], sizes = [32, 8], strides = [1, 1]} : vector<32x96xf32> to vector<32x8xf32>
    %37 = vector.extract_strided_slice %29 {offsets = [0, 48], sizes = [32, 8], strides = [1, 1]} : vector<32x96xf32> to vector<32x8xf32>
    %38 = vector.extract_strided_slice %29 {offsets = [0, 56], sizes = [32, 8], strides = [1, 1]} : vector<32x96xf32> to vector<32x8xf32>
    %39 = tpu.concatenate %35, %36, %37, %38 in 0 : vector<32x8xf32>, vector<32x8xf32>, vector<32x8xf32>, vector<32x8xf32> -> vector<128x8xf32>
    %40 = vector.extract_strided_slice %29 {offsets = [0, 64], sizes = [32, 8], strides = [1, 1]} : vector<32x96xf32> to vector<32x8xf32>
    %41 = vector.extract_strided_slice %29 {offsets = [0, 72], sizes = [32, 8], strides = [1, 1]} : vector<32x96xf32> to vector<32x8xf32>
    %42 = vector.extract_strided_slice %29 {offsets = [0, 80], sizes = [32, 8], strides = [1, 1]} : vector<32x96xf32> to vector<32x8xf32>
    %43 = vector.extract_strided_slice %29 {offsets = [0, 88], sizes = [32, 8], strides = [1, 1]} : vector<32x96xf32> to vector<32x8xf32>
    %44 = tpu.concatenate %40, %41, %42, %43 in 0 : vector<32x8xf32>, vector<32x8xf32>, vector<32x8xf32>, vector<32x8xf32> -> vector<128x8xf32>
    "tpu.trace_start"() <{level = 10 : i32, message = "md,nd->mn"}> : () -> ()
    %cst_15 = arith.constant dense<0.000000e+00> : vector<128x128xf32>
    %45 = tpu.matmul %34, %39, %cst_15 {dimension_numbers = #tpu.dot_dimension_numbers<[1], [1], [0], [0], [0, 0, 1, 0], [], []>} : vector<128x8xf32>, vector<128x8xf32>, vector<128x128xf32> -> vector<128x128xf32>
    "tpu.trace_stop"() : () -> ()
    %c0_16 = arith.constant 0 : index
    %c0_17 = arith.constant 0 : index
    %c0_18 = arith.constant 0 : index
    %46 = vector.load %arg2[%c0_16, %c0_17, %c0_18] : memref<2x128x128xf32, #tpu.memory_space<vmem>>, vector<1x128x128xf32>
    %47 = vector.shape_cast %46 : vector<1x128x128xf32> to vector<128x128xf32>
    %48 = arith.addf %45, %47 : vector<128x128xf32>
    %cst_19 = arith.constant dense<0xFF800000> : vector<128xf32>
    %49 = vector.multi_reduction <maximumf>, %48, %cst_19 [1] : vector<128x128xf32> to vector<128xf32>
    %50 = vector.shape_cast %49 : vector<128xf32> to vector<128x1xf32>
    %51 = vector.broadcast %50 : vector<128x1xf32> to vector<128x128xf32>
    %52 = arith.subf %48, %51 : vector<128x128xf32>
    %53 = math.exp %52 : vector<128x128xf32>
    %cst_20 = arith.constant dense<0.000000e+00> : vector<128xf32>
    %54 = vector.multi_reduction <add>, %53, %cst_20 [1] : vector<128x128xf32> to vector<128xf32>
    %55 = vector.shape_cast %54 : vector<128xf32> to vector<128x1xf32>
    %56 = tpu.reciprocal %55 : vector<128x1xf32> -> vector<128x1xf32>
    %57 = vector.broadcast %56 : vector<128x1xf32> to vector<128x128xf32>
    %58 = arith.mulf %53, %57 : vector<128x128xf32>
    %cst_21 = arith.constant dense<0.000000e+00> : vector<128x8xf32>
    %59 = tpu.matmul %58, %44, %cst_21 {dimension_numbers = #tpu.dot_dimension_numbers<[1], [0], [0], [1], [0, 0, 1, 1], [], []>} : vector<128x128xf32>, vector<128x8xf32>, vector<128x8xf32> -> vector<128x8xf32>
    %60 = vector.extract_strided_slice %59 {offsets = [0, 0], sizes = [32, 8], strides = [1, 1]} : vector<128x8xf32> to vector<32x8xf32>
    %61 = vector.extract_strided_slice %59 {offsets = [32, 0], sizes = [32, 8], strides = [1, 1]} : vector<128x8xf32> to vector<32x8xf32>
    %62 = vector.extract_strided_slice %59 {offsets = [64, 0], sizes = [32, 8], strides = [1, 1]} : vector<128x8xf32> to vector<32x8xf32>
    %63 = vector.extract_strided_slice %59 {offsets = [96, 0], sizes = [32, 8], strides = [1, 1]} : vector<128x8xf32> to vector<32x8xf32>
    %64 = tpu.concatenate %60, %61, %62, %63 in 1 : vector<32x8xf32>, vector<32x8xf32>, vector<32x8xf32>, vector<32x8xf32> -> vector<32x32xf32>
    %c0_22 = arith.constant 0 : index
    %c0_23 = arith.constant 0 : index
    %c0_24 = arith.constant 0 : index
    %65 = vector.load %arg6[%c0_22, %c0_23, %c0_24] : memref<2x32x32xf32, #tpu.memory_space<vmem>>, vector<1x32x32xf32>
    %66 = vector.shape_cast %65 : vector<1x32x32xf32> to vector<32x32xf32>
    %cst_25 = arith.constant dense<0.000000e+00> : vector<32x32xf32>
    %67 = tpu.matmul %64, %66, %cst_25 {dimension_numbers = #tpu.dot_dimension_numbers<[1], [0], [0], [1], [0, 0, 1, 1], [], []>} : vector<32x32xf32>, vector<32x32xf32>, vector<32x32xf32> -> vector<32x32xf32>
    %c0_26 = arith.constant 0 : index
    %c0_27 = arith.constant 0 : index
    %c0_28 = arith.constant 0 : index
    %68 = vector.load %arg7[%c0_26, %c0_27, %c0_28] : memref<2x1x32xf32, #tpu.memory_space<vmem>>, vector<1x1x32xf32>
    %69 = vector.shape_cast %68 : vector<1x1x32xf32> to vector<1x32xf32>
    %70 = vector.broadcast %69 : vector<1x32xf32> to vector<32x32xf32>
    %71 = arith.addf %67, %70 : vector<32x32xf32>
    %72 = arith.addf %0, %71 : vector<32x32xf32>
    %c0_29 = arith.constant 0 : index
    %c0_30 = arith.constant 0 : index
    %c0_31 = arith.constant 0 : index
    %73 = vector.load %arg8[%c0_29, %c0_30, %c0_31] : memref<2x1x32xf32, #tpu.memory_space<vmem>>, vector<1x1x32xf32>
    %74 = vector.shape_cast %73 : vector<1x1x32xf32> to vector<1x32xf32>
    %c0_32 = arith.constant 0 : index
    %c0_33 = arith.constant 0 : index
    %c0_34 = arith.constant 0 : index
    %75 = vector.load %arg9[%c0_32, %c0_33, %c0_34] : memref<2x1x32xf32, #tpu.memory_space<vmem>>, vector<1x1x32xf32>
    %76 = vector.shape_cast %75 : vector<1x1x32xf32> to vector<1x32xf32>
    %cst_35 = arith.constant dense<0.000000e+00> : vector<32xf32>
    %77 = vector.multi_reduction <add>, %72, %cst_35 [1] : vector<32x32xf32> to vector<32xf32>
    %78 = vector.shape_cast %77 : vector<32xf32> to vector<32x1xf32>
    %cst_36 = arith.constant 3.200000e+01 : f32
    %79 = vector.broadcast %cst_36 : f32 to vector<32x1xf32>
    %80 = arith.divf %78, %79 : vector<32x1xf32>
    %81 = vector.broadcast %80 : vector<32x1xf32> to vector<32x32xf32>
    %82 = arith.subf %72, %81 : vector<32x32xf32>
    %83 = arith.mulf %82, %82 : vector<32x32xf32>
    %cst_37 = arith.constant dense<0.000000e+00> : vector<32xf32>
    %84 = vector.multi_reduction <add>, %83, %cst_37 [1] : vector<32x32xf32> to vector<32xf32>
    %85 = vector.shape_cast %84 : vector<32xf32> to vector<32x1xf32>
    %cst_38 = arith.constant 3.200000e+01 : f32
    %86 = vector.broadcast %cst_38 : f32 to vector<32x1xf32>
    %87 = arith.divf %85, %86 : vector<32x1xf32>
    %88 = vector.broadcast %80 : vector<32x1xf32> to vector<32x32xf32>
    %89 = arith.subf %72, %88 : vector<32x32xf32>
    %cst_39 = arith.constant 9.99999974E-6 : f32
    %90 = vector.broadcast %cst_39 : f32 to vector<32x1xf32>
    %91 = arith.addf %87, %90 : vector<32x1xf32>
    %92 = math.rsqrt %91 : vector<32x1xf32>
    %93 = vector.broadcast %92 : vector<32x1xf32> to vector<32x32xf32>
    %94 = arith.mulf %89, %93 : vector<32x32xf32>
    %95 = vector.broadcast %74 : vector<1x32xf32> to vector<32x32xf32>
    %96 = arith.mulf %94, %95 : vector<32x32xf32>
    %97 = vector.broadcast %76 : vector<1x32xf32> to vector<32x32xf32>
    %98 = arith.addf %96, %97 : vector<32x32xf32>
    %c0_40 = arith.constant 0 : index
    %c0_41 = arith.constant 0 : index
    %c0_42 = arith.constant 0 : index
    %99 = vector.load %arg10[%c0_40, %c0_41, %c0_42] : memref<2x32x128xf32, #tpu.memory_space<vmem>>, vector<1x32x128xf32>
    %100 = vector.shape_cast %99 : vector<1x32x128xf32> to vector<32x128xf32>
    %cst_43 = arith.constant dense<0.000000e+00> : vector<32x128xf32>
    %101 = tpu.matmul %98, %100, %cst_43 {dimension_numbers = #tpu.dot_dimension_numbers<[1], [0], [0], [1], [0, 0, 1, 1], [], []>} : vector<32x32xf32>, vector<32x128xf32>, vector<32x128xf32> -> vector<32x128xf32>
    %c0_44 = arith.constant 0 : index
    %c0_45 = arith.constant 0 : index
    %c0_46 = arith.constant 0 : index
    %102 = vector.load %arg11[%c0_44, %c0_45, %c0_46] : memref<2x1x128xf32, #tpu.memory_space<vmem>>, vector<1x1x128xf32>
    %103 = vector.shape_cast %102 : vector<1x1x128xf32> to vector<1x128xf32>
    %104 = vector.broadcast %103 : vector<1x128xf32> to vector<32x128xf32>
    %105 = arith.addf %101, %104 : vector<32x128xf32>
    %cst_47 = arith.constant 5.000000e-01 : f32
    %106 = vector.broadcast %cst_47 : f32 to vector<32x128xf32>
    %107 = arith.mulf %106, %105 : vector<32x128xf32>
    %cst_48 = arith.constant 0.707106769 : f32
    %108 = vector.broadcast %cst_48 : f32 to vector<32x128xf32>
    %109 = arith.mulf %105, %108 : vector<32x128xf32>
    %110 = math.erf %109 : vector<32x128xf32>
    %cst_49 = arith.constant 1.000000e+00 : f32
    %111 = vector.broadcast %cst_49 : f32 to vector<32x128xf32>
    %112 = arith.addf %111, %110 : vector<32x128xf32>
    %113 = arith.mulf %107, %112 : vector<32x128xf32>
    %c0_50 = arith.constant 0 : index
    %c0_51 = arith.constant 0 : index
    %c0_52 = arith.constant 0 : index
    %114 = vector.load %arg12[%c0_50, %c0_51, %c0_52] : memref<2x128x32xf32, #tpu.memory_space<vmem>>, vector<1x128x32xf32>
    %115 = vector.shape_cast %114 : vector<1x128x32xf32> to vector<128x32xf32>
    %cst_53 = arith.constant dense<0.000000e+00> : vector<32x32xf32>
    %116 = tpu.matmul %113, %115, %cst_53 {dimension_numbers = #tpu.dot_dimension_numbers<[1], [0], [0], [1], [0, 0, 1, 1], [], []>} : vector<32x128xf32>, vector<128x32xf32>, vector<32x32xf32> -> vector<32x32xf32>
    %117 = arith.addf %72, %116 : vector<32x32xf32>
    %c0_54 = arith.constant 0 : index
    %c0_55 = arith.constant 0 : index
    %c0_56 = arith.constant 0 : index
    %118 = vector.load %arg13[%c0_54, %c0_55, %c0_56] : memref<2x1x32xf32, #tpu.memory_space<vmem>>, vector<1x1x32xf32>
    %119 = vector.shape_cast %118 : vector<1x1x32xf32> to vector<1x32xf32>
    %120 = vector.broadcast %119 : vector<1x32xf32> to vector<32x32xf32>
    %121 = arith.addf %117, %120 : vector<32x32xf32>
    %c1 = arith.constant 1 : index
    %c0_57 = arith.constant 0 : index
    %c0_58 = arith.constant 0 : index
    %122 = vector.load %arg3[%c1, %c0_57, %c0_58] : memref<2x1x32xf32, #tpu.memory_space<vmem>>, vector<1x1x32xf32>
    %123 = vector.shape_cast %122 : vector<1x1x32xf32> to vector<1x32xf32>
    %c1_59 = arith.constant 1 : index
    %c0_60 = arith.constant 0 : index
    %c0_61 = arith.constant 0 : index
    %124 = vector.load %arg4[%c1_59, %c0_60, %c0_61] : memref<2x1x32xf32, #tpu.memory_space<vmem>>, vector<1x1x32xf32>
    %125 = vector.shape_cast %124 : vector<1x1x32xf32> to vector<1x32xf32>
    %cst_62 = arith.constant dense<0.000000e+00> : vector<32xf32>
    %126 = vector.multi_reduction <add>, %121, %cst_62 [1] : vector<32x32xf32> to vector<32xf32>
    %127 = vector.shape_cast %126 : vector<32xf32> to vector<32x1xf32>
    %cst_63 = arith.constant 3.200000e+01 : f32
    %128 = vector.broadcast %cst_63 : f32 to vector<32x1xf32>
    %129 = arith.divf %127, %128 : vector<32x1xf32>
    %130 = vector.broadcast %129 : vector<32x1xf32> to vector<32x32xf32>
    %131 = arith.subf %121, %130 : vector<32x32xf32>
    %132 = arith.mulf %131, %131 : vector<32x32xf32>
    %cst_64 = arith.constant dense<0.000000e+00> : vector<32xf32>
    %133 = vector.multi_reduction <add>, %132, %cst_64 [1] : vector<32x32xf32> to vector<32xf32>
    %134 = vector.shape_cast %133 : vector<32xf32> to vector<32x1xf32>
    %cst_65 = arith.constant 3.200000e+01 : f32
    %135 = vector.broadcast %cst_65 : f32 to vector<32x1xf32>
    %136 = arith.divf %134, %135 : vector<32x1xf32>
    %137 = vector.broadcast %129 : vector<32x1xf32> to vector<32x32xf32>
    %138 = arith.subf %121, %137 : vector<32x32xf32>
    %cst_66 = arith.constant 9.99999974E-6 : f32
    %139 = vector.broadcast %cst_66 : f32 to vector<32x1xf32>
    %140 = arith.addf %136, %139 : vector<32x1xf32>
    %141 = math.rsqrt %140 : vector<32x1xf32>
    %142 = vector.broadcast %141 : vector<32x1xf32> to vector<32x32xf32>
    %143 = arith.mulf %138, %142 : vector<32x32xf32>
    %144 = vector.broadcast %123 : vector<1x32xf32> to vector<32x32xf32>
    %145 = arith.mulf %143, %144 : vector<32x32xf32>
    %146 = vector.broadcast %125 : vector<1x32xf32> to vector<32x32xf32>
    %147 = arith.addf %145, %146 : vector<32x32xf32>
    %c1_67 = arith.constant 1 : index
    %c0_68 = arith.constant 0 : index
    %c0_69 = arith.constant 0 : index
    %148 = vector.load %arg5[%c1_67, %c0_68, %c0_69] : memref<2x32x96xf32, #tpu.memory_space<vmem>>, vector<1x32x96xf32>
    %149 = vector.shape_cast %148 : vector<1x32x96xf32> to vector<32x96xf32>
    %cst_70 = arith.constant dense<0.000000e+00> : vector<32x96xf32>
    %150 = tpu.matmul %147, %149, %cst_70 {dimension_numbers = #tpu.dot_dimension_numbers<[1], [0], [0], [1], [0, 0, 1, 1], [], []>} : vector<32x32xf32>, vector<32x96xf32>, vector<32x96xf32> -> vector<32x96xf32>
    %151 = vector.extract_strided_slice %150 {offsets = [0, 0], sizes = [32, 8], strides = [1, 1]} : vector<32x96xf32> to vector<32x8xf32>
    %152 = vector.extract_strided_slice %150 {offsets = [0, 8], sizes = [32, 8], strides = [1, 1]} : vector<32x96xf32> to vector<32x8xf32>
    %153 = vector.extract_strided_slice %150 {offsets = [0, 16], sizes = [32, 8], strides = [1, 1]} : vector<32x96xf32> to vector<32x8xf32>
    %154 = vector.extract_strided_slice %150 {offsets = [0, 24], sizes = [32, 8], strides = [1, 1]} : vector<32x96xf32> to vector<32x8xf32>
    %155 = tpu.concatenate %151, %152, %153, %154 in 0 : vector<32x8xf32>, vector<32x8xf32>, vector<32x8xf32>, vector<32x8xf32> -> vector<128x8xf32>
    %156 = vector.extract_strided_slice %150 {offsets = [0, 32], sizes = [32, 8], strides = [1, 1]} : vector<32x96xf32> to vector<32x8xf32>
    %157 = vector.extract_strided_slice %150 {offsets = [0, 40], sizes = [32, 8], strides = [1, 1]} : vector<32x96xf32> to vector<32x8xf32>
    %158 = vector.extract_strided_slice %150 {offsets = [0, 48], sizes = [32, 8], strides = [1, 1]} : vector<32x96xf32> to vector<32x8xf32>
    %159 = vector.extract_strided_slice %150 {offsets = [0, 56], sizes = [32, 8], strides = [1, 1]} : vector<32x96xf32> to vector<32x8xf32>
    %160 = tpu.concatenate %156, %157, %158, %159 in 0 : vector<32x8xf32>, vector<32x8xf32>, vector<32x8xf32>, vector<32x8xf32> -> vector<128x8xf32>
    %161 = vector.extract_strided_slice %150 {offsets = [0, 64], sizes = [32, 8], strides = [1, 1]} : vector<32x96xf32> to vector<32x8xf32>
    %162 = vector.extract_strided_slice %150 {offsets = [0, 72], sizes = [32, 8], strides = [1, 1]} : vector<32x96xf32> to vector<32x8xf32>
    %163 = vector.extract_strided_slice %150 {offsets = [0, 80], sizes = [32, 8], strides = [1, 1]} : vector<32x96xf32> to vector<32x8xf32>
    %164 = vector.extract_strided_slice %150 {offsets = [0, 88], sizes = [32, 8], strides = [1, 1]} : vector<32x96xf32> to vector<32x8xf32>
    %165 = tpu.concatenate %161, %162, %163, %164 in 0 : vector<32x8xf32>, vector<32x8xf32>, vector<32x8xf32>, vector<32x8xf32> -> vector<128x8xf32>
    "tpu.trace_start"() <{level = 10 : i32, message = "md,nd->mn"}> : () -> ()
    %cst_71 = arith.constant dense<0.000000e+00> : vector<128x128xf32>
    %166 = tpu.matmul %155, %160, %cst_71 {dimension_numbers = #tpu.dot_dimension_numbers<[1], [1], [0], [0], [0, 0, 1, 0], [], []>} : vector<128x8xf32>, vector<128x8xf32>, vector<128x128xf32> -> vector<128x128xf32>
    "tpu.trace_stop"() : () -> ()
    %c1_72 = arith.constant 1 : index
    %c0_73 = arith.constant 0 : index
    %c0_74 = arith.constant 0 : index
    %167 = vector.load %arg2[%c1_72, %c0_73, %c0_74] : memref<2x128x128xf32, #tpu.memory_space<vmem>>, vector<1x128x128xf32>
    %168 = vector.shape_cast %167 : vector<1x128x128xf32> to vector<128x128xf32>
    %169 = arith.addf %166, %168 : vector<128x128xf32>
    %cst_75 = arith.constant dense<0xFF800000> : vector<128xf32>
    %170 = vector.multi_reduction <maximumf>, %169, %cst_75 [1] : vector<128x128xf32> to vector<128xf32>
    %171 = vector.shape_cast %170 : vector<128xf32> to vector<128x1xf32>
    %172 = vector.broadcast %171 : vector<128x1xf32> to vector<128x128xf32>
    %173 = arith.subf %169, %172 : vector<128x128xf32>
    %174 = math.exp %173 : vector<128x128xf32>
    %cst_76 = arith.constant dense<0.000000e+00> : vector<128xf32>
    %175 = vector.multi_reduction <add>, %174, %cst_76 [1] : vector<128x128xf32> to vector<128xf32>
    %176 = vector.shape_cast %175 : vector<128xf32> to vector<128x1xf32>
    %177 = tpu.reciprocal %176 : vector<128x1xf32> -> vector<128x1xf32>
    %178 = vector.broadcast %177 : vector<128x1xf32> to vector<128x128xf32>
    %179 = arith.mulf %174, %178 : vector<128x128xf32>
    %cst_77 = arith.constant dense<0.000000e+00> : vector<128x8xf32>
    %180 = tpu.matmul %179, %165, %cst_77 {dimension_numbers = #tpu.dot_dimension_numbers<[1], [0], [0], [1], [0, 0, 1, 1], [], []>} : vector<128x128xf32>, vector<128x8xf32>, vector<128x8xf32> -> vector<128x8xf32>
    %181 = vector.extract_strided_slice %180 {offsets = [0, 0], sizes = [32, 8], strides = [1, 1]} : vector<128x8xf32> to vector<32x8xf32>
    %182 = vector.extract_strided_slice %180 {offsets = [32, 0], sizes = [32, 8], strides = [1, 1]} : vector<128x8xf32> to vector<32x8xf32>
    %183 = vector.extract_strided_slice %180 {offsets = [64, 0], sizes = [32, 8], strides = [1, 1]} : vector<128x8xf32> to vector<32x8xf32>
    %184 = vector.extract_strided_slice %180 {offsets = [96, 0], sizes = [32, 8], strides = [1, 1]} : vector<128x8xf32> to vector<32x8xf32>
    %185 = tpu.concatenate %181, %182, %183, %184 in 1 : vector<32x8xf32>, vector<32x8xf32>, vector<32x8xf32>, vector<32x8xf32> -> vector<32x32xf32>
    %c1_78 = arith.constant 1 : index
    %c0_79 = arith.constant 0 : index
    %c0_80 = arith.constant 0 : index
    %186 = vector.load %arg6[%c1_78, %c0_79, %c0_80] : memref<2x32x32xf32, #tpu.memory_space<vmem>>, vector<1x32x32xf32>
    %187 = vector.shape_cast %186 : vector<1x32x32xf32> to vector<32x32xf32>
    %cst_81 = arith.constant dense<0.000000e+00> : vector<32x32xf32>
    %188 = tpu.matmul %185, %187, %cst_81 {dimension_numbers = #tpu.dot_dimension_numbers<[1], [0], [0], [1], [0, 0, 1, 1], [], []>} : vector<32x32xf32>, vector<32x32xf32>, vector<32x32xf32> -> vector<32x32xf32>
    %c1_82 = arith.constant 1 : index
    %c0_83 = arith.constant 0 : index
    %c0_84 = arith.constant 0 : index
    %189 = vector.load %arg7[%c1_82, %c0_83, %c0_84] : memref<2x1x32xf32, #tpu.memory_space<vmem>>, vector<1x1x32xf32>
    %190 = vector.shape_cast %189 : vector<1x1x32xf32> to vector<1x32xf32>
    %191 = vector.broadcast %190 : vector<1x32xf32> to vector<32x32xf32>
    %192 = arith.addf %188, %191 : vector<32x32xf32>
    %193 = arith.addf %121, %192 : vector<32x32xf32>
    %c1_85 = arith.constant 1 : index
    %c0_86 = arith.constant 0 : index
    %c0_87 = arith.constant 0 : index
    %194 = vector.load %arg8[%c1_85, %c0_86, %c0_87] : memref<2x1x32xf32, #tpu.memory_space<vmem>>, vector<1x1x32xf32>
    %195 = vector.shape_cast %194 : vector<1x1x32xf32> to vector<1x32xf32>
    %c1_88 = arith.constant 1 : index
    %c0_89 = arith.constant 0 : index
    %c0_90 = arith.constant 0 : index
    %196 = vector.load %arg9[%c1_88, %c0_89, %c0_90] : memref<2x1x32xf32, #tpu.memory_space<vmem>>, vector<1x1x32xf32>
    %197 = vector.shape_cast %196 : vector<1x1x32xf32> to vector<1x32xf32>
    %cst_91 = arith.constant dense<0.000000e+00> : vector<32xf32>
    %198 = vector.multi_reduction <add>, %193, %cst_91 [1] : vector<32x32xf32> to vector<32xf32>
    %199 = vector.shape_cast %198 : vector<32xf32> to vector<32x1xf32>
    %cst_92 = arith.constant 3.200000e+01 : f32
    %200 = vector.broadcast %cst_92 : f32 to vector<32x1xf32>
    %201 = arith.divf %199, %200 : vector<32x1xf32>
    %202 = vector.broadcast %201 : vector<32x1xf32> to vector<32x32xf32>
    %203 = arith.subf %193, %202 : vector<32x32xf32>
    %204 = arith.mulf %203, %203 : vector<32x32xf32>
    %cst_93 = arith.constant dense<0.000000e+00> : vector<32xf32>
    %205 = vector.multi_reduction <add>, %204, %cst_93 [1] : vector<32x32xf32> to vector<32xf32>
    %206 = vector.shape_cast %205 : vector<32xf32> to vector<32x1xf32>
    %cst_94 = arith.constant 3.200000e+01 : f32
    %207 = vector.broadcast %cst_94 : f32 to vector<32x1xf32>
    %208 = arith.divf %206, %207 : vector<32x1xf32>
    %209 = vector.broadcast %201 : vector<32x1xf32> to vector<32x32xf32>
    %210 = arith.subf %193, %209 : vector<32x32xf32>
    %cst_95 = arith.constant 9.99999974E-6 : f32
    %211 = vector.broadcast %cst_95 : f32 to vector<32x1xf32>
    %212 = arith.addf %208, %211 : vector<32x1xf32>
    %213 = math.rsqrt %212 : vector<32x1xf32>
    %214 = vector.broadcast %213 : vector<32x1xf32> to vector<32x32xf32>
    %215 = arith.mulf %210, %214 : vector<32x32xf32>
    %216 = vector.broadcast %195 : vector<1x32xf32> to vector<32x32xf32>
    %217 = arith.mulf %215, %216 : vector<32x32xf32>
    %218 = vector.broadcast %197 : vector<1x32xf32> to vector<32x32xf32>
    %219 = arith.addf %217, %218 : vector<32x32xf32>
    %c1_96 = arith.constant 1 : index
    %c0_97 = arith.constant 0 : index
    %c0_98 = arith.constant 0 : index
    %220 = vector.load %arg10[%c1_96, %c0_97, %c0_98] : memref<2x32x128xf32, #tpu.memory_space<vmem>>, vector<1x32x128xf32>
    %221 = vector.shape_cast %220 : vector<1x32x128xf32> to vector<32x128xf32>
    %cst_99 = arith.constant dense<0.000000e+00> : vector<32x128xf32>
    %222 = tpu.matmul %219, %221, %cst_99 {dimension_numbers = #tpu.dot_dimension_numbers<[1], [0], [0], [1], [0, 0, 1, 1], [], []>} : vector<32x32xf32>, vector<32x128xf32>, vector<32x128xf32> -> vector<32x128xf32>
    %c1_100 = arith.constant 1 : index
    %c0_101 = arith.constant 0 : index
    %c0_102 = arith.constant 0 : index
    %223 = vector.load %arg11[%c1_100, %c0_101, %c0_102] : memref<2x1x128xf32, #tpu.memory_space<vmem>>, vector<1x1x128xf32>
    %224 = vector.shape_cast %223 : vector<1x1x128xf32> to vector<1x128xf32>
    %225 = vector.broadcast %224 : vector<1x128xf32> to vector<32x128xf32>
    %226 = arith.addf %222, %225 : vector<32x128xf32>
    %cst_103 = arith.constant 5.000000e-01 : f32
    %227 = vector.broadcast %cst_103 : f32 to vector<32x128xf32>
    %228 = arith.mulf %227, %226 : vector<32x128xf32>
    %cst_104 = arith.constant 0.707106769 : f32
    %229 = vector.broadcast %cst_104 : f32 to vector<32x128xf32>
    %230 = arith.mulf %226, %229 : vector<32x128xf32>
    %231 = math.erf %230 : vector<32x128xf32>
    %cst_105 = arith.constant 1.000000e+00 : f32
    %232 = vector.broadcast %cst_105 : f32 to vector<32x128xf32>
    %233 = arith.addf %232, %231 : vector<32x128xf32>
    %234 = arith.mulf %228, %233 : vector<32x128xf32>
    %c1_106 = arith.constant 1 : index
    %c0_107 = arith.constant 0 : index
    %c0_108 = arith.constant 0 : index
    %235 = vector.load %arg12[%c1_106, %c0_107, %c0_108] : memref<2x128x32xf32, #tpu.memory_space<vmem>>, vector<1x128x32xf32>
    %236 = vector.shape_cast %235 : vector<1x128x32xf32> to vector<128x32xf32>
    %cst_109 = arith.constant dense<0.000000e+00> : vector<32x32xf32>
    %237 = tpu.matmul %234, %236, %cst_109 {dimension_numbers = #tpu.dot_dimension_numbers<[1], [0], [0], [1], [0, 0, 1, 1], [], []>} : vector<32x128xf32>, vector<128x32xf32>, vector<32x32xf32> -> vector<32x32xf32>
    %238 = arith.addf %193, %237 : vector<32x32xf32>
    %c1_110 = arith.constant 1 : index
    %c0_111 = arith.constant 0 : index
    %c0_112 = arith.constant 0 : index
    %239 = vector.load %arg13[%c1_110, %c0_111, %c0_112] : memref<2x1x32xf32, #tpu.memory_space<vmem>>, vector<1x1x32xf32>
    %240 = vector.shape_cast %239 : vector<1x1x32xf32> to vector<1x32xf32>
    %241 = vector.broadcast %240 : vector<1x32xf32> to vector<32x32xf32>
    %242 = arith.addf %238, %241 : vector<32x32xf32>
    %c0_113 = arith.constant 0 : index
    %c0_114 = arith.constant 0 : index
    %243 = vector.load %arg14[%c0_113, %c0_114] : memref<32x32xf32, #tpu.memory_space<vmem>>, vector<32x32xf32>
    tpu.vector_store %arg14[%c0_113, %c0_114], %242 {strides = array<i32>} : memref<32x32xf32, #tpu.memory_space<vmem>>, vector<32x32xf32>,
    return
  }
  func.func @transform_0(%arg0: i32) -> (i32, i32) {
    %c0_i32 = arith.constant 0 : i32
    %c0_i32_0 = arith.constant 0 : i32
    return %arg0, %c0_i32 : i32, i32
  }
  func.func @transform_1(%arg0: i32) -> (i32, i32, i32) {
    %c0_i32 = arith.constant 0 : i32
    %c0_i32_0 = arith.constant 0 : i32
    %c0_i32_1 = arith.constant 0 : i32
    %c0_i32_2 = arith.constant 0 : i32
    return %c0_i32, %c0_i32_0, %c0_i32_1 : i32, i32, i32
  }
  func.func @transform_2(%arg0: i32) -> (i32, i32, i32) {
    %c0_i32 = arith.constant 0 : i32
    %c0_i32_0 = arith.constant 0 : i32
    %c0_i32_1 = arith.constant 0 : i32
    %c0_i32_2 = arith.constant 0 : i32
    return %c0_i32, %c0_i32_0, %c0_i32_1 : i32, i32, i32
  }
  func.func @transform_3(%arg0: i32) -> (i32, i32, i32) {
    %c0_i32 = arith.constant 0 : i32
    %c0_i32_0 = arith.constant 0 : i32
    %c0_i32_1 = arith.constant 0 : i32
    %c0_i32_2 = arith.constant 0 : i32
    return %c0_i32, %c0_i32_0, %c0_i32_1 : i32, i32, i32
  }
  func.func @transform_4(%arg0: i32) -> (i32, i32, i32) {
    %c0_i32 = arith.constant 0 : i32
    %c0_i32_0 = arith.constant 0 : i32
    %c0_i32_1 = arith.constant 0 : i32
    %c0_i32_2 = arith.constant 0 : i32
    return %c0_i32, %c0_i32_0, %c0_i32_1 : i32, i32, i32
  }
  func.func @transform_5(%arg0: i32) -> (i32, i32, i32) {
    %c0_i32 = arith.constant 0 : i32
    %c0_i32_0 = arith.constant 0 : i32
    %c0_i32_1 = arith.constant 0 : i32
    %c0_i32_2 = arith.constant 0 : i32
    return %c0_i32, %c0_i32_0, %c0_i32_1 : i32, i32, i32
  }
  func.func @transform_6(%arg0: i32) -> (i32, i32, i32) {
    %c0_i32 = arith.constant 0 : i32
    %c0_i32_0 = arith.constant 0 : i32
    %c0_i32_1 = arith.constant 0 : i32
    %c0_i32_2 = arith.constant 0 : i32
    return %c0_i32, %c0_i32_0, %c0_i32_1 : i32, i32, i32
  }
  func.func @transform_7(%arg0: i32) -> (i32, i32, i32) {
    %c0_i32 = arith.constant 0 : i32
    %c0_i32_0 = arith.constant 0 : i32
    %c0_i32_1 = arith.constant 0 : i32
    %c0_i32_2 = arith.constant 0 : i32
    return %c0_i32, %c0_i32_0, %c0_i32_1 : i32, i32, i32
  }
  func.func @transform_8(%arg0: i32) -> (i32, i32, i32) {
    %c0_i32 = arith.constant 0 : i32
    %c0_i32_0 = arith.constant 0 : i32
    %c0_i32_1 = arith.constant 0 : i32
    %c0_i32_2 = arith.constant 0 : i32
    return %c0_i32, %c0_i32_0, %c0_i32_1 : i32, i32, i32
  }
  func.func @transform_9(%arg0: i32) -> (i32, i32, i32) {
    %c0_i32 = arith.constant 0 : i32
    %c0_i32_0 = arith.constant 0 : i32
    %c0_i32_1 = arith.constant 0 : i32
    %c0_i32_2 = arith.constant 0 : i32
    return %c0_i32, %c0_i32_0, %c0_i32_1 : i32, i32, i32
  }
  func.func @transform_10(%arg0: i32) -> (i32, i32, i32) {
    %c0_i32 = arith.constant 0 : i32
    %c0_i32_0 = arith.constant 0 : i32
    %c0_i32_1 = arith.constant 0 : i32
    %c0_i32_2 = arith.constant 0 : i32
    return %c0_i32, %c0_i32_0, %c0_i32_1 : i32, i32, i32
  }
  func.func @transform_11(%arg0: i32) -> (i32, i32, i32) {
    %c0_i32 = arith.constant 0 : i32
    %c0_i32_0 = arith.constant 0 : i32
    %c0_i32_1 = arith.constant 0 : i32
    %c0_i32_2 = arith.constant 0 : i32
    return %c0_i32, %c0_i32_0, %c0_i32_1 : i32, i32, i32
  }
  func.func @transform_12(%arg0: i32) -> (i32, i32, i32) {
    %c0_i32 = arith.constant 0 : i32
    %c0_i32_0 = arith.constant 0 : i32
    %c0_i32_1 = arith.constant 0 : i32
    %c0_i32_2 = arith.constant 0 : i32
    return %c0_i32, %c0_i32_0, %c0_i32_1 : i32, i32, i32
  }
  func.func @transform_13(%arg0: i32) -> (i32, i32) {
    %c0_i32 = arith.constant 0 : i32
    %c0_i32_0 = arith.constant 0 : i32
    return %arg0, %c0_i32 : i32, i32
  }
}

</mosaic_0001>

<llo_original>
// kernel: tpu_custom_call.1
$region0: #{tpu_custom_call.1}
  #allocation0 [shape = 'u32[]', space=smem, size = 0x4, offset = 0x4, fixed_abs, tag = 'smem constant byte address 0x4 - core index']
  #allocation1 [shape = 'u32[144,128]{1,0:T(1,128)}', space=vmem, size = 0x12000, scoped, tag = 'internal scratch']
  %s0 = inlined_call_operand.hbm [shape: f32[32,32], index: 0, kind: input, shape index: {}]
  %s1 = inlined_call_operand.vmem [shape: f32[2,128,128], index: 1, kind: input, shape index: {}]
  %s2 = inlined_call_operand.vmem [shape: f32[2,1,32], index: 2, kind: input, shape index: {}]
  %s3 = inlined_call_operand.vmem [shape: f32[2,1,32], index: 3, kind: input, shape index: {}]
  %s4 = inlined_call_operand.vmem [shape: f32[2,32,96], index: 4, kind: input, shape index: {}]
  %s5 = inlined_call_operand.hbm [shape: f32[2,32,32], index: 5, kind: input, shape index: {}]
  %s6 = inlined_call_operand.vmem [shape: f32[2,1,32], index: 6, kind: input, shape index: {}]
  %s7 = inlined_call_operand.vmem [shape: f32[2,1,32], index: 7, kind: input, shape index: {}]
  %s8 = inlined_call_operand.vmem [shape: f32[2,1,32], index: 8, kind: input, shape index: {}]
  %s9 = inlined_call_operand.hbm [shape: f32[2,32,128], index: 9, kind: input, shape index: {}]
  %s10 = inlined_call_operand.vmem [shape: f32[2,1,128], index: 10, kind: input, shape index: {}]
  %s11 = inlined_call_operand.vmem [shape: f32[2,128,32], index: 11, kind: input, shape index: {}]
  %s12 = inlined_call_operand.vmem [shape: f32[2,1,32], index: 12, kind: input, shape index: {}]
  %s13 = inlined_call_operand.hbm [shape: f32[32,32], index: 13, kind: output, shape index: {}]
  %s14 = sld [smem:[#allocation0]]
  $region74: #{tpu_custom_call.1} parent=0
    _
  %s16 = ssub.s32 1, %s14
  %s17 = scalar_select 0, %s16, %s14
  $region1: #{tpu_custom_call.1} parent=0
    #allocation2 [shape = 'u8[16384]{0}', space=vmem, size = 0x4000, scoped, tag = 'input window, operand 0, single buffered']
    #allocation3 [shape = 's32[1]{0}', space=sflag, size = 0x4, scoped, tag = 'scoped memory for tpu_custom_call.1']
    #allocation4 [shape = 's32[1]{0}', space=sflag, size = 0x4, scoped, tag = 'scoped memory for tpu_custom_call.1']
    #allocation5 [shape = 'u8[32768]{0}', space=vmem, size = 0x8000, scoped, tag = 'input window, operand 5, single buffered']
    #allocation6 [shape = 's32[1]{0}', space=sflag, size = 0x4, scoped, tag = 'scoped memory for tpu_custom_call.1']
    #allocation7 [shape = 'u8[32768]{0}', space=vmem, size = 0x8000, scoped, tag = 'input window, operand 9, single buffered']
    #allocation8 [shape = 'u8[16384]{0}', space=vmem, size = 0x4000, scoped, tag = 'output window, operand 0, single buffered']
    %18 = vsyncpa [#allocation3], 0
    %19 = vsyncpa [#allocation6], 0
    %20 = vsyncpa [#allocation4], 0
    // Predicated region
    $region2: #{tpu_custom_call.1} parent=1 // pred_check
      _
    $region3: #{tpu_custom_call.1} parent=1 // pred_check_branch
      %22 = sbr.rel (0) target = $region5
    $region4: #{tpu_custom_call.1} parent=1 // pred_region
      %s24 = ssub.s32 512, 512
      %25 = vsyncadd [#allocation3], %s24
      %s26 = sshll.u32 [#allocation2], 4
      %s27 = int_to_ptr.vmem [resolvable:$true] %s26
      %32 = dma.hbm_to_vmem [thread:$0]  %s0, 512, %s27, [#allocation3], 128, 128, 8
    $region5: #{tpu_custom_call.1} parent=1 // pred_fallthru
      _
    // Predicated region
    $region6: #{tpu_custom_call.1} parent=1 // pred_check
      _
    $region7: #{tpu_custom_call.1} parent=1 // pred_check_branch
      %34 = sbr.rel (0) target = $region9
    $region8: #{tpu_custom_call.1} parent=1 // pred_region
      _
    $region9: #{tpu_custom_call.1} parent=1 // pred_fallthru
      _
    // Predicated region
    $region10: #{tpu_custom_call.1} parent=1 // pred_check
      _
    $region11: #{tpu_custom_call.1} parent=1 // pred_check_branch
      %36 = sbr.rel (0) target = $region13
    $region12: #{tpu_custom_call.1} parent=1 // pred_region
      _
    $region13: #{tpu_custom_call.1} parent=1 // pred_fallthru
      _
    // Predicated region
    $region14: #{tpu_custom_call.1} parent=1 // pred_check
      _
    $region15: #{tpu_custom_call.1} parent=1 // pred_check_branch
      %38 = sbr.rel (0) target = $region17
    $region16: #{tpu_custom_call.1} parent=1 // pred_region
      _
    $region17: #{tpu_custom_call.1} parent=1 // pred_fallthru
      _
    // Predicated region
    $region18: #{tpu_custom_call.1} parent=1 // pred_check
      _
    $region19: #{tpu_custom_call.1} parent=1 // pred_check_branch
      %40 = sbr.rel (0) target = $region21
    $region20: #{tpu_custom_call.1} parent=1 // pred_region
      _
    $region21: #{tpu_custom_call.1} parent=1 // pred_fallthru
      _
    // Predicated region
    $region22: #{tpu_custom_call.1} parent=1 // pred_check
      _
    $region23: #{tpu_custom_call.1} parent=1 // pred_check_branch
      %42 = sbr.rel (0) target = $region25
    $region24: #{tpu_custom_call.1} parent=1 // pred_region
      %s44 = ssub.s32 1024, 1024
      %45 = vsyncadd [#allocation6], %s44
      %s46 = sshll.u32 [#allocation5], 4
      %s47 = int_to_ptr.vmem [resolvable:$true] %s46
      %52 = dma.hbm_to_vmem [thread:$0]  %s5, 1024, %s47, [#allocation6], 128, 128, 8
    $region25: #{tpu_custom_call.1} parent=1 // pred_fallthru
      _
    // Predicated region
    $region26: #{tpu_custom_call.1} parent=1 // pred_check
      _
    $region27: #{tpu_custom_call.1} parent=1 // pred_check_branch
      %54 = sbr.rel (0) target = $region29
    $region28: #{tpu_custom_call.1} parent=1 // pred_region
      _
    $region29: #{tpu_custom_call.1} parent=1 // pred_fallthru
      _
    // Predicated region
    $region30: #{tpu_custom_call.1} parent=1 // pred_check
      _
    $region31: #{tpu_custom_call.1} parent=1 // pred_check_branch
      %56 = sbr.rel (0) target = $region33
    $region32: #{tpu_custom_call.1} parent=1 // pred_region
      _
    $region33: #{tpu_custom_call.1} parent=1 // pred_fallthru
      _
    // Predicated region
    $region34: #{tpu_custom_call.1} parent=1 // pred_check
      _
    $region35: #{tpu_custom_call.1} parent=1 // pred_check_branch
      %58 = sbr.rel (0) target = $region37
    $region36: #{tpu_custom_call.1} parent=1 // pred_region
      _
    $region37: #{tpu_custom_call.1} parent=1 // pred_fallthru
      _
    // Predicated region
    $region38: #{tpu_custom_call.1} parent=1 // pred_check
      _
    $region39: #{tpu_custom_call.1} parent=1 // pred_check_branch
      %60 = sbr.rel (0) target = $region41
    $region40: #{tpu_custom_call.1} parent=1 // pred_region
      %s62 = ssub.s32 1024, 1024
      %63 = vsyncadd [#allocation6], %s62
      %s64 = sshll.u32 [#allocation7], 4
      %s65 = int_to_ptr.vmem [resolvable:$true] %s64
      %70 = dma.hbm_to_vmem [thread:$0]  %s9, 1024, %s65, [#allocation6], 128, 128, 8
    $region41: #{tpu_custom_call.1} parent=1 // pred_fallthru
      _
    // Predicated region
    $region42: #{tpu_custom_call.1} parent=1 // pred_check
      _
    $region43: #{tpu_custom_call.1} parent=1 // pred_check_branch
      %72 = sbr.rel (0) target = $region45
    $region44: #{tpu_custom_call.1} parent=1 // pred_region
      _
    $region45: #{tpu_custom_call.1} parent=1 // pred_fallthru
      _
    // Predicated region
    $region46: #{tpu_custom_call.1} parent=1 // pred_check
      _
    $region47: #{tpu_custom_call.1} parent=1 // pred_check_branch
      %74 = sbr.rel (0) target = $region49
    $region48: #{tpu_custom_call.1} parent=1 // pred_region
      _
    $region49: #{tpu_custom_call.1} parent=1 // pred_fallthru
      _
    // Predicated region
    $region50: #{tpu_custom_call.1} parent=1 // pred_check
      _
    $region51: #{tpu_custom_call.1} parent=1 // pred_check_branch
      %76 = sbr.rel (0) target = $region53
    $region52: #{tpu_custom_call.1} parent=1 // pred_region
      _
    $region53: #{tpu_custom_call.1} parent=1 // pred_fallthru
      _
    // Predicated region
    $region54: #{tpu_custom_call.1} parent=1 // pred_check
      _
    $region55: #{tpu_custom_call.1} parent=1 // pred_check_branch
      %78 = sbr.rel (0) target = $region57
    $region56: #{tpu_custom_call.1} parent=1 // pred_region
      %79 = dma.done [#allocation3], 512
    $region57: #{tpu_custom_call.1} parent=1 // pred_fallthru
      _
    // Predicated region
    $region58: #{tpu_custom_call.1} parent=1 // pred_check
      _
    $region59: #{tpu_custom_call.1} parent=1 // pred_check_branch
      %81 = sbr.rel (0) target = $region61
    $region60: #{tpu_custom_call.1} parent=1 // pred_region
      %82 = dma.done [#allocation6], 1024
    $region61: #{tpu_custom_call.1} parent=1 // pred_fallthru
      _
    // Predicated region
    $region62: #{tpu_custom_call.1} parent=1 // pred_check
      _
    $region63: #{tpu_custom_call.1} parent=1 // pred_check_branch
      %84 = sbr.rel (0) target = $region65
    $region64: #{tpu_custom_call.1} parent=1 // pred_region
      %85 = dma.done [#allocation6], 1024
    $region65: #{tpu_custom_call.1} parent=1 // pred_fallthru
      _
    %v86 = vld [vmem:[#allocation2] sm:$0xff]
    %v87 = vld [vmem:[#allocation2 + $0x8] sm:$0xff]
    %v88 = vld [vmem:[#allocation2 + $0x10] sm:$0xff]
    %v89 = vld [vmem:[#allocation2 + $0x18] sm:$0xff]
    %v90 = vld [vmem:[%s2] sm:$0x1]
    %v91 = vld [vmem:[%s3] sm:$0x1]
    %vm92 = vcmask 261120
    %v93 = vsel %vm92, %v86, 0.0
    %94 = vadd.xlane.f32.xlu0 %v93
    %v95 = vpop.xlane.xlu0 %94
    %v96 = vsel %vm92, %v87, 0.0
    %97 = vadd.xlane.f32.xlu0 %v96
    %v98 = vpop.xlane.xlu0 %97
    %v99 = vsel %vm92, %v88, 0.0
    %100 = vadd.xlane.f32.xlu0 %v99
    %v101 = vpop.xlane.xlu0 %100
    %v102 = vsel %vm92, %v89, 0.0
    %103 = vadd.xlane.f32.xlu0 %v102
    %v104 = vpop.xlane.xlu0 %103
    %v105 = vrcp.pop 32.0
    %v106 = vmul.f32 %v95, %v105
    %v107 = vmul.f32 %v98, %v105
    %v108 = vmul.f32 %v101, %v105
    %v109 = vmul.f32 %v104, %v105
    %v110 = vsub.f32 %v86, %v106
    %v111 = vsub.f32 %v87, %v107
    %v112 = vsub.f32 %v88, %v108
    %v113 = vsub.f32 %v89, %v109
    %v114 = vmul.f32 %v110, %v110
    %v115 = vmul.f32 %v111, %v111
    %v116 = vmul.f32 %v112, %v112
    %v117 = vmul.f32 %v113, %v113
    %v118 = vsel %vm92, %v114, 0.0
    %119 = vadd.xlane.f32.xlu0 %v118
    %v120 = vpop.xlane.xlu0 %119
    %v121 = vsel %vm92, %v115, 0.0
    %122 = vadd.xlane.f32.xlu0 %v121
    %v123 = vpop.xlane.xlu0 %122
    %v124 = vsel %vm92, %v116, 0.0
    %125 = vadd.xlane.f32.xlu0 %v124
    %v126 = vpop.xlane.xlu0 %125
    %v127 = vsel %vm92, %v117, 0.0
    %128 = vadd.xlane.f32.xlu0 %v127
    %v129 = vpop.xlane.xlu0 %128
    %v130 = vmul.f32 %v120, %v105
    %v131 = vmul.f32 %v123, %v105
    %v132 = vmul.f32 %v126, %v105
    %v133 = vmul.f32 %v129, %v105
    %v134 = vadd.f32 %v130, 1e-05
    %v135 = vadd.f32 %v131, 1e-05
    %v136 = vadd.f32 %v132, 1e-05
    %v137 = vadd.f32 %v133, 1e-05
    %v138 = vrsqrt.pop %v134
    %v139 = vrsqrt.pop %v135
    %v140 = vrsqrt.pop %v136
    %v141 = vrsqrt.pop %v137
    %v142 = vmul.f32 %v110, %v138
    %v143 = vmul.f32 %v111, %v139
    %v144 = vmul.f32 %v112, %v140
    %v145 = vmul.f32 %v113, %v141
    %v147 = vlaneseq
    %v148 = vshrl.u32 %v147, 7
    %v149 = vsub.s32 0, %v148
    %v150 = vrot.slane %v90, %v149
    %v152 = vmul.f32 %v142, %v150
    %v153 = vmul.f32 %v143, %v150
    %v154 = vmul.f32 %v144, %v150
    %v155 = vmul.f32 %v145, %v150
    %v157 = vlaneseq
    %v158 = vshrl.u32 %v157, 7
    %v159 = vsub.s32 0, %v158
    %v160 = vrot.slane %v91, %v159
    %v162 = vadd.f32 %v152, %v160
    %v163 = vadd.f32 %v153, %v160
    %v164 = vadd.f32 %v154, %v160
    %v165 = vadd.f32 %v155, %v160
    %v166 = vld [vmem:[%s4] sm:$0xff]
    %v167 = vld [vmem:[%s4 + $0x8] sm:$0xff]
    %v168 = vld [vmem:[%s4 + $0x10] sm:$0xff]
    %v169 = vld [vmem:[%s4 + $0x18] sm:$0xff]
    %v171 = vsel %vm92, %v162, 0
    %v174 = vsel %vm92, %v163, 0
    %v177 = vsel %vm92, %v164, 0
    %v180 = vsel %vm92, %v165, 0
    %182 = vmatprep.subr.mxu0 0.0
    %183 = vmatpush1.msra.mxu0 %v166
    %184 = vmatprep.subr.mxu0 0.0
    %185 = vmatpush1.msra.mxu0 %v167
    %186 = vmatprep.subr.mxu0 0.0
    %187 = vmatpush1.msra.mxu0 %v168
    %188 = vmatprep.subr.mxu0 0.0
    %189 = vmatpush1.msra.mxu0 %v169
    %190 = vmatprep.subr.mxu0 0.0
    %191 = vmatpush1.msra.mxu0 0.0
    %192 = vmatprep.subr.mxu0 0.0
    %193 = vmatpush1.msra.mxu0 0.0
    %194 = vmatprep.subr.mxu0 0.0
    %195 = vmatpush1.msra.mxu0 0.0
    %196 = vmatprep.subr.mxu0 0.0
    %197 = vmatpush1.msra.mxu0 0.0
    %198 = vmatprep.subr.mxu0 0.0
    %199 = vmatpush1.msra.mxu0 0.0
    %200 = vmatprep.subr.mxu0 0.0
    %201 = vmatpush1.msra.mxu0 0.0
    %202 = vmatprep.subr.mxu0 0.0
    %203 = vmatpush1.msra.mxu0 0.0
    %204 = vmatprep.subr.mxu0 0.0
    %205 = vmatpush1.msra.mxu0 0.0
    %206 = vmatprep.subr.mxu0 0.0
    %207 = vmatpush1.msra.mxu0 0.0
    %208 = vmatprep.subr.mxu0 0.0
    %209 = vmatpush1.msra.mxu0 0.0
    %210 = vmatprep.subr.mxu0 0.0
    %211 = vmatpush1.msra.mxu0 0.0
    %212 = vmatprep.subr.mxu0 0.0
    %213 = vmatpush1.msra.mxu0 0.0
    %214 = vmatprep.subr.mxu0 0.0
    %215 = vmatpush1.msra.mxu0 0.0
    %216 = vmatprep.subr.mxu0 0.0
    %217 = vmatpush1.msra.mxu0 0.0
    %218 = vmatprep.subr.mxu0 0.0
    %219 = vmatpush1.msra.mxu0 0.0
    %220 = vmatprep.subr.mxu0 0.0
    %221 = vmatpush1.msra.mxu0 0.0
    %222 = vmatprep.subr.mxu0 0.0
    %223 = vmatpush1.msra.mxu0 0.0
    %224 = vmatprep.subr.mxu0 0.0
    %225 = vmatpush1.msra.mxu0 0.0
    %226 = vmatprep.subr.mxu0 0.0
    %227 = vmatpush1.msra.mxu0 0.0
    %228 = vmatprep.subr.mxu0 0.0
    %229 = vmatpush1.msra.mxu0 0.0
    %230 = vmatprep.subr.mxu0 0.0
    %231 = vmatpush1.msra.mxu0 0.0
    %232 = vmatprep.subr.mxu0 0.0
    %233 = vmatpush1.msra.mxu0 0.0
    %234 = vmatprep.subr.mxu0 0.0
    %235 = vmatpush1.msra.mxu0 0.0
    %236 = vmatprep.subr.mxu0 0.0
    %237 = vmatpush1.msra.mxu0 0.0
    %238 = vmatprep.subr.mxu0 0.0
    %239 = vmatpush1.msra.mxu0 0.0
    %240 = vmatprep.subr.mxu0 0.0
    %241 = vmatpush1.msra.mxu0 0.0
    %242 = vmatprep.subr.mxu0 0.0
    %243 = vmatpush1.msra.mxu0 0.0
    %244 = vmatprep.subr.mxu0 0.0
    %245 = vmatpush1.msra.mxu0 0.0
    %246 = vmatprep.mubr.f32.mxu0 0.0
    %247 = vmatmul.mubr.f32.gmra.mrb[0].mxu0 %v171
    %v248 = vpop.f32.mrb[0].mxu0
    %v249 = vadd.f32 0.0, %v248
    %v250 = vpop.f32.mrb[0].mxu0
    %251 = vmatprep.mubr.f32.mxu0 0.0
    %252 = vmatmul.mubr.f32.gmra.mrb[0].mxu0 %v174
    %v253 = vpop.f32.mrb[0].mxu0
    %v254 = vadd.f32 0.0, %v253
    %v255 = vpop.f32.mrb[0].mxu0
    %256 = vmatprep.mubr.f32.mxu0 0.0
    %257 = vmatmul.mubr.f32.gmra.mrb[0].mxu0 %v177
    %v258 = vpop.f32.mrb[0].mxu0
    %v259 = vadd.f32 0.0, %v258
    %v260 = vpop.f32.mrb[0].mxu0
    %261 = vmatprep.mubr.f32.mxu0 0.0
    %262 = vmatmul.mubr.f32.gmra.mrb[0].mxu0 %v180
    %v263 = vpop.f32.mrb[0].mxu0
    %v264 = vadd.f32 0.0, %v263
    %v265 = vpop.f32.mrb[0].mxu0
    %266 = vdwg.mxu0
    %271 = vrot.lane.b32.xlu0 %v249, 120
    %v272 = vpop.permute.xlu0 %271
    %273 = vrot.lane.b32.xlu0 %v254, 120
    %v274 = vpop.permute.xlu0 %273
    %275 = vrot.lane.b32.xlu0 %v259, 120
    %v276 = vpop.permute.xlu0 %275
    %277 = vrot.lane.b32.xlu0 %v264, 120
    %v278 = vpop.permute.xlu0 %277
    %279 = vrot.lane.b32.xlu0 %v249, 112
    %v280 = vpop.permute.xlu0 %279
    %281 = vrot.lane.b32.xlu0 %v254, 112
    %v282 = vpop.permute.xlu0 %281
    %283 = vrot.lane.b32.xlu0 %v259, 112
    %v284 = vpop.permute.xlu0 %283
    %285 = vrot.lane.b32.xlu0 %v264, 112
    %v286 = vpop.permute.xlu0 %285
    %287 = vrot.lane.b32.xlu0 %v249, 104
    %v288 = vpop.permute.xlu0 %287
    %289 = vrot.lane.b32.xlu0 %v254, 104
    %v290 = vpop.permute.xlu0 %289
    %291 = vrot.lane.b32.xlu0 %v259, 104
    %v292 = vpop.permute.xlu0 %291
    %293 = vrot.lane.b32.xlu0 %v264, 104
    %v294 = vpop.permute.xlu0 %293
    %v295 = vld [vmem:[%s1] sm:$0xff]
    %v296 = vld [vmem:[%s1 + $0x8] sm:$0xff]
    %v297 = vld [vmem:[%s1 + $0x10] sm:$0xff]
    %v298 = vld [vmem:[%s1 + $0x18] sm:$0xff]
    %v299 = vld [vmem:[%s1 + $0x20] sm:$0xff]
    %v300 = vld [vmem:[%s1 + $0x28] sm:$0xff]
    %v301 = vld [vmem:[%s1 + $0x30] sm:$0xff]
    %v302 = vld [vmem:[%s1 + $0x38] sm:$0xff]
    %v303 = vld [vmem:[%s1 + $0x40] sm:$0xff]
    %v304 = vld [vmem:[%s1 + $0x48] sm:$0xff]
    %v305 = vld [vmem:[%s1 + $0x50] sm:$0xff]
    %v306 = vld [vmem:[%s1 + $0x58] sm:$0xff]
    %v307 = vld [vmem:[%s1 + $0x60] sm:$0xff]
    %v308 = vld [vmem:[%s1 + $0x68] sm:$0xff]
    %v309 = vld [vmem:[%s1 + $0x70] sm:$0xff]
    %v310 = vld [vmem:[%s1 + $0x78] sm:$0xff]
    %311 = vrot.lane.b32.xlu0 %v249, 96
    %v312 = vpop.permute.xlu0 %311
    %313 = vrot.lane.b32.xlu0 %v254, 96
    %v314 = vpop.permute.xlu0 %313
    %315 = vrot.lane.b32.xlu0 %v259, 96
    %v316 = vpop.permute.xlu0 %315
    %317 = vrot.lane.b32.xlu0 %v264, 96
    %v318 = vpop.permute.xlu0 %317
    %319 = vrot.lane.b32.xlu0 %v272, 96
    %v320 = vpop.permute.xlu0 %319
    %321 = vrot.lane.b32.xlu0 %v274, 96
    %v322 = vpop.permute.xlu0 %321
    %323 = vrot.lane.b32.xlu0 %v276, 96
    %v324 = vpop.permute.xlu0 %323
    %325 = vrot.lane.b32.xlu0 %v278, 96
    %v326 = vpop.permute.xlu0 %325
    %327 = vrot.lane.b32.xlu0 %v280, 96
    %v328 = vpop.permute.xlu0 %327
    %329 = vrot.lane.b32.xlu0 %v282, 96
    %v330 = vpop.permute.xlu0 %329
    %331 = vrot.lane.b32.xlu0 %v284, 96
    %v332 = vpop.permute.xlu0 %331
    %333 = vrot.lane.b32.xlu0 %v286, 96
    %v334 = vpop.permute.xlu0 %333
    %335 = vrot.lane.b32.xlu0 %v288, 96
    %v336 = vpop.permute.xlu0 %335
    %337 = vrot.lane.b32.xlu0 %v290, 96
    %v338 = vpop.permute.xlu0 %337
    %339 = vrot.lane.b32.xlu0 %v292, 96
    %v340 = vpop.permute.xlu0 %339
    %341 = vrot.lane.b32.xlu0 %v294, 96
    %v342 = vpop.permute.xlu0 %341
    %vm343 = vcmask 64512
    %v344 = vsel %vm343, %v249, 0
    %v346 = vsel %vm343, %v254, 0
    %v348 = vsel %vm343, %v259, 0
    %v350 = vsel %vm343, %v264, 0
    %v352 = vsel %vm343, %v272, 0
    %v354 = vsel %vm343, %v274, 0
    %v356 = vsel %vm343, %v276, 0
    %v358 = vsel %vm343, %v278, 0
    %v360 = vsel %vm343, %v280, 0
    %v362 = vsel %vm343, %v282, 0
    %v364 = vsel %vm343, %v284, 0
    %v366 = vsel %vm343, %v286, 0
    %v368 = vsel %vm343, %v288, 0
    %v370 = vsel %vm343, %v290, 0
    %v372 = vsel %vm343, %v292, 0
    %v374 = vsel %vm343, %v294, 0
    %v376 = vsel %vm343, %v312, 0
    %v378 = vsel %vm343, %v314, 0
    %v380 = vsel %vm343, %v316, 0
    %v382 = vsel %vm343, %v318, 0
    %v384 = vsel %vm343, %v320, 0
    %v386 = vsel %vm343, %v322, 0
    %v388 = vsel %vm343, %v324, 0
    %v390 = vsel %vm343, %v326, 0
    %v392 = vsel %vm343, %v328, 0
    %v394 = vsel %vm343, %v330, 0
    %v396 = vsel %vm343, %v332, 0
    %v398 = vsel %vm343, %v334, 0
    %v400 = vsel %vm343, %v336, 0
    %v402 = vsel %vm343, %v338, 0
    %v404 = vsel %vm343, %v340, 0
    %v406 = vsel %vm343, %v342, 0
    %408 = vmatprep.subr.mxu0 0.0
    %409 = vmatpush1.xpose.msra.mxu0 %v376
    %410 = vmatprep.subr.mxu0 0.0
    %411 = vmatpush1.xpose.msra.mxu0 %v378
    %412 = vmatprep.subr.mxu0 0.0
    %413 = vmatpush1.xpose.msra.mxu0 %v380
    %414 = vmatprep.subr.mxu0 0.0
    %415 = vmatpush1.xpose.msra.mxu0 %v382
    %416 = vmatprep.subr.mxu0 0.0
    %417 = vmatpush1.xpose.msra.mxu0 %v384
    %418 = vmatprep.subr.mxu0 0.0
    %419 = vmatpush1.xpose.msra.mxu0 %v386
    %420 = vmatprep.subr.mxu0 0.0
    %421 = vmatpush1.xpose.msra.mxu0 %v388
    %422 = vmatprep.subr.mxu0 0.0
    %423 = vmatpush1.xpose.msra.mxu0 %v390
    %424 = vmatprep.subr.mxu0 0.0
    %425 = vmatpush1.xpose.msra.mxu0 %v392
    %426 = vmatprep.subr.mxu0 0.0
    %427 = vmatpush1.xpose.msra.mxu0 %v394
    %428 = vmatprep.subr.mxu0 0.0
    %429 = vmatpush1.xpose.msra.mxu0 %v396
    %430 = vmatprep.subr.mxu0 0.0
    %431 = vmatpush1.xpose.msra.mxu0 %v398
    %432 = vmatprep.subr.mxu0 0.0
    %433 = vmatpush1.xpose.msra.mxu0 %v400
    %434 = vmatprep.subr.mxu0 0.0
    %435 = vmatpush1.xpose.msra.mxu0 %v402
    %436 = vmatprep.subr.mxu0 0.0
    %437 = vmatpush1.xpose.msra.mxu0 %v404
    %438 = vmatprep.subr.mxu0 0.0
    %439 = vmatpush1.xpose.msra.mxu0 %v406
    %440 = vmatprep.subr.mxu0 0.0
    %441 = vmatpush1.xpose.msra.mxu0 0.0
    %442 = vmatprep.subr.mxu0 0.0
    %443 = vmatpush1.xpose.msra.mxu0 0.0
    %444 = vmatprep.subr.mxu0 0.0
    %445 = vmatpush1.xpose.msra.mxu0 0.0
    %446 = vmatprep.subr.mxu0 0.0
    %447 = vmatpush1.xpose.msra.mxu0 0.0
    %448 = vmatprep.subr.mxu0 0.0
    %449 = vmatpush1.xpose.msra.mxu0 0.0
    %450 = vmatprep.subr.mxu0 0.0
    %451 = vmatpush1.xpose.msra.mxu0 0.0
    %452 = vmatprep.subr.mxu0 0.0
    %453 = vmatpush1.xpose.msra.mxu0 0.0
    %454 = vmatprep.subr.mxu0 0.0
    %455 = vmatpush1.xpose.msra.mxu0 0.0
    %456 = vmatprep.subr.mxu0 0.0
    %457 = vmatpush1.xpose.msra.mxu0 0.0
    %458 = vmatprep.subr.mxu0 0.0
    %459 = vmatpush1.xpose.msra.mxu0 0.0
    %460 = vmatprep.subr.mxu0 0.0
    %461 = vmatpush1.xpose.msra.mxu0 0.0
    %462 = vmatprep.subr.mxu0 0.0
    %463 = vmatpush1.xpose.msra.mxu0 0.0
    %464 = vmatprep.subr.mxu0 0.0
    %465 = vmatpush1.xpose.msra.mxu0 0.0
    %466 = vmatprep.subr.mxu0 0.0
    %467 = vmatpush1.xpose.msra.mxu0 0.0
    %468 = vmatprep.subr.mxu0 0.0
    %469 = vmatpush1.xpose.msra.mxu0 0.0
    %470 = vmatprep.subr.mxu0 0.0
    %471 = vmatpush1.xpose.msra.mxu0 0.0
    %472 = vmatprep.mubr.f32.mxu0 0.0
    %473 = vmatmul.mubr.f32.gmra.mrb[0].mxu0 %v344
    %v474 = vpop.f32.mrb[0].mxu0
    %v475 = vadd.f32 %v295, %v474
    %v476 = vpop.f32.mrb[0].mxu0
    %477 = vmatprep.mubr.f32.mxu0 0.0
    %478 = vmatmul.mubr.f32.gmra.mrb[0].mxu0 %v346
    %v479 = vpop.f32.mrb[0].mxu0
    %v480 = vadd.f32 %v296, %v479
    %v481 = vpop.f32.mrb[0].mxu0
    %482 = vmatprep.mubr.f32.mxu0 0.0
    %483 = vmatmul.mubr.f32.gmra.mrb[0].mxu0 %v348
    %v484 = vpop.f32.mrb[0].mxu0
    %v485 = vadd.f32 %v297, %v484
    %v486 = vpop.f32.mrb[0].mxu0
    %487 = vmatprep.mubr.f32.mxu0 0.0
    %488 = vmatmul.mubr.f32.gmra.mrb[0].mxu0 %v350
    %v489 = vpop.f32.mrb[0].mxu0
    %v490 = vadd.f32 %v298, %v489
    %v491 = vpop.f32.mrb[0].mxu0
    %492 = vmatprep.mubr.f32.mxu0 0.0
    %493 = vmatmul.mubr.f32.gmra.mrb[0].mxu0 %v352
    %v494 = vpop.f32.mrb[0].mxu0
    %v495 = vadd.f32 %v299, %v494
    %v496 = vpop.f32.mrb[0].mxu0
    %497 = vmatprep.mubr.f32.mxu0 0.0
    %498 = vmatmul.mubr.f32.gmra.mrb[0].mxu0 %v354
    %v499 = vpop.f32.mrb[0].mxu0
    %v500 = vadd.f32 %v300, %v499
    %v501 = vpop.f32.mrb[0].mxu0
    %502 = vmatprep.mubr.f32.mxu0 0.0
    %503 = vmatmul.mubr.f32.gmra.mrb[0].mxu0 %v356
    %v504 = vpop.f32.mrb[0].mxu0
    %v505 = vadd.f32 %v301, %v504
    %v506 = vpop.f32.mrb[0].mxu0
    %507 = vmatprep.mubr.f32.mxu0 0.0
    %508 = vmatmul.mubr.f32.gmra.mrb[0].mxu0 %v358
    %v509 = vpop.f32.mrb[0].mxu0
    %v510 = vadd.f32 %v302, %v509
    %v511 = vpop.f32.mrb[0].mxu0
    %512 = vmatprep.mubr.f32.mxu0 0.0
    %513 = vmatmul.mubr.f32.gmra.mrb[0].mxu0 %v360
    %v514 = vpop.f32.mrb[0].mxu0
    %v515 = vadd.f32 %v303, %v514
    %v516 = vpop.f32.mrb[0].mxu0
    %517 = vmatprep.mubr.f32.mxu0 0.0
    %518 = vmatmul.mubr.f32.gmra.mrb[0].mxu0 %v362
    %v519 = vpop.f32.mrb[0].mxu0
    %v520 = vadd.f32 %v304, %v519
    %v521 = vpop.f32.mrb[0].mxu0
    %522 = vmatprep.mubr.f32.mxu0 0.0
    %523 = vmatmul.mubr.f32.gmra.mrb[0].mxu0 %v364
    %v524 = vpop.f32.mrb[0].mxu0
    %v525 = vadd.f32 %v305, %v524
    %v526 = vpop.f32.mrb[0].mxu0
    %527 = vmatprep.mubr.f32.mxu0 0.0
    %528 = vmatmul.mubr.f32.gmra.mrb[0].mxu0 %v366
    %v529 = vpop.f32.mrb[0].mxu0
    %v530 = vadd.f32 %v306, %v529
    %v531 = vpop.f32.mrb[0].mxu0
    %532 = vmatprep.mubr.f32.mxu0 0.0
    %533 = vmatmul.mubr.f32.gmra.mrb[0].mxu0 %v368
    %v534 = vpop.f32.mrb[0].mxu0
    %v535 = vadd.f32 %v307, %v534
    %v536 = vpop.f32.mrb[0].mxu0
    %537 = vmatprep.mubr.f32.mxu0 0.0
    %538 = vmatmul.mubr.f32.gmra.mrb[0].mxu0 %v370
    %v539 = vpop.f32.mrb[0].mxu0
    %v540 = vadd.f32 %v308, %v539
    %v541 = vpop.f32.mrb[0].mxu0
    %542 = vmatprep.mubr.f32.mxu0 0.0
    %543 = vmatmul.mubr.f32.gmra.mrb[0].mxu0 %v372
    %v544 = vpop.f32.mrb[0].mxu0
    %v545 = vadd.f32 %v309, %v544
    %v546 = vpop.f32.mrb[0].mxu0
    %547 = vmatprep.mubr.f32.mxu0 0.0
    %548 = vmatmul.mubr.f32.gmra.mrb[0].mxu0 %v374
    %v549 = vpop.f32.mrb[0].mxu0
    %v550 = vadd.f32 %v310, %v549
    %v551 = vpop.f32.mrb[0].mxu0
    %552 = vdwg.mxu0
    %553 = vmax.xlane.f32.xlu0 %v475
    %v554 = vpop.xlane.xlu0 %553
    %555 = vmax.xlane.f32.xlu0 %v480
    %v556 = vpop.xlane.xlu0 %555
    %557 = vmax.xlane.f32.xlu0 %v485
    %v558 = vpop.xlane.xlu0 %557
    %559 = vmax.xlane.f32.xlu0 %v490
    %v560 = vpop.xlane.xlu0 %559
    %561 = vmax.xlane.f32.xlu0 %v495
    %v562 = vpop.xlane.xlu0 %561
    %563 = vmax.xlane.f32.xlu0 %v500
    %v564 = vpop.xlane.xlu0 %563
    %565 = vmax.xlane.f32.xlu0 %v505
    %v566 = vpop.xlane.xlu0 %565
    %567 = vmax.xlane.f32.xlu0 %v510
    %v568 = vpop.xlane.xlu0 %567
    %569 = vmax.xlane.f32.xlu0 %v515
    %v570 = vpop.xlane.xlu0 %569
    %571 = vmax.xlane.f32.xlu0 %v520
    %v572 = vpop.xlane.xlu0 %571
    %573 = vmax.xlane.f32.xlu0 %v525
    %v574 = vpop.xlane.xlu0 %573
    %575 = vmax.xlane.f32.xlu0 %v530
    %v576 = vpop.xlane.xlu0 %575
    %577 = vmax.xlane.f32.xlu0 %v535
    %v578 = vpop.xlane.xlu0 %577
    %579 = vmax.xlane.f32.xlu0 %v540
    %v580 = vpop.xlane.xlu0 %579
    %581 = vmax.xlane.f32.xlu0 %v545
    %v582 = vpop.xlane.xlu0 %581
    %583 = vmax.xlane.f32.xlu0 %v550
    %v584 = vpop.xlane.xlu0 %583
    %v585 = vsub.f32 %v475, %v554
    %v586 = vsub.f32 %v480, %v556
    %v587 = vsub.f32 %v485, %v558
    %v588 = vsub.f32 %v490, %v560
    %v589 = vsub.f32 %v495, %v562
    %v590 = vsub.f32 %v500, %v564
    %v591 = vsub.f32 %v505, %v566
    %v592 = vsub.f32 %v510, %v568
    %v593 = vsub.f32 %v515, %v570
    %v594 = vsub.f32 %v520, %v572
    %v595 = vsub.f32 %v525, %v574
    %v596 = vsub.f32 %v530, %v576
    %v597 = vsub.f32 %v535, %v578
    %v598 = vsub.f32 %v540, %v580
    %v599 = vsub.f32 %v545, %v582
    %v600 = vsub.f32 %v550, %v584
    %v601 = vmul.f32 %v585, 1.442695
    %v602 = vpow.pop %v601
    %v603 = vmul.f32 %v586, 1.442695
    %v604 = vpow.pop %v603
    %v605 = vmul.f32 %v587, 1.442695
    %v606 = vpow.pop %v605
    %v607 = vmul.f32 %v588, 1.442695
    %v608 = vpow.pop %v607
    %v609 = vmul.f32 %v589, 1.442695
    %v610 = vpow.pop %v609
    %v611 = vmul.f32 %v590, 1.442695
    %v612 = vpow.pop %v611
    %v613 = vmul.f32 %v591, 1.442695
    %v614 = vpow.pop %v613
    %v615 = vmul.f32 %v592, 1.442695
    %v616 = vpow.pop %v615
    %v617 = vmul.f32 %v593, 1.442695
    %v618 = vpow.pop %v617
    %v619 = vmul.f32 %v594, 1.442695
    %v620 = vpow.pop %v619
    %v621 = vmul.f32 %v595, 1.442695
    %v622 = vpow.pop %v621
    %v623 = vmul.f32 %v596, 1.442695
    %v624 = vpow.pop %v623
    %v625 = vmul.f32 %v597, 1.442695
    %v626 = vpow.pop %v625
    %v627 = vmul.f32 %v598, 1.442695
    %v628 = vpow.pop %v627
    %v629 = vmul.f32 %v599, 1.442695
    %v630 = vpow.pop %v629
    %v631 = vmul.f32 %v600, 1.442695
    %v632 = vpow.pop %v631
    %633 = vadd.xlane.f32.xlu0 %v602
    %v634 = vpop.xlane.xlu0 %633
    %635 = vadd.xlane.f32.xlu0 %v604
    %v636 = vpop.xlane.xlu0 %635
    %637 = vadd.xlane.f32.xlu0 %v606
    %v638 = vpop.xlane.xlu0 %637
    %639 = vadd.xlane.f32.xlu0 %v608
    %v640 = vpop.xlane.xlu0 %639
    %641 = vadd.xlane.f32.xlu0 %v610
    %v642 = vpop.xlane.xlu0 %641
    %643 = vadd.xlane.f32.xlu0 %v612
    %v644 = vpop.xlane.xlu0 %643
    %645 = vadd.xlane.f32.xlu0 %v614
    %v646 = vpop.xlane.xlu0 %645
    %647 = vadd.xlane.f32.xlu0 %v616
    %v648 = vpop.xlane.xlu0 %647
    %649 = vadd.xlane.f32.xlu0 %v618
    %v650 = vpop.xlane.xlu0 %649
    %651 = vadd.xlane.f32.xlu0 %v620
    %v652 = vpop.xlane.xlu0 %651
    %653 = vadd.xlane.f32.xlu0 %v622
    %v654 = vpop.xlane.xlu0 %653
    %655 = vadd.xlane.f32.xlu0 %v624
    %v656 = vpop.xlane.xlu0 %655
    %657 = vadd.xlane.f32.xlu0 %v626
    %v658 = vpop.xlane.xlu0 %657
    %659 = vadd.xlane.f32.xlu0 %v628
    %v660 = vpop.xlane.xlu0 %659
    %661 = vadd.xlane.f32.xlu0 %v630
    %v662 = vpop.xlane.xlu0 %661
    %663 = vadd.xlane.f32.xlu0 %v632
    %v664 = vpop.xlane.xlu0 %663
    %v665 = vrcp.pop %v634
    %v666 = vrcp.pop %v636
    %v667 = vrcp.pop %v638
    %v668 = vrcp.pop %v640
    %v669 = vrcp.pop %v642
    %v670 = vrcp.pop %v644
    %v671 = vrcp.pop %v646
    %v672 = vrcp.pop %v648
    %v673 = vrcp.pop %v650
    %v674 = vrcp.pop %v652
    %v675 = vrcp.pop %v654
    %v676 = vrcp.pop %v656
    %v677 = vrcp.pop %v658
    %v678 = vrcp.pop %v660
    %v679 = vrcp.pop %v662
    %v680 = vrcp.pop %v664
    %v681 = vmul.f32 %v602, %v665
    %v682 = vmul.f32 %v604, %v666
    %v683 = vmul.f32 %v606, %v667
    %v684 = vmul.f32 %v608, %v668
    %v685 = vmul.f32 %v610, %v669
    %v686 = vmul.f32 %v612, %v670
    %v687 = vmul.f32 %v614, %v671
    %v688 = vmul.f32 %v616, %v672
    %v689 = vmul.f32 %v618, %v673
    %v690 = vmul.f32 %v620, %v674
    %v691 = vmul.f32 %v622, %v675
    %v692 = vmul.f32 %v624, %v676
    %v693 = vmul.f32 %v626, %v677
    %v694 = vmul.f32 %v628, %v678
    %v695 = vmul.f32 %v630, %v679
    %v696 = vmul.f32 %v632, %v680
    %697 = vrot.lane.b32.xlu0 %v249, 64
    %v698 = vpop.permute.xlu0 %697
    %699 = vrot.lane.b32.xlu0 %v254, 64
    %v700 = vpop.permute.xlu0 %699
    %701 = vrot.lane.b32.xlu0 %v259, 64
    %v702 = vpop.permute.xlu0 %701
    %703 = vrot.lane.b32.xlu0 %v264, 64
    %v704 = vpop.permute.xlu0 %703
    %705 = vrot.lane.b32.xlu0 %v272, 64
    %v706 = vpop.permute.xlu0 %705
    %707 = vrot.lane.b32.xlu0 %v274, 64
    %v708 = vpop.permute.xlu0 %707
    %709 = vrot.lane.b32.xlu0 %v276, 64
    %v710 = vpop.permute.xlu0 %709
    %711 = vrot.lane.b32.xlu0 %v278, 64
    %v712 = vpop.permute.xlu0 %711
    %713 = vrot.lane.b32.xlu0 %v280, 64
    %v714 = vpop.permute.xlu0 %713
    %715 = vrot.lane.b32.xlu0 %v282, 64
    %v716 = vpop.permute.xlu0 %715
    %717 = vrot.lane.b32.xlu0 %v284, 64
    %v718 = vpop.permute.xlu0 %717
    %719 = vrot.lane.b32.xlu0 %v286, 64
    %v720 = vpop.permute.xlu0 %719
    %721 = vrot.lane.b32.xlu0 %v288, 64
    %v722 = vpop.permute.xlu0 %721
    %723 = vrot.lane.b32.xlu0 %v290, 64
    %v724 = vpop.permute.xlu0 %723
    %725 = vrot.lane.b32.xlu0 %v292, 64
    %v726 = vpop.permute.xlu0 %725
    %727 = vrot.lane.b32.xlu0 %v294, 64
    %v728 = vpop.permute.xlu0 %727
    %745 = vmatprep.subr.mxu0 0.0
    %746 = vmatpush1.msra.mxu0 %v698
    %747 = vmatprep.subr.mxu0 0.0
    %748 = vmatpush1.msra.mxu0 %v700
    %749 = vmatprep.subr.mxu0 0.0
    %750 = vmatpush1.msra.mxu0 %v702
    %751 = vmatprep.subr.mxu0 0.0
    %752 = vmatpush1.msra.mxu0 %v704
    %753 = vmatprep.subr.mxu0 0.0
    %754 = vmatpush1.msra.mxu0 %v706
    %755 = vmatprep.subr.mxu0 0.0
    %756 = vmatpush1.msra.mxu0 %v708
    %757 = vmatprep.subr.mxu0 0.0
    %758 = vmatpush1.msra.mxu0 %v710
    %759 = vmatprep.subr.mxu0 0.0
    %760 = vmatpush1.msra.mxu0 %v712
    %761 = vmatprep.subr.mxu0 0.0
    %762 = vmatpush1.msra.mxu0 %v714
    %763 = vmatprep.subr.mxu0 0.0
    %764 = vmatpush1.msra.mxu0 %v716
    %765 = vmatprep.subr.mxu0 0.0
    %766 = vmatpush1.msra.mxu0 %v718
    %767 = vmatprep.subr.mxu0 0.0
    %768 = vmatpush1.msra.mxu0 %v720
    %769 = vmatprep.subr.mxu0 0.0
    %770 = vmatpush1.msra.mxu0 %v722
    %771 = vmatprep.subr.mxu0 0.0
    %772 = vmatpush1.msra.mxu0 %v724
    %773 = vmatprep.subr.mxu0 0.0
    %774 = vmatpush1.msra.mxu0 %v726
    %775 = vmatprep.subr.mxu0 0.0
    %776 = vmatpush1.msra.mxu0 %v728
    %777 = vmatprep.subr.mxu0 0.0
    %778 = vmatpush1.msra.mxu0 0.0
    %779 = vmatprep.subr.mxu0 0.0
    %780 = vmatpush1.msra.mxu0 0.0
    %781 = vmatprep.subr.mxu0 0.0
    %782 = vmatpush1.msra.mxu0 0.0
    %783 = vmatprep.subr.mxu0 0.0
    %784 = vmatpush1.msra.mxu0 0.0
    %785 = vmatprep.subr.mxu0 0.0
    %786 = vmatpush1.msra.mxu0 0.0
    %787 = vmatprep.subr.mxu0 0.0
    %788 = vmatpush1.msra.mxu0 0.0
    %789 = vmatprep.subr.mxu0 0.0
    %790 = vmatpush1.msra.mxu0 0.0
    %791 = vmatprep.subr.mxu0 0.0
    %792 = vmatpush1.msra.mxu0 0.0
    %793 = vmatprep.subr.mxu0 0.0
    %794 = vmatpush1.msra.mxu0 0.0
    %795 = vmatprep.subr.mxu0 0.0
    %796 = vmatpush1.msra.mxu0 0.0
    %797 = vmatprep.subr.mxu0 0.0
    %798 = vmatpush1.msra.mxu0 0.0
    %799 = vmatprep.subr.mxu0 0.0
    %800 = vmatpush1.msra.mxu0 0.0
    %801 = vmatprep.subr.mxu0 0.0
    %802 = vmatpush1.msra.mxu0 0.0
    %803 = vmatprep.subr.mxu0 0.0
    %804 = vmatpush1.msra.mxu0 0.0
    %805 = vmatprep.subr.mxu0 0.0
    %806 = vmatpush1.msra.mxu0 0.0
    %807 = vmatprep.subr.mxu0 0.0
    %808 = vmatpush1.msra.mxu0 0.0
    %809 = vmatprep.mubr.f32.mxu0 0.0
    %810 = vmatmul.mubr.f32.gmra.mrb[0].mxu0 %v681
    %v811 = vpop.f32.mrb[0].mxu0
    %v812 = vadd.f32 0.0, %v811
    %v813 = vpop.f32.mrb[0].mxu0
    %814 = vmatprep.mubr.f32.mxu0 0.0
    %815 = vmatmul.mubr.f32.gmra.mrb[0].mxu0 %v682
    %v816 = vpop.f32.mrb[0].mxu0
    %v817 = vadd.f32 0.0, %v816
    %v818 = vpop.f32.mrb[0].mxu0
    %819 = vmatprep.mubr.f32.mxu0 0.0
    %820 = vmatmul.mubr.f32.gmra.mrb[0].mxu0 %v683
    %v821 = vpop.f32.mrb[0].mxu0
    %v822 = vadd.f32 0.0, %v821
    %v823 = vpop.f32.mrb[0].mxu0
    %824 = vmatprep.mubr.f32.mxu0 0.0
    %825 = vmatmul.mubr.f32.gmra.mrb[0].mxu0 %v684
    %v826 = vpop.f32.mrb[0].mxu0
    %v827 = vadd.f32 0.0, %v826
    %v828 = vpop.f32.mrb[0].mxu0
    %829 = vmatprep.mubr.f32.mxu0 0.0
    %830 = vmatmul.mubr.f32.gmra.mrb[0].mxu0 %v685
    %v831 = vpop.f32.mrb[0].mxu0
    %v832 = vadd.f32 0.0, %v831
    %v833 = vpop.f32.mrb[0].mxu0
    %834 = vmatprep.mubr.f32.mxu0 0.0
    %835 = vmatmul.mubr.f32.gmra.mrb[0].mxu0 %v686
    %v836 = vpop.f32.mrb[0].mxu0
    %v837 = vadd.f32 0.0, %v836
    %v838 = vpop.f32.mrb[0].mxu0
    %839 = vmatprep.mubr.f32.mxu0 0.0
    %840 = vmatmul.mubr.f32.gmra.mrb[0].mxu0 %v687
    %v841 = vpop.f32.mrb[0].mxu0
    %v842 = vadd.f32 0.0, %v841
    %v843 = vpop.f32.mrb[0].mxu0
    %844 = vmatprep.mubr.f32.mxu0 0.0
    %845 = vmatmul.mubr.f32.gmra.mrb[0].mxu0 %v688
    %v846 = vpop.f32.mrb[0].mxu0
    %v847 = vadd.f32 0.0, %v846
    %v848 = vpop.f32.mrb[0].mxu0
    %849 = vmatprep.mubr.f32.mxu0 0.0
    %850 = vmatmul.mubr.f32.gmra.mrb[0].mxu0 %v689
    %v851 = vpop.f32.mrb[0].mxu0
    %v852 = vadd.f32 0.0, %v851
    %v853 = vpop.f32.mrb[0].mxu0
    %854 = vmatprep.mubr.f32.mxu0 0.0
    %855 = vmatmul.mubr.f32.gmra.mrb[0].mxu0 %v690
    %v856 = vpop.f32.mrb[0].mxu0
    %v857 = vadd.f32 0.0, %v856
    %v858 = vpop.f32.mrb[0].mxu0
    %859 = vmatprep.mubr.f32.mxu0 0.0
    %860 = vmatmul.mubr.f32.gmra.mrb[0].mxu0 %v691
    %v861 = vpop.f32.mrb[0].mxu0
    %v862 = vadd.f32 0.0, %v861
    %v863 = vpop.f32.mrb[0].mxu0
    %864 = vmatprep.mubr.f32.mxu0 0.0
    %865 = vmatmul.mubr.f32.gmra.mrb[0].mxu0 %v692
    %v866 = vpop.f32.mrb[0].mxu0
    %v867 = vadd.f32 0.0, %v866
    %v868 = vpop.f32.mrb[0].mxu0
    %869 = vmatprep.mubr.f32.mxu0 0.0
    %870 = vmatmul.mubr.f32.gmra.mrb[0].mxu0 %v693
    %v871 = vpop.f32.mrb[0].mxu0
    %v872 = vadd.f32 0.0, %v871
    %v873 = vpop.f32.mrb[0].mxu0
    %874 = vmatprep.mubr.f32.mxu0 0.0
    %875 = vmatmul.mubr.f32.gmra.mrb[0].mxu0 %v694
    %v876 = vpop.f32.mrb[0].mxu0
    %v877 = vadd.f32 0.0, %v876
    %v878 = vpop.f32.mrb[0].mxu0
    %879 = vmatprep.mubr.f32.mxu0 0.0
    %880 = vmatmul.mubr.f32.gmra.mrb[0].mxu0 %v695
    %v881 = vpop.f32.mrb[0].mxu0
    %v882 = vadd.f32 0.0, %v881
    %v883 = vpop.f32.mrb[0].mxu0
    %884 = vmatprep.mubr.f32.mxu0 0.0
    %885 = vmatmul.mubr.f32.gmra.mrb[0].mxu0 %v696
    %v886 = vpop.f32.mrb[0].mxu0
    %v887 = vadd.f32 0.0, %v886
    %v888 = vpop.f32.mrb[0].mxu0
    %889 = vdwg.mxu0
    %894 = vrot.lane.b32.xlu0 %v832, 8
    %v895 = vpop.permute.xlu0 %894
    %896 = vrot.lane.b32.xlu0 %v837, 8
    %v897 = vpop.permute.xlu0 %896
    %898 = vrot.lane.b32.xlu0 %v842, 8
    %v899 = vpop.permute.xlu0 %898
    %900 = vrot.lane.b32.xlu0 %v847, 8
    %v901 = vpop.permute.xlu0 %900
    %910 = vrot.lane.b32.xlu0 %v852, 16
    %v911 = vpop.permute.xlu0 %910
    %912 = vrot.lane.b32.xlu0 %v857, 16
    %v913 = vpop.permute.xlu0 %912
    %914 = vrot.lane.b32.xlu0 %v862, 16
    %v915 = vpop.permute.xlu0 %914
    %916 = vrot.lane.b32.xlu0 %v867, 16
    %v917 = vpop.permute.xlu0 %916
    %926 = vrot.lane.b32.xlu0 %v872, 24
    %v927 = vpop.permute.xlu0 %926
    %928 = vrot.lane.b32.xlu0 %v877, 24
    %v929 = vpop.permute.xlu0 %928
    %930 = vrot.lane.b32.xlu0 %v882, 24
    %v931 = vpop.permute.xlu0 %930
    %932 = vrot.lane.b32.xlu0 %v887, 24
    %v933 = vpop.permute.xlu0 %932
    %v938 = vsel %vm343, %v812, %v895
    %v939 = vsel %vm343, %v817, %v897
    %v940 = vsel %vm343, %v822, %v899
    %v941 = vsel %vm343, %v827, %v901
    %vm942 = vcmask 130048
    %v943 = vsel %vm942, %v938, %v911
    %v944 = vsel %vm942, %v939, %v913
    %v945 = vsel %vm942, %v940, %v915
    %v946 = vsel %vm942, %v941, %v917
    %vm947 = vcmask 195584
    %v948 = vsel %vm947, %v943, %v927
    %v949 = vsel %vm947, %v944, %v929
    %v950 = vsel %vm947, %v945, %v931
    %v951 = vsel %vm947, %v946, %v933
    %v952 = vld [vmem:[#allocation5] sm:$0xff]
    %v953 = vld [vmem:[#allocation5 + $0x8] sm:$0xff]
    %v954 = vld [vmem:[#allocation5 + $0x10] sm:$0xff]
    %v955 = vld [vmem:[#allocation5 + $0x18] sm:$0xff]
    %v956 = vld [vmem:[%s6] sm:$0x1]
    %v958 = vlaneseq
    %v959 = vshrl.u32 %v958, 7
    %v960 = vsub.s32 0, %v959
    %v961 = vrot.slane %v956, %v960
    %v964 = vsel %vm92, %v948, 0
    %v967 = vsel %vm92, %v949, 0
    %v970 = vsel %vm92, %v950, 0
    %v973 = vsel %vm92, %v951, 0
    %975 = vmatprep.subr.mxu0 0.0
    %976 = vmatpush1.msra.mxu0 %v952
    %977 = vmatprep.subr.mxu0 0.0
    %978 = vmatpush1.msra.mxu0 %v953
    %979 = vmatprep.subr.mxu0 0.0
    %980 = vmatpush1.msra.mxu0 %v954
    %981 = vmatprep.subr.mxu0 0.0
    %982 = vmatpush1.msra.mxu0 %v955
    %983 = vmatprep.subr.mxu0 0.0
    %984 = vmatpush1.msra.mxu0 0.0
    %985 = vmatprep.subr.mxu0 0.0
    %986 = vmatpush1.msra.mxu0 0.0
    %987 = vmatprep.subr.mxu0 0.0
    %988 = vmatpush1.msra.mxu0 0.0
    %989 = vmatprep.subr.mxu0 0.0
    %990 = vmatpush1.msra.mxu0 0.0
    %991 = vmatprep.subr.mxu0 0.0
    %992 = vmatpush1.msra.mxu0 0.0
    %993 = vmatprep.subr.mxu0 0.0
    %994 = vmatpush1.msra.mxu0 0.0
    %995 = vmatprep.subr.mxu0 0.0
    %996 = vmatpush1.msra.mxu0 0.0
    %997 = vmatprep.subr.mxu0 0.0
    %998 = vmatpush1.msra.mxu0 0.0
    %999 = vmatprep.subr.mxu0 0.0
    %1000 = vmatpush1.msra.mxu0 0.0
    %1001 = vmatprep.subr.mxu0 0.0
    %1002 = vmatpush1.msra.mxu0 0.0
    %1003 = vmatprep.subr.mxu0 0.0
    %1004 = vmatpush1.msra.mxu0 0.0
    %1005 = vmatprep.subr.mxu0 0.0
    %1006 = vmatpush1.msra.mxu0 0.0
    %1007 = vmatprep.subr.mxu0 0.0
    %1008 = vmatpush1.msra.mxu0 0.0
    %1009 = vmatprep.subr.mxu0 0.0
    %1010 = vmatpush1.msra.mxu0 0.0
    %1011 = vmatprep.subr.mxu0 0.0
    %1012 = vmatpush1.msra.mxu0 0.0
    %1013 = vmatprep.subr.mxu0 0.0
    %1014 = vmatpush1.msra.mxu0 0.0
    %1015 = vmatprep.subr.mxu0 0.0
    %1016 = vmatpush1.msra.mxu0 0.0
    %1017 = vmatprep.subr.mxu0 0.0
    %1018 = vmatpush1.msra.mxu0 0.0
    %1019 = vmatprep.subr.mxu0 0.0
    %1020 = vmatpush1.msra.mxu0 0.0
    %1021 = vmatprep.subr.mxu0 0.0
    %1022 = vmatpush1.msra.mxu0 0.0
    %1023 = vmatprep.subr.mxu0 0.0
    %1024 = vmatpush1.msra.mxu0 0.0
    %1025 = vmatprep.subr.mxu0 0.0
    %1026 = vmatpush1.msra.mxu0 0.0
    %1027 = vmatprep.subr.mxu0 0.0
    %1028 = vmatpush1.msra.mxu0 0.0
    %1029 = vmatprep.subr.mxu0 0.0
    %1030 = vmatpush1.msra.mxu0 0.0
    %1031 = vmatprep.subr.mxu0 0.0
    %1032 = vmatpush1.msra.mxu0 0.0
    %1033 = vmatprep.subr.mxu0 0.0
    %1034 = vmatpush1.msra.mxu0 0.0
    %1035 = vmatprep.subr.mxu0 0.0
    %1036 = vmatpush1.msra.mxu0 0.0
    %1037 = vmatprep.subr.mxu0 0.0
    %1038 = vmatpush1.msra.mxu0 0.0
    %1039 = vmatprep.mubr.f32.mxu0 0.0
    %1040 = vmatmul.mubr.f32.gmra.mrb[0].mxu0 %v964
    %v1041 = vpop.f32.mrb[0].mxu0
    %v1042 = vadd.f32 %v961, %v1041
    %v1043 = vpop.f32.mrb[0].mxu0
    %1044 = vmatprep.mubr.f32.mxu0 0.0
    %1045 = vmatmul.mubr.f32.gmra.mrb[0].mxu0 %v967
    %v1046 = vpop.f32.mrb[0].mxu0
    %v1047 = vadd.f32 %v961, %v1046
    %v1048 = vpop.f32.mrb[0].mxu0
    %1049 = vmatprep.mubr.f32.mxu0 0.0
    %1050 = vmatmul.mubr.f32.gmra.mrb[0].mxu0 %v970
    %v1051 = vpop.f32.mrb[0].mxu0
    %v1052 = vadd.f32 %v961, %v1051
    %v1053 = vpop.f32.mrb[0].mxu0
    %1054 = vmatprep.mubr.f32.mxu0 0.0
    %1055 = vmatmul.mubr.f32.gmra.mrb[0].mxu0 %v973
    %v1056 = vpop.f32.mrb[0].mxu0
    %v1057 = vadd.f32 %v961, %v1056
    %v1058 = vpop.f32.mrb[0].mxu0
    %1059 = vdwg.mxu0
    %v1060 = vadd.f32 %v86, %v1042
    %v1061 = vadd.f32 %v87, %v1047
    %v1062 = vadd.f32 %v88, %v1052
    %v1063 = vadd.f32 %v89, %v1057
    %v1064 = vld [vmem:[%s7] sm:$0x1]
    %v1065 = vld [vmem:[%s8] sm:$0x1]
    %v1066 = vsel %vm92, %v1060, 0.0
    %1067 = vadd.xlane.f32.xlu0 %v1066
    %v1068 = vpop.xlane.xlu0 %1067
    %v1069 = vsel %vm92, %v1061, 0.0
    %1070 = vadd.xlane.f32.xlu0 %v1069
    %v1071 = vpop.xlane.xlu0 %1070
    %v1072 = vsel %vm92, %v1062, 0.0
    %1073 = vadd.xlane.f32.xlu0 %v1072
    %v1074 = vpop.xlane.xlu0 %1073
    %v1075 = vsel %vm92, %v1063, 0.0
    %1076 = vadd.xlane.f32.xlu0 %v1075
    %v1077 = vpop.xlane.xlu0 %1076
    %v1078 = vmul.f32 %v1068, %v105
    %v1079 = vmul.f32 %v1071, %v105
    %v1080 = vmul.f32 %v1074, %v105
    %v1081 = vmul.f32 %v1077, %v105
    %v1082 = vsub.f32 %v1060, %v1078
    %v1083 = vsub.f32 %v1061, %v1079
    %v1084 = vsub.f32 %v1062, %v1080
    %v1085 = vsub.f32 %v1063, %v1081
    %v1086 = vmul.f32 %v1082, %v1082
    %v1087 = vmul.f32 %v1083, %v1083
    %v1088 = vmul.f32 %v1084, %v1084
    %v1089 = vmul.f32 %v1085, %v1085
    %v1090 = vsel %vm92, %v1086, 0.0
    %1091 = vadd.xlane.f32.xlu0 %v1090
    %v1092 = vpop.xlane.xlu0 %1091
    %v1093 = vsel %vm92, %v1087, 0.0
    %1094 = vadd.xlane.f32.xlu0 %v1093
    %v1095 = vpop.xlane.xlu0 %1094
    %v1096 = vsel %vm92, %v1088, 0.0
    %1097 = vadd.xlane.f32.xlu0 %v1096
    %v1098 = vpop.xlane.xlu0 %1097
    %v1099 = vsel %vm92, %v1089, 0.0
    %1100 = vadd.xlane.f32.xlu0 %v1099
    %v1101 = vpop.xlane.xlu0 %1100
    %v1102 = vmul.f32 %v1092, %v105
    %v1103 = vmul.f32 %v1095, %v105
    %v1104 = vmul.f32 %v1098, %v105
    %v1105 = vmul.f32 %v1101, %v105
    %v1106 = vadd.f32 %v1102, 1e-05
    %v1107 = vadd.f32 %v1103, 1e-05
    %v1108 = vadd.f32 %v1104, 1e-05
    %v1109 = vadd.f32 %v1105, 1e-05
    %v1110 = vrsqrt.pop %v1106
    %v1111 = vrsqrt.pop %v1107
    %v1112 = vrsqrt.pop %v1108
    %v1113 = vrsqrt.pop %v1109
    %v1114 = vmul.f32 %v1082, %v1110
    %v1115 = vmul.f32 %v1083, %v1111
    %v1116 = vmul.f32 %v1084, %v1112
    %v1117 = vmul.f32 %v1085, %v1113
    %v1119 = vlaneseq
    %v1120 = vshrl.u32 %v1119, 7
    %v1121 = vsub.s32 0, %v1120
    %v1122 = vrot.slane %v1064, %v1121
    %v1124 = vmul.f32 %v1114, %v1122
    %v1125 = vmul.f32 %v1115, %v1122
    %v1126 = vmul.f32 %v1116, %v1122
    %v1127 = vmul.f32 %v1117, %v1122
    %v1129 = vlaneseq
    %v1130 = vshrl.u32 %v1129, 7
    %v1131 = vsub.s32 0, %v1130
    %v1132 = vrot.slane %v1065, %v1131
    %v1134 = vadd.f32 %v1124, %v1132
    %v1135 = vadd.f32 %v1125, %v1132
    %v1136 = vadd.f32 %v1126, %v1132
    %v1137 = vadd.f32 %v1127, %v1132
    %v1138 = vld [vmem:[#allocation7] sm:$0xff]
    %v1139 = vld [vmem:[#allocation7 + $0x8] sm:$0xff]
    %v1140 = vld [vmem:[#allocation7 + $0x10] sm:$0xff]
    %v1141 = vld [vmem:[#allocation7 + $0x18] sm:$0xff]
    %v1142 = vld [vmem:[%s10] sm:$0x1]
    %v1144 = vlaneseq
    %v1145 = vshrl.u32 %v1144, 7
    %v1146 = vsub.s32 0, %v1145
    %v1147 = vrot.slane %v1142, %v1146
    %v1150 = vsel %vm92, %v1134, 0
    %v1153 = vsel %vm92, %v1135, 0
    %v1156 = vsel %vm92, %v1136, 0
    %v1159 = vsel %vm92, %v1137, 0
    %1161 = vmatprep.subr.mxu0 0.0
    %1162 = vmatpush1.msra.mxu0 %v1138
    %1163 = vmatprep.subr.mxu0 0.0
    %1164 = vmatpush1.msra.mxu0 %v1139
    %1165 = vmatprep.subr.mxu0 0.0
    %1166 = vmatpush1.msra.mxu0 %v1140
    %1167 = vmatprep.subr.mxu0 0.0
    %1168 = vmatpush1.msra.mxu0 %v1141
    %1169 = vmatprep.subr.mxu0 0.0
    %1170 = vmatpush1.msra.mxu0 0.0
    %1171 = vmatprep.subr.mxu0 0.0
    %1172 = vmatpush1.msra.mxu0 0.0
    %1173 = vmatprep.subr.mxu0 0.0
    %1174 = vmatpush1.msra.mxu0 0.0
    %1175 = vmatprep.subr.mxu0 0.0
    %1176 = vmatpush1.msra.mxu0 0.0
    %1177 = vmatprep.subr.mxu0 0.0
    %1178 = vmatpush1.msra.mxu0 0.0
    %1179 = vmatprep.subr.mxu0 0.0
    %1180 = vmatpush1.msra.mxu0 0.0
    %1181 = vmatprep.subr.mxu0 0.0
    %1182 = vmatpush1.msra.mxu0 0.0
    %1183 = vmatprep.subr.mxu0 0.0
    %1184 = vmatpush1.msra.mxu0 0.0
    %1185 = vmatprep.subr.mxu0 0.0
    %1186 = vmatpush1.msra.mxu0 0.0
    %1187 = vmatprep.subr.mxu0 0.0
    %1188 = vmatpush1.msra.mxu0 0.0
    %1189 = vmatprep.subr.mxu0 0.0
    %1190 = vmatpush1.msra.mxu0 0.0
    %1191 = vmatprep.subr.mxu0 0.0
    %1192 = vmatpush1.msra.mxu0 0.0
    %1193 = vmatprep.subr.mxu0 0.0
    %1194 = vmatpush1.msra.mxu0 0.0
    %1195 = vmatprep.subr.mxu0 0.0
    %1196 = vmatpush1.msra.mxu0 0.0
    %1197 = vmatprep.subr.mxu0 0.0
    %1198 = vmatpush1.msra.mxu0 0.0
    %1199 = vmatprep.subr.mxu0 0.0
    %1200 = vmatpush1.msra.mxu0 0.0
    %1201 = vmatprep.subr.mxu0 0.0
    %1202 = vmatpush1.msra.mxu0 0.0
    %1203 = vmatprep.subr.mxu0 0.0
    %1204 = vmatpush1.msra.mxu0 0.0
    %1205 = vmatprep.subr.mxu0 0.0
    %1206 = vmatpush1.msra.mxu0 0.0
    %1207 = vmatprep.subr.mxu0 0.0
    %1208 = vmatpush1.msra.mxu0 0.0
    %1209 = vmatprep.subr.mxu0 0.0
    %1210 = vmatpush1.msra.mxu0 0.0
    %1211 = vmatprep.subr.mxu0 0.0
    %1212 = vmatpush1.msra.mxu0 0.0
    %1213 = vmatprep.subr.mxu0 0.0
    %1214 = vmatpush1.msra.mxu0 0.0
    %1215 = vmatprep.subr.mxu0 0.0
    %1216 = vmatpush1.msra.mxu0 0.0
    %1217 = vmatprep.subr.mxu0 0.0
    %1218 = vmatpush1.msra.mxu0 0.0
    %1219 = vmatprep.subr.mxu0 0.0
    %1220 = vmatpush1.msra.mxu0 0.0
    %1221 = vmatprep.subr.mxu0 0.0
    %1222 = vmatpush1.msra.mxu0 0.0
    %1223 = vmatprep.subr.mxu0 0.0
    %1224 = vmatpush1.msra.mxu0 0.0
    %1225 = vmatprep.mubr.f32.mxu0 0.0
    %1226 = vmatmul.mubr.f32.gmra.mrb[0].mxu0 %v1150
    %v1227 = vpop.f32.mrb[0].mxu0
    %v1228 = vadd.f32 %v1147, %v1227
    %v1229 = vpop.f32.mrb[0].mxu0
    %1230 = vmatprep.mubr.f32.mxu0 0.0
    %1231 = vmatmul.mubr.f32.gmra.mrb[0].mxu0 %v1153
    %v1232 = vpop.f32.mrb[0].mxu0
    %v1233 = vadd.f32 %v1147, %v1232
    %v1234 = vpop.f32.mrb[0].mxu0
    %1235 = vmatprep.mubr.f32.mxu0 0.0
    %1236 = vmatmul.mubr.f32.gmra.mrb[0].mxu0 %v1156
    %v1237 = vpop.f32.mrb[0].mxu0
    %v1238 = vadd.f32 %v1147, %v1237
    %v1239 = vpop.f32.mrb[0].mxu0
    %1240 = vmatprep.mubr.f32.mxu0 0.0
    %1241 = vmatmul.mubr.f32.gmra.mrb[0].mxu0 %v1159
    %v1242 = vpop.f32.mrb[0].mxu0
    %v1243 = vadd.f32 %v1147, %v1242
    %v1244 = vpop.f32.mrb[0].mxu0
    %1245 = vdwg.mxu0
    %v1246 = vmul.f32 %v1228, 0.5
    %v1247 = vmul.f32 %v1233, 0.5
    %v1248 = vmul.f32 %v1238, 0.5
    %v1249 = vmul.f32 %v1243, 0.5
    %v1250 = vmul.f32 %v1228, 0.70710677
    %v1251 = vmul.f32 %v1233, 0.70710677
    %v1252 = vmul.f32 %v1238, 0.70710677
    %v1253 = vmul.f32 %v1243, 0.70710677
    %v1254 = verf.f32.pop %v1250
    %v1255 = verf.f32.pop %v1251
    %v1256 = verf.f32.pop %v1252
    %v1257 = verf.f32.pop %v1253
    %v1258 = vadd.f32 %v1254, 1.0
    %v1259 = vadd.f32 %v1255, 1.0
    %v1260 = vadd.f32 %v1256, 1.0
    %v1261 = vadd.f32 %v1257, 1.0
    %v1262 = vmul.f32 %v1246, %v1258
    %v1263 = vmul.f32 %v1247, %v1259
    %v1264 = vmul.f32 %v1248, %v1260
    %v1265 = vmul.f32 %v1249, %v1261
    %v1266 = vld [vmem:[%s11] sm:$0xff]
    %v1267 = vld [vmem:[%s11 + $0x8] sm:$0xff]
    %v1268 = vld [vmem:[%s11 + $0x10] sm:$0xff]
    %v1269 = vld [vmem:[%s11 + $0x18] sm:$0xff]
    %v1270 = vld [vmem:[%s11 + $0x20] sm:$0xff]
    %v1271 = vld [vmem:[%s11 + $0x28] sm:$0xff]
    %v1272 = vld [vmem:[%s11 + $0x30] sm:$0xff]
    %v1273 = vld [vmem:[%s11 + $0x38] sm:$0xff]
    %v1274 = vld [vmem:[%s11 + $0x40] sm:$0xff]
    %v1275 = vld [vmem:[%s11 + $0x48] sm:$0xff]
    %v1276 = vld [vmem:[%s11 + $0x50] sm:$0xff]
    %v1277 = vld [vmem:[%s11 + $0x58] sm:$0xff]
    %v1278 = vld [vmem:[%s11 + $0x60] sm:$0xff]
    %v1279 = vld [vmem:[%s11 + $0x68] sm:$0xff]
    %v1280 = vld [vmem:[%s11 + $0x70] sm:$0xff]
    %v1281 = vld [vmem:[%s11 + $0x78] sm:$0xff]
    %1282 = vmatprep.subr.mxu0 0.0
    %1283 = vmatpush1.msra.mxu0 %v1266
    %1284 = vmatprep.subr.mxu0 0.0
    %1285 = vmatpush1.msra.mxu0 %v1267
    %1286 = vmatprep.subr.mxu0 0.0
    %1287 = vmatpush1.msra.mxu0 %v1268
    %1288 = vmatprep.subr.mxu0 0.0
    %1289 = vmatpush1.msra.mxu0 %v1269
    %1290 = vmatprep.subr.mxu0 0.0
    %1291 = vmatpush1.msra.mxu0 %v1270
    %1292 = vmatprep.subr.mxu0 0.0
    %1293 = vmatpush1.msra.mxu0 %v1271
    %1294 = vmatprep.subr.mxu0 0.0
    %1295 = vmatpush1.msra.mxu0 %v1272
    %1296 = vmatprep.subr.mxu0 0.0
    %1297 = vmatpush1.msra.mxu0 %v1273
    %1298 = vmatprep.subr.mxu0 0.0
    %1299 = vmatpush1.msra.mxu0 %v1274
    %1300 = vmatprep.subr.mxu0 0.0
    %1301 = vmatpush1.msra.mxu0 %v1275
    %1302 = vmatprep.subr.mxu0 0.0
    %1303 = vmatpush1.msra.mxu0 %v1276
    %1304 = vmatprep.subr.mxu0 0.0
    %1305 = vmatpush1.msra.mxu0 %v1277
    %1306 = vmatprep.subr.mxu0 0.0
    %1307 = vmatpush1.msra.mxu0 %v1278
    %1308 = vmatprep.subr.mxu0 0.0
    %1309 = vmatpush1.msra.mxu0 %v1279
    %1310 = vmatprep.subr.mxu0 0.0
    %1311 = vmatpush1.msra.mxu0 %v1280
    %1312 = vmatprep.subr.mxu0 0.0
    %1313 = vmatpush1.msra.mxu0 %v1281
    %1314 = vmatprep.subr.mxu0 0.0
    %1315 = vmatpush1.msra.mxu0 0.0
    %1316 = vmatprep.subr.mxu0 0.0
    %1317 = vmatpush1.msra.mxu0 0.0
    %1318 = vmatprep.subr.mxu0 0.0
    %1319 = vmatpush1.msra.mxu0 0.0
    %1320 = vmatprep.subr.mxu0 0.0
    %1321 = vmatpush1.msra.mxu0 0.0
    %1322 = vmatprep.subr.mxu0 0.0
    %1323 = vmatpush1.msra.mxu0 0.0
    %1324 = vmatprep.subr.mxu0 0.0
    %1325 = vmatpush1.msra.mxu0 0.0
    %1326 = vmatprep.subr.mxu0 0.0
    %1327 = vmatpush1.msra.mxu0 0.0
    %1328 = vmatprep.subr.mxu0 0.0
    %1329 = vmatpush1.msra.mxu0 0.0
    %1330 = vmatprep.subr.mxu0 0.0
    %1331 = vmatpush1.msra.mxu0 0.0
    %1332 = vmatprep.subr.mxu0 0.0
    %1333 = vmatpush1.msra.mxu0 0.0
    %1334 = vmatprep.subr.mxu0 0.0
    %1335 = vmatpush1.msra.mxu0 0.0
    %1336 = vmatprep.subr.mxu0 0.0
    %1337 = vmatpush1.msra.mxu0 0.0
    %1338 = vmatprep.subr.mxu0 0.0
    %1339 = vmatpush1.msra.mxu0 0.0
    %1340 = vmatprep.subr.mxu0 0.0
    %1341 = vmatpush1.msra.mxu0 0.0
    %1342 = vmatprep.subr.mxu0 0.0
    %1343 = vmatpush1.msra.mxu0 0.0
    %1344 = vmatprep.subr.mxu0 0.0
    %1345 = vmatpush1.msra.mxu0 0.0
    %1346 = vmatprep.mubr.f32.mxu0 0.0
    %1347 = vmatmul.mubr.f32.gmra.mrb[0].mxu0 %v1262
    %v1348 = vpop.f32.mrb[0].mxu0
    %v1349 = vadd.f32 0.0, %v1348
    %v1350 = vpop.f32.mrb[0].mxu0
    %1351 = vmatprep.mubr.f32.mxu0 0.0
    %1352 = vmatmul.mubr.f32.gmra.mrb[0].mxu0 %v1263
    %v1353 = vpop.f32.mrb[0].mxu0
    %v1354 = vadd.f32 0.0, %v1353
    %v1355 = vpop.f32.mrb[0].mxu0
    %1356 = vmatprep.mubr.f32.mxu0 0.0
    %1357 = vmatmul.mubr.f32.gmra.mrb[0].mxu0 %v1264
    %v1358 = vpop.f32.mrb[0].mxu0
    %v1359 = vadd.f32 0.0, %v1358
    %v1360 = vpop.f32.mrb[0].mxu0
    %1361 = vmatprep.mubr.f32.mxu0 0.0
    %1362 = vmatmul.mubr.f32.gmra.mrb[0].mxu0 %v1265
    %v1363 = vpop.f32.mrb[0].mxu0
    %v1364 = vadd.f32 0.0, %v1363
    %v1365 = vpop.f32.mrb[0].mxu0
    %1366 = vdwg.mxu0
    %v1367 = vadd.f32 %v1060, %v1349
    %v1368 = vadd.f32 %v1061, %v1354
    %v1369 = vadd.f32 %v1062, %v1359
    %v1370 = vadd.f32 %v1063, %v1364
    %v1371 = vld [vmem:[%s12] sm:$0x1]
    %v1373 = vlaneseq
    %v1374 = vshrl.u32 %v1373, 7
    %v1375 = vsub.s32 0, %v1374
    %v1376 = vrot.slane %v1371, %v1375
    %v1378 = vadd.f32 %v1367, %v1376
    %v1379 = vadd.f32 %v1368, %v1376
    %v1380 = vadd.f32 %v1369, %v1376
    %v1381 = vadd.f32 %v1370, %v1376
    %s1382 = scalar_lea.vmem %s2, 1
    %v1383 = vld [vmem:[%s1382] sm:$0x1]
    %s1384 = scalar_lea.vmem %s3, 1
    %v1385 = vld [vmem:[%s1384] sm:$0x1]
    %v1386 = vsel %vm92, %v1378, 0.0
    %1387 = vadd.xlane.f32.xlu0 %v1386
    %v1388 = vpop.xlane.xlu0 %1387
    %v1389 = vsel %vm92, %v1379, 0.0
    %1390 = vadd.xlane.f32.xlu0 %v1389
    %v1391 = vpop.xlane.xlu0 %1390
    %v1392 = vsel %vm92, %v1380, 0.0
    %1393 = vadd.xlane.f32.xlu0 %v1392
    %v1394 = vpop.xlane.xlu0 %1393
    %v1395 = vsel %vm92, %v1381, 0.0
    %1396 = vadd.xlane.f32.xlu0 %v1395
    %v1397 = vpop.xlane.xlu0 %1396
    %v1398 = vmul.f32 %v1388, %v105
    %v1399 = vmul.f32 %v1391, %v105
    %v1400 = vmul.f32 %v1394, %v105
    %v1401 = vmul.f32 %v1397, %v105
    %v1402 = vsub.f32 %v1378, %v1398
    %v1403 = vsub.f32 %v1379, %v1399
    %v1404 = vsub.f32 %v1380, %v1400
    %v1405 = vsub.f32 %v1381, %v1401
    %v1406 = vmul.f32 %v1402, %v1402
    %v1407 = vmul.f32 %v1403, %v1403
    %v1408 = vmul.f32 %v1404, %v1404
    %v1409 = vmul.f32 %v1405, %v1405
    %v1410 = vsel %vm92, %v1406, 0.0
    %1411 = vadd.xlane.f32.xlu0 %v1410
    %v1412 = vpop.xlane.xlu0 %1411
    %v1413 = vsel %vm92, %v1407, 0.0
    %1414 = vadd.xlane.f32.xlu0 %v1413
    %v1415 = vpop.xlane.xlu0 %1414
    %v1416 = vsel %vm92, %v1408, 0.0
    %1417 = vadd.xlane.f32.xlu0 %v1416
    %v1418 = vpop.xlane.xlu0 %1417
    %v1419 = vsel %vm92, %v1409, 0.0
    %1420 = vadd.xlane.f32.xlu0 %v1419
    %v1421 = vpop.xlane.xlu0 %1420
    %v1422 = vmul.f32 %v1412, %v105
    %v1423 = vmul.f32 %v1415, %v105
    %v1424 = vmul.f32 %v1418, %v105
    %v1425 = vmul.f32 %v1421, %v105
    %v1426 = vadd.f32 %v1422, 1e-05
    %v1427 = vadd.f32 %v1423, 1e-05
    %v1428 = vadd.f32 %v1424, 1e-05
    %v1429 = vadd.f32 %v1425, 1e-05
    %v1430 = vrsqrt.pop %v1426
    %v1431 = vrsqrt.pop %v1427
    %v1432 = vrsqrt.pop %v1428
    %v1433 = vrsqrt.pop %v1429
    %v1434 = vmul.f32 %v1402, %v1430
    %v1435 = vmul.f32 %v1403, %v1431
    %v1436 = vmul.f32 %v1404, %v1432
    %v1437 = vmul.f32 %v1405, %v1433
    %v1439 = vlaneseq
    %v1440 = vshrl.u32 %v1439, 7
    %v1441 = vsub.s32 0, %v1440
    %v1442 = vrot.slane %v1383, %v1441
    %v1444 = vmul.f32 %v1434, %v1442
    %v1445 = vmul.f32 %v1435, %v1442
    %v1446 = vmul.f32 %v1436, %v1442
    %v1447 = vmul.f32 %v1437, %v1442
    %v1449 = vlaneseq
    %v1450 = vshrl.u32 %v1449, 7
    %v1451 = vsub.s32 0, %v1450
    %v1452 = vrot.slane %v1385, %v1451
    %v1454 = vadd.f32 %v1444, %v1452
    %v1455 = vadd.f32 %v1445, %v1452
    %v1456 = vadd.f32 %v1446, %v1452
    %v1457 = vadd.f32 %v1447, %v1452
    %s1458 = scalar_lea.vmem %s4, 32
    %v1459 = vld [vmem:[%s1458] sm:$0xff]
    %v1460 = vld [vmem:[%s1458 + $0x8] sm:$0xff]
    %v1461 = vld [vmem:[%s1458 + $0x10] sm:$0xff]
    %v1462 = vld [vmem:[%s1458 + $0x18] sm:$0xff]
    %v1464 = vsel %vm92, %v1454, 0
    %v1467 = vsel %vm92, %v1455, 0
    %v1470 = vsel %vm92, %v1456, 0
    %v1473 = vsel %vm92, %v1457, 0
    %1475 = vmatprep.subr.mxu0 0.0
    %1476 = vmatpush1.msra.mxu0 %v1459
    %1477 = vmatprep.subr.mxu0 0.0
    %1478 = vmatpush1.msra.mxu0 %v1460
    %1479 = vmatprep.subr.mxu0 0.0
    %1480 = vmatpush1.msra.mxu0 %v1461
    %1481 = vmatprep.subr.mxu0 0.0
    %1482 = vmatpush1.msra.mxu0 %v1462
    %1483 = vmatprep.subr.mxu0 0.0
    %1484 = vmatpush1.msra.mxu0 0.0
    %1485 = vmatprep.subr.mxu0 0.0
    %1486 = vmatpush1.msra.mxu0 0.0
    %1487 = vmatprep.subr.mxu0 0.0
    %1488 = vmatpush1.msra.mxu0 0.0
    %1489 = vmatprep.subr.mxu0 0.0
    %1490 = vmatpush1.msra.mxu0 0.0
    %1491 = vmatprep.subr.mxu0 0.0
    %1492 = vmatpush1.msra.mxu0 0.0
    %1493 = vmatprep.subr.mxu0 0.0
    %1494 = vmatpush1.msra.mxu0 0.0
    %1495 = vmatprep.subr.mxu0 0.0
    %1496 = vmatpush1.msra.mxu0 0.0
    %1497 = vmatprep.subr.mxu0 0.0
    %1498 = vmatpush1.msra.mxu0 0.0
    %1499 = vmatprep.subr.mxu0 0.0
    %1500 = vmatpush1.msra.mxu0 0.0
    %1501 = vmatprep.subr.mxu0 0.0
    %1502 = vmatpush1.msra.mxu0 0.0
    %1503 = vmatprep.subr.mxu0 0.0
    %1504 = vmatpush1.msra.mxu0 0.0
    %1505 = vmatprep.subr.mxu0 0.0
    %1506 = vmatpush1.msra.mxu0 0.0
    %1507 = vmatprep.subr.mxu0 0.0
    %1508 = vmatpush1.msra.mxu0 0.0
    %1509 = vmatprep.subr.mxu0 0.0
    %1510 = vmatpush1.msra.mxu0 0.0
    %1511 = vmatprep.subr.mxu0 0.0
    %1512 = vmatpush1.msra.mxu0 0.0
    %1513 = vmatprep.subr.mxu0 0.0
    %1514 = vmatpush1.msra.mxu0 0.0
    %1515 = vmatprep.subr.mxu0 0.0
    %1516 = vmatpush1.msra.mxu0 0.0
    %1517 = vmatprep.subr.mxu0 0.0
    %1518 = vmatpush1.msra.mxu0 0.0
    %1519 = vmatprep.subr.mxu0 0.0
    %1520 = vmatpush1.msra.mxu0 0.0
    %1521 = vmatprep.subr.mxu0 0.0
    %1522 = vmatpush1.msra.mxu0 0.0
    %1523 = vmatprep.subr.mxu0 0.0
    %1524 = vmatpush1.msra.mxu0 0.0
    %1525 = vmatprep.subr.mxu0 0.0
    %1526 = vmatpush1.msra.mxu0 0.0
    %1527 = vmatprep.subr.mxu0 0.0
    %1528 = vmatpush1.msra.mxu0 0.0
    %1529 = vmatprep.subr.mxu0 0.0
    %1530 = vmatpush1.msra.mxu0 0.0
    %1531 = vmatprep.subr.mxu0 0.0
    %1532 = vmatpush1.msra.mxu0 0.0
    %1533 = vmatprep.subr.mxu0 0.0
    %1534 = vmatpush1.msra.mxu0 0.0
    %1535 = vmatprep.subr.mxu0 0.0
    %1536 = vmatpush1.msra.mxu0 0.0
    %1537 = vmatprep.subr.mxu0 0.0
    %1538 = vmatpush1.msra.mxu0 0.0
    %1539 = vmatprep.mubr.f32.mxu0 0.0
    %1540 = vmatmul.mubr.f32.gmra.mrb[0].mxu0 %v1464
    %v1541 = vpop.f32.mrb[0].mxu0
    %v1542 = vadd.f32 0.0, %v1541
    %v1543 = vpop.f32.mrb[0].mxu0
    %1544 = vmatprep.mubr.f32.mxu0 0.0
    %1545 = vmatmul.mubr.f32.gmra.mrb[0].mxu0 %v1467
    %v1546 = vpop.f32.mrb[0].mxu0
    %v1547 = vadd.f32 0.0, %v1546
    %v1548 = vpop.f32.mrb[0].mxu0
    %1549 = vmatprep.mubr.f32.mxu0 0.0
    %1550 = vmatmul.mubr.f32.gmra.mrb[0].mxu0 %v1470
    %v1551 = vpop.f32.mrb[0].mxu0
    %v1552 = vadd.f32 0.0, %v1551
    %v1553 = vpop.f32.mrb[0].mxu0
    %1554 = vmatprep.mubr.f32.mxu0 0.0
    %1555 = vmatmul.mubr.f32.gmra.mrb[0].mxu0 %v1473
    %v1556 = vpop.f32.mrb[0].mxu0
    %v1557 = vadd.f32 0.0, %v1556
    %v1558 = vpop.f32.mrb[0].mxu0
    %1559 = vdwg.mxu0
    %1564 = vrot.lane.b32.xlu0 %v1542, 120
    %v1565 = vpop.permute.xlu0 %1564
    %1566 = vrot.lane.b32.xlu0 %v1547, 120
    %v1567 = vpop.permute.xlu0 %1566
    %1568 = vrot.lane.b32.xlu0 %v1552, 120
    %v1569 = vpop.permute.xlu0 %1568
    %1570 = vrot.lane.b32.xlu0 %v1557, 120
    %v1571 = vpop.permute.xlu0 %1570
    %1572 = vrot.lane.b32.xlu0 %v1542, 112
    %v1573 = vpop.permute.xlu0 %1572
    %1574 = vrot.lane.b32.xlu0 %v1547, 112
    %v1575 = vpop.permute.xlu0 %1574
    %1576 = vrot.lane.b32.xlu0 %v1552, 112
    %v1577 = vpop.permute.xlu0 %1576
    %1578 = vrot.lane.b32.xlu0 %v1557, 112
    %v1579 = vpop.permute.xlu0 %1578
    %1580 = vrot.lane.b32.xlu0 %v1542, 104
    %v1581 = vpop.permute.xlu0 %1580
    %1582 = vrot.lane.b32.xlu0 %v1547, 104
    %v1583 = vpop.permute.xlu0 %1582
    %1584 = vrot.lane.b32.xlu0 %v1552, 104
    %v1585 = vpop.permute.xlu0 %1584
    %1586 = vrot.lane.b32.xlu0 %v1557, 104
    %v1587 = vpop.permute.xlu0 %1586
    %s1588 = scalar_lea.vmem %s1, 128
    %v1589 = vld [vmem:[%s1588] sm:$0xff]
    %v1590 = vld [vmem:[%s1588 + $0x8] sm:$0xff]
    %v1591 = vld [vmem:[%s1588 + $0x10] sm:$0xff]
    %v1592 = vld [vmem:[%s1588 + $0x18] sm:$0xff]
    %v1593 = vld [vmem:[%s1588 + $0x20] sm:$0xff]
    %v1594 = vld [vmem:[%s1588 + $0x28] sm:$0xff]
    %v1595 = vld [vmem:[%s1588 + $0x30] sm:$0xff]
    %v1596 = vld [vmem:[%s1588 + $0x38] sm:$0xff]
    %v1597 = vld [vmem:[%s1588 + $0x40] sm:$0xff]
    %v1598 = vld [vmem:[%s1588 + $0x48] sm:$0xff]
    %v1599 = vld [vmem:[%s1588 + $0x50] sm:$0xff]
    %v1600 = vld [vmem:[%s1588 + $0x58] sm:$0xff]
    %v1601 = vld [vmem:[%s1588 + $0x60] sm:$0xff]
    %v1602 = vld [vmem:[%s1588 + $0x68] sm:$0xff]
    %v1603 = vld [vmem:[%s1588 + $0x70] sm:$0xff]
    %v1604 = vld [vmem:[%s1588 + $0x78] sm:$0xff]
    %1605 = vrot.lane.b32.xlu0 %v1542, 96
    %v1606 = vpop.permute.xlu0 %1605
    %1607 = vrot.lane.b32.xlu0 %v1547, 96
    %v1608 = vpop.permute.xlu0 %1607
    %1609 = vrot.lane.b32.xlu0 %v1552, 96
    %v1610 = vpop.permute.xlu0 %1609
    %1611 = vrot.lane.b32.xlu0 %v1557, 96
    %v1612 = vpop.permute.xlu0 %1611
    %1613 = vrot.lane.b32.xlu0 %v1565, 96
    %v1614 = vpop.permute.xlu0 %1613
    %1615 = vrot.lane.b32.xlu0 %v1567, 96
    %v1616 = vpop.permute.xlu0 %1615
    %1617 = vrot.lane.b32.xlu0 %v1569, 96
    %v1618 = vpop.permute.xlu0 %1617
    %1619 = vrot.lane.b32.xlu0 %v1571, 96
    %v1620 = vpop.permute.xlu0 %1619
    %1621 = vrot.lane.b32.xlu0 %v1573, 96
    %v1622 = vpop.permute.xlu0 %1621
    %1623 = vrot.lane.b32.xlu0 %v1575, 96
    %v1624 = vpop.permute.xlu0 %1623
    %1625 = vrot.lane.b32.xlu0 %v1577, 96
    %v1626 = vpop.permute.xlu0 %1625
    %1627 = vrot.lane.b32.xlu0 %v1579, 96
    %v1628 = vpop.permute.xlu0 %1627
    %1629 = vrot.lane.b32.xlu0 %v1581, 96
    %v1630 = vpop.permute.xlu0 %1629
    %1631 = vrot.lane.b32.xlu0 %v1583, 96
    %v1632 = vpop.permute.xlu0 %1631
    %1633 = vrot.lane.b32.xlu0 %v1585, 96
    %v1634 = vpop.permute.xlu0 %1633
    %1635 = vrot.lane.b32.xlu0 %v1587, 96
    %v1636 = vpop.permute.xlu0 %1635
    %v1637 = vsel %vm343, %v1542, 0
    %v1639 = vsel %vm343, %v1547, 0
    %v1641 = vsel %vm343, %v1552, 0
    %v1643 = vsel %vm343, %v1557, 0
    %v1645 = vsel %vm343, %v1565, 0
    %v1647 = vsel %vm343, %v1567, 0
    %v1649 = vsel %vm343, %v1569, 0
    %v1651 = vsel %vm343, %v1571, 0
    %v1653 = vsel %vm343, %v1573, 0
    %v1655 = vsel %vm343, %v1575, 0
    %v1657 = vsel %vm343, %v1577, 0
    %v1659 = vsel %vm343, %v1579, 0
    %v1661 = vsel %vm343, %v1581, 0
    %v1663 = vsel %vm343, %v1583, 0
    %v1665 = vsel %vm343, %v1585, 0
    %v1667 = vsel %vm343, %v1587, 0
    %v1669 = vsel %vm343, %v1606, 0
    %v1671 = vsel %vm343, %v1608, 0
    %v1673 = vsel %vm343, %v1610, 0
    %v1675 = vsel %vm343, %v1612, 0
    %v1677 = vsel %vm343, %v1614, 0
    %v1679 = vsel %vm343, %v1616, 0
    %v1681 = vsel %vm343, %v1618, 0
    %v1683 = vsel %vm343, %v1620, 0
    %v1685 = vsel %vm343, %v1622, 0
    %v1687 = vsel %vm343, %v1624, 0
    %v1689 = vsel %vm343, %v1626, 0
    %v1691 = vsel %vm343, %v1628, 0
    %v1693 = vsel %vm343, %v1630, 0
    %v1695 = vsel %vm343, %v1632, 0
    %v1697 = vsel %vm343, %v1634, 0
    %v1699 = vsel %vm343, %v1636, 0
    %1701 = vmatprep.subr.mxu0 0.0
    %1702 = vmatpush1.xpose.msra.mxu0 %v1669
    %1703 = vmatprep.subr.mxu0 0.0
    %1704 = vmatpush1.xpose.msra.mxu0 %v1671
    %1705 = vmatprep.subr.mxu0 0.0
    %1706 = vmatpush1.xpose.msra.mxu0 %v1673
    %1707 = vmatprep.subr.mxu0 0.0
    %1708 = vmatpush1.xpose.msra.mxu0 %v1675
    %1709 = vmatprep.subr.mxu0 0.0
    %1710 = vmatpush1.xpose.msra.mxu0 %v1677
    %1711 = vmatprep.subr.mxu0 0.0
    %1712 = vmatpush1.xpose.msra.mxu0 %v1679
    %1713 = vmatprep.subr.mxu0 0.0
    %1714 = vmatpush1.xpose.msra.mxu0 %v1681
    %1715 = vmatprep.subr.mxu0 0.0
    %1716 = vmatpush1.xpose.msra.mxu0 %v1683
    %1717 = vmatprep.subr.mxu0 0.0
    %1718 = vmatpush1.xpose.msra.mxu0 %v1685
    %1719 = vmatprep.subr.mxu0 0.0
    %1720 = vmatpush1.xpose.msra.mxu0 %v1687
    %1721 = vmatprep.subr.mxu0 0.0
    %1722 = vmatpush1.xpose.msra.mxu0 %v1689
    %1723 = vmatprep.subr.mxu0 0.0
    %1724 = vmatpush1.xpose.msra.mxu0 %v1691
    %1725 = vmatprep.subr.mxu0 0.0
    %1726 = vmatpush1.xpose.msra.mxu0 %v1693
    %1727 = vmatprep.subr.mxu0 0.0
    %1728 = vmatpush1.xpose.msra.mxu0 %v1695
    %1729 = vmatprep.subr.mxu0 0.0
    %1730 = vmatpush1.xpose.msra.mxu0 %v1697
    %1731 = vmatprep.subr.mxu0 0.0
    %1732 = vmatpush1.xpose.msra.mxu0 %v1699
    %1733 = vmatprep.subr.mxu0 0.0
    %1734 = vmatpush1.xpose.msra.mxu0 0.0
    %1735 = vmatprep.subr.mxu0 0.0
    %1736 = vmatpush1.xpose.msra.mxu0 0.0
    %1737 = vmatprep.subr.mxu0 0.0
    %1738 = vmatpush1.xpose.msra.mxu0 0.0
    %1739 = vmatprep.subr.mxu0 0.0
    %1740 = vmatpush1.xpose.msra.mxu0 0.0
    %1741 = vmatprep.subr.mxu0 0.0
    %1742 = vmatpush1.xpose.msra.mxu0 0.0
    %1743 = vmatprep.subr.mxu0 0.0
    %1744 = vmatpush1.xpose.msra.mxu0 0.0
    %1745 = vmatprep.subr.mxu0 0.0
    %1746 = vmatpush1.xpose.msra.mxu0 0.0
    %1747 = vmatprep.subr.mxu0 0.0
    %1748 = vmatpush1.xpose.msra.mxu0 0.0
    %1749 = vmatprep.subr.mxu0 0.0
    %1750 = vmatpush1.xpose.msra.mxu0 0.0
    %1751 = vmatprep.subr.mxu0 0.0
    %1752 = vmatpush1.xpose.msra.mxu0 0.0
    %1753 = vmatprep.subr.mxu0 0.0
    %1754 = vmatpush1.xpose.msra.mxu0 0.0
    %1755 = vmatprep.subr.mxu0 0.0
    %1756 = vmatpush1.xpose.msra.mxu0 0.0
    %1757 = vmatprep.subr.mxu0 0.0
    %1758 = vmatpush1.xpose.msra.mxu0 0.0
    %1759 = vmatprep.subr.mxu0 0.0
    %1760 = vmatpush1.xpose.msra.mxu0 0.0
    %1761 = vmatprep.subr.mxu0 0.0
    %1762 = vmatpush1.xpose.msra.mxu0 0.0
    %1763 = vmatprep.subr.mxu0 0.0
    %1764 = vmatpush1.xpose.msra.mxu0 0.0
    %1765 = vmatprep.mubr.f32.mxu0 0.0
    %1766 = vmatmul.mubr.f32.gmra.mrb[0].mxu0 %v1637
    %v1767 = vpop.f32.mrb[0].mxu0
    %v1768 = vadd.f32 %v1589, %v1767
    %v1769 = vpop.f32.mrb[0].mxu0
    %1770 = vmatprep.mubr.f32.mxu0 0.0
    %1771 = vmatmul.mubr.f32.gmra.mrb[0].mxu0 %v1639
    %v1772 = vpop.f32.mrb[0].mxu0
    %v1773 = vadd.f32 %v1590, %v1772
    %v1774 = vpop.f32.mrb[0].mxu0
    %1775 = vmatprep.mubr.f32.mxu0 0.0
    %1776 = vmatmul.mubr.f32.gmra.mrb[0].mxu0 %v1641
    %v1777 = vpop.f32.mrb[0].mxu0
    %v1778 = vadd.f32 %v1591, %v1777
    %v1779 = vpop.f32.mrb[0].mxu0
    %1780 = vmatprep.mubr.f32.mxu0 0.0
    %1781 = vmatmul.mubr.f32.gmra.mrb[0].mxu0 %v1643
    %v1782 = vpop.f32.mrb[0].mxu0
    %v1783 = vadd.f32 %v1592, %v1782
    %v1784 = vpop.f32.mrb[0].mxu0
    %1785 = vmatprep.mubr.f32.mxu0 0.0
    %1786 = vmatmul.mubr.f32.gmra.mrb[0].mxu0 %v1645
    %v1787 = vpop.f32.mrb[0].mxu0
    %v1788 = vadd.f32 %v1593, %v1787
    %v1789 = vpop.f32.mrb[0].mxu0
    %1790 = vmatprep.mubr.f32.mxu0 0.0
    %1791 = vmatmul.mubr.f32.gmra.mrb[0].mxu0 %v1647
    %v1792 = vpop.f32.mrb[0].mxu0
    %v1793 = vadd.f32 %v1594, %v1792
    %v1794 = vpop.f32.mrb[0].mxu0
    %1795 = vmatprep.mubr.f32.mxu0 0.0
    %1796 = vmatmul.mubr.f32.gmra.mrb[0].mxu0 %v1649
    %v1797 = vpop.f32.mrb[0].mxu0
    %v1798 = vadd.f32 %v1595, %v1797
    %v1799 = vpop.f32.mrb[0].mxu0
    %1800 = vmatprep.mubr.f32.mxu0 0.0
    %1801 = vmatmul.mubr.f32.gmra.mrb[0].mxu0 %v1651
    %v1802 = vpop.f32.mrb[0].mxu0
    %v1803 = vadd.f32 %v1596, %v1802
    %v1804 = vpop.f32.mrb[0].mxu0
    %1805 = vmatprep.mubr.f32.mxu0 0.0
    %1806 = vmatmul.mubr.f32.gmra.mrb[0].mxu0 %v1653
    %v1807 = vpop.f32.mrb[0].mxu0
    %v1808 = vadd.f32 %v1597, %v1807
    %v1809 = vpop.f32.mrb[0].mxu0
    %1810 = vmatprep.mubr.f32.mxu0 0.0
    %1811 = vmatmul.mubr.f32.gmra.mrb[0].mxu0 %v1655
    %v1812 = vpop.f32.mrb[0].mxu0
    %v1813 = vadd.f32 %v1598, %v1812
    %v1814 = vpop.f32.mrb[0].mxu0
    %1815 = vmatprep.mubr.f32.mxu0 0.0
    %1816 = vmatmul.mubr.f32.gmra.mrb[0].mxu0 %v1657
    %v1817 = vpop.f32.mrb[0].mxu0
    %v1818 = vadd.f32 %v1599, %v1817
    %v1819 = vpop.f32.mrb[0].mxu0
    %1820 = vmatprep.mubr.f32.mxu0 0.0
    %1821 = vmatmul.mubr.f32.gmra.mrb[0].mxu0 %v1659
    %v1822 = vpop.f32.mrb[0].mxu0
    %v1823 = vadd.f32 %v1600, %v1822
    %v1824 = vpop.f32.mrb[0].mxu0
    %1825 = vmatprep.mubr.f32.mxu0 0.0
    %1826 = vmatmul.mubr.f32.gmra.mrb[0].mxu0 %v1661
    %v1827 = vpop.f32.mrb[0].mxu0
    %v1828 = vadd.f32 %v1601, %v1827
    %v1829 = vpop.f32.mrb[0].mxu0
    %1830 = vmatprep.mubr.f32.mxu0 0.0
    %1831 = vmatmul.mubr.f32.gmra.mrb[0].mxu0 %v1663
    %v1832 = vpop.f32.mrb[0].mxu0
    %v1833 = vadd.f32 %v1602, %v1832
    %v1834 = vpop.f32.mrb[0].mxu0
    %1835 = vmatprep.mubr.f32.mxu0 0.0
    %1836 = vmatmul.mubr.f32.gmra.mrb[0].mxu0 %v1665
    %v1837 = vpop.f32.mrb[0].mxu0
    %v1838 = vadd.f32 %v1603, %v1837
    %v1839 = vpop.f32.mrb[0].mxu0
    %1840 = vmatprep.mubr.f32.mxu0 0.0
    %1841 = vmatmul.mubr.f32.gmra.mrb[0].mxu0 %v1667
    %v1842 = vpop.f32.mrb[0].mxu0
    %v1843 = vadd.f32 %v1604, %v1842
    %v1844 = vpop.f32.mrb[0].mxu0
    %1845 = vdwg.mxu0
    %1846 = vmax.xlane.f32.xlu0 %v1768
    %v1847 = vpop.xlane.xlu0 %1846
    %1848 = vmax.xlane.f32.xlu0 %v1773
    %v1849 = vpop.xlane.xlu0 %1848
    %1850 = vmax.xlane.f32.xlu0 %v1778
    %v1851 = vpop.xlane.xlu0 %1850
    %1852 = vmax.xlane.f32.xlu0 %v1783
    %v1853 = vpop.xlane.xlu0 %1852
    %1854 = vmax.xlane.f32.xlu0 %v1788
    %v1855 = vpop.xlane.xlu0 %1854
    %1856 = vmax.xlane.f32.xlu0 %v1793
    %v1857 = vpop.xlane.xlu0 %1856
    %1858 = vmax.xlane.f32.xlu0 %v1798
    %v1859 = vpop.xlane.xlu0 %1858
    %1860 = vmax.xlane.f32.xlu0 %v1803
    %v1861 = vpop.xlane.xlu0 %1860
    %1862 = vmax.xlane.f32.xlu0 %v1808
    %v1863 = vpop.xlane.xlu0 %1862
    %1864 = vmax.xlane.f32.xlu0 %v1813
    %v1865 = vpop.xlane.xlu0 %1864
    %1866 = vmax.xlane.f32.xlu0 %v1818
    %v1867 = vpop.xlane.xlu0 %1866
    %1868 = vmax.xlane.f32.xlu0 %v1823
    %v1869 = vpop.xlane.xlu0 %1868
    %1870 = vmax.xlane.f32.xlu0 %v1828
    %v1871 = vpop.xlane.xlu0 %1870
    %1872 = vmax.xlane.f32.xlu0 %v1833
    %v1873 = vpop.xlane.xlu0 %1872
    %1874 = vmax.xlane.f32.xlu0 %v1838
    %v1875 = vpop.xlane.xlu0 %1874
    %1876 = vmax.xlane.f32.xlu0 %v1843
    %v1877 = vpop.xlane.xlu0 %1876
    %v1878 = vsub.f32 %v1768, %v1847
    %v1879 = vsub.f32 %v1773, %v1849
    %v1880 = vsub.f32 %v1778, %v1851
    %v1881 = vsub.f32 %v1783, %v1853
    %v1882 = vsub.f32 %v1788, %v1855
    %v1883 = vsub.f32 %v1793, %v1857
    %v1884 = vsub.f32 %v1798, %v1859
    %v1885 = vsub.f32 %v1803, %v1861
    %v1886 = vsub.f32 %v1808, %v1863
    %v1887 = vsub.f32 %v1813, %v1865
    %v1888 = vsub.f32 %v1818, %v1867
    %v1889 = vsub.f32 %v1823, %v1869
    %v1890 = vsub.f32 %v1828, %v1871
    %v1891 = vsub.f32 %v1833, %v1873
    %v1892 = vsub.f32 %v1838, %v1875
    %v1893 = vsub.f32 %v1843, %v1877
    %v1894 = vmul.f32 %v1878, 1.442695
    %v1895 = vpow.pop %v1894
    %v1896 = vmul.f32 %v1879, 1.442695
    %v1897 = vpow.pop %v1896
    %v1898 = vmul.f32 %v1880, 1.442695
    %v1899 = vpow.pop %v1898
    %v1900 = vmul.f32 %v1881, 1.442695
    %v1901 = vpow.pop %v1900
    %v1902 = vmul.f32 %v1882, 1.442695
    %v1903 = vpow.pop %v1902
    %v1904 = vmul.f32 %v1883, 1.442695
    %v1905 = vpow.pop %v1904
    %v1906 = vmul.f32 %v1884, 1.442695
    %v1907 = vpow.pop %v1906
    %v1908 = vmul.f32 %v1885, 1.442695
    %v1909 = vpow.pop %v1908
    %v1910 = vmul.f32 %v1886, 1.442695
    %v1911 = vpow.pop %v1910
    %v1912 = vmul.f32 %v1887, 1.442695
    %v1913 = vpow.pop %v1912
    %v1914 = vmul.f32 %v1888, 1.442695
    %v1915 = vpow.pop %v1914
    %v1916 = vmul.f32 %v1889, 1.442695
    %v1917 = vpow.pop %v1916
    %v1918 = vmul.f32 %v1890, 1.442695
    %v1919 = vpow.pop %v1918
    %v1920 = vmul.f32 %v1891, 1.442695
    %v1921 = vpow.pop %v1920
    %v1922 = vmul.f32 %v1892, 1.442695
    %v1923 = vpow.pop %v1922
    %v1924 = vmul.f32 %v1893, 1.442695
    %v1925 = vpow.pop %v1924
    %1926 = vadd.xlane.f32.xlu0 %v1895
    %v1927 = vpop.xlane.xlu0 %1926
    %1928 = vadd.xlane.f32.xlu0 %v1897
    %v1929 = vpop.xlane.xlu0 %1928
    %1930 = vadd.xlane.f32.xlu0 %v1899
    %v1931 = vpop.xlane.xlu0 %1930
    %1932 = vadd.xlane.f32.xlu0 %v1901
    %v1933 = vpop.xlane.xlu0 %1932
    %1934 = vadd.xlane.f32.xlu0 %v1903
    %v1935 = vpop.xlane.xlu0 %1934
    %1936 = vadd.xlane.f32.xlu0 %v1905
    %v1937 = vpop.xlane.xlu0 %1936
    %1938 = vadd.xlane.f32.xlu0 %v1907
    %v1939 = vpop.xlane.xlu0 %1938
    %1940 = vadd.xlane.f32.xlu0 %v1909
    %v1941 = vpop.xlane.xlu0 %1940
    %1942 = vadd.xlane.f32.xlu0 %v1911
    %v1943 = vpop.xlane.xlu0 %1942
    %1944 = vadd.xlane.f32.xlu0 %v1913
    %v1945 = vpop.xlane.xlu0 %1944
    %1946 = vadd.xlane.f32.xlu0 %v1915
    %v1947 = vpop.xlane.xlu0 %1946
    %1948 = vadd.xlane.f32.xlu0 %v1917
    %v1949 = vpop.xlane.xlu0 %1948
    %1950 = vadd.xlane.f32.xlu0 %v1919
    %v1951 = vpop.xlane.xlu0 %1950
    %1952 = vadd.xlane.f32.xlu0 %v1921
    %v1953 = vpop.xlane.xlu0 %1952
    %1954 = vadd.xlane.f32.xlu0 %v1923
    %v1955 = vpop.xlane.xlu0 %1954
    %1956 = vadd.xlane.f32.xlu0 %v1925
    %v1957 = vpop.xlane.xlu0 %1956
    %v1958 = vrcp.pop %v1927
    %v1959 = vrcp.pop %v1929
    %v1960 = vrcp.pop %v1931
    %v1961 = vrcp.pop %v1933
    %v1962 = vrcp.pop %v1935
    %v1963 = vrcp.pop %v1937
    %v1964 = vrcp.pop %v1939
    %v1965 = vrcp.pop %v1941
    %v1966 = vrcp.pop %v1943
    %v1967 = vrcp.pop %v1945
    %v1968 = vrcp.pop %v1947
    %v1969 = vrcp.pop %v1949
    %v1970 = vrcp.pop %v1951
    %v1971 = vrcp.pop %v1953
    %v1972 = vrcp.pop %v1955
    %v1973 = vrcp.pop %v1957
    %v1974 = vmul.f32 %v1895, %v1958
    %v1975 = vmul.f32 %v1897, %v1959
    %v1976 = vmul.f32 %v1899, %v1960
    %v1977 = vmul.f32 %v1901, %v1961
    %v1978 = vmul.f32 %v1903, %v1962
    %v1979 = vmul.f32 %v1905, %v1963
    %v1980 = vmul.f32 %v1907, %v1964
    %v1981 = vmul.f32 %v1909, %v1965
    %v1982 = vmul.f32 %v1911, %v1966
    %v1983 = vmul.f32 %v1913, %v1967
    %v1984 = vmul.f32 %v1915, %v1968
    %v1985 = vmul.f32 %v1917, %v1969
    %v1986 = vmul.f32 %v1919, %v1970
    %v1987 = vmul.f32 %v1921, %v1971
    %v1988 = vmul.f32 %v1923, %v1972
    %v1989 = vmul.f32 %v1925, %v1973
    %1990 = vrot.lane.b32.xlu0 %v1542, 64
    %v1991 = vpop.permute.xlu0 %1990
    %1992 = vrot.lane.b32.xlu0 %v1547, 64
    %v1993 = vpop.permute.xlu0 %1992
    %1994 = vrot.lane.b32.xlu0 %v1552, 64
    %v1995 = vpop.permute.xlu0 %1994
    %1996 = vrot.lane.b32.xlu0 %v1557, 64
    %v1997 = vpop.permute.xlu0 %1996
    %1998 = vrot.lane.b32.xlu0 %v1565, 64
    %v1999 = vpop.permute.xlu0 %1998
    %2000 = vrot.lane.b32.xlu0 %v1567, 64
    %v2001 = vpop.permute.xlu0 %2000
    %2002 = vrot.lane.b32.xlu0 %v1569, 64
    %v2003 = vpop.permute.xlu0 %2002
    %2004 = vrot.lane.b32.xlu0 %v1571, 64
    %v2005 = vpop.permute.xlu0 %2004
    %2006 = vrot.lane.b32.xlu0 %v1573, 64
    %v2007 = vpop.permute.xlu0 %2006
    %2008 = vrot.lane.b32.xlu0 %v1575, 64
    %v2009 = vpop.permute.xlu0 %2008
    %2010 = vrot.lane.b32.xlu0 %v1577, 64
    %v2011 = vpop.permute.xlu0 %2010
    %2012 = vrot.lane.b32.xlu0 %v1579, 64
    %v2013 = vpop.permute.xlu0 %2012
    %2014 = vrot.lane.b32.xlu0 %v1581, 64
    %v2015 = vpop.permute.xlu0 %2014
    %2016 = vrot.lane.b32.xlu0 %v1583, 64
    %v2017 = vpop.permute.xlu0 %2016
    %2018 = vrot.lane.b32.xlu0 %v1585, 64
    %v2019 = vpop.permute.xlu0 %2018
    %2020 = vrot.lane.b32.xlu0 %v1587, 64
    %v2021 = vpop.permute.xlu0 %2020
    %2038 = vmatprep.subr.mxu0 0.0
    %2039 = vmatpush1.msra.mxu0 %v1991
    %2040 = vmatprep.subr.mxu0 0.0
    %2041 = vmatpush1.msra.mxu0 %v1993
    %2042 = vmatprep.subr.mxu0 0.0
    %2043 = vmatpush1.msra.mxu0 %v1995
    %2044 = vmatprep.subr.mxu0 0.0
    %2045 = vmatpush1.msra.mxu0 %v1997
    %2046 = vmatprep.subr.mxu0 0.0
    %2047 = vmatpush1.msra.mxu0 %v1999
    %2048 = vmatprep.subr.mxu0 0.0
    %2049 = vmatpush1.msra.mxu0 %v2001
    %2050 = vmatprep.subr.mxu0 0.0
    %2051 = vmatpush1.msra.mxu0 %v2003
    %2052 = vmatprep.subr.mxu0 0.0
    %2053 = vmatpush1.msra.mxu0 %v2005
    %2054 = vmatprep.subr.mxu0 0.0
    %2055 = vmatpush1.msra.mxu0 %v2007
    %2056 = vmatprep.subr.mxu0 0.0
    %2057 = vmatpush1.msra.mxu0 %v2009
    %2058 = vmatprep.subr.mxu0 0.0
    %2059 = vmatpush1.msra.mxu0 %v2011
    %2060 = vmatprep.subr.mxu0 0.0
    %2061 = vmatpush1.msra.mxu0 %v2013
    %2062 = vmatprep.subr.mxu0 0.0
    %2063 = vmatpush1.msra.mxu0 %v2015
    %2064 = vmatprep.subr.mxu0 0.0
    %2065 = vmatpush1.msra.mxu0 %v2017
    %2066 = vmatprep.subr.mxu0 0.0
    %2067 = vmatpush1.msra.mxu0 %v2019
    %2068 = vmatprep.subr.mxu0 0.0
    %2069 = vmatpush1.msra.mxu0 %v2021
    %2070 = vmatprep.subr.mxu0 0.0
    %2071 = vmatpush1.msra.mxu0 0.0
    %2072 = vmatprep.subr.mxu0 0.0
    %2073 = vmatpush1.msra.mxu0 0.0
    %2074 = vmatprep.subr.mxu0 0.0
    %2075 = vmatpush1.msra.mxu0 0.0
    %2076 = vmatprep.subr.mxu0 0.0
    %2077 = vmatpush1.msra.mxu0 0.0
    %2078 = vmatprep.subr.mxu0 0.0
    %2079 = vmatpush1.msra.mxu0 0.0
    %2080 = vmatprep.subr.mxu0 0.0
    %2081 = vmatpush1.msra.mxu0 0.0
    %2082 = vmatprep.subr.mxu0 0.0
    %2083 = vmatpush1.msra.mxu0 0.0
    %2084 = vmatprep.subr.mxu0 0.0
    %2085 = vmatpush1.msra.mxu0 0.0
    %2086 = vmatprep.subr.mxu0 0.0
    %2087 = vmatpush1.msra.mxu0 0.0
    %2088 = vmatprep.subr.mxu0 0.0
    %2089 = vmatpush1.msra.mxu0 0.0
    %2090 = vmatprep.subr.mxu0 0.0
    %2091 = vmatpush1.msra.mxu0 0.0
    %2092 = vmatprep.subr.mxu0 0.0
    %2093 = vmatpush1.msra.mxu0 0.0
    %2094 = vmatprep.subr.mxu0 0.0
    %2095 = vmatpush1.msra.mxu0 0.0
    %2096 = vmatprep.subr.mxu0 0.0
    %2097 = vmatpush1.msra.mxu0 0.0
    %2098 = vmatprep.subr.mxu0 0.0
    %2099 = vmatpush1.msra.mxu0 0.0
    %2100 = vmatprep.subr.mxu0 0.0
    %2101 = vmatpush1.msra.mxu0 0.0
    %2102 = vmatprep.mubr.f32.mxu0 0.0
    %2103 = vmatmul.mubr.f32.gmra.mrb[0].mxu0 %v1974
    %v2104 = vpop.f32.mrb[0].mxu0
    %v2105 = vadd.f32 0.0, %v2104
    %v2106 = vpop.f32.mrb[0].mxu0
    %2107 = vmatprep.mubr.f32.mxu0 0.0
    %2108 = vmatmul.mubr.f32.gmra.mrb[0].mxu0 %v1975
    %v2109 = vpop.f32.mrb[0].mxu0
    %v2110 = vadd.f32 0.0, %v2109
    %v2111 = vpop.f32.mrb[0].mxu0
    %2112 = vmatprep.mubr.f32.mxu0 0.0
    %2113 = vmatmul.mubr.f32.gmra.mrb[0].mxu0 %v1976
    %v2114 = vpop.f32.mrb[0].mxu0
    %v2115 = vadd.f32 0.0, %v2114
    %v2116 = vpop.f32.mrb[0].mxu0
    %2117 = vmatprep.mubr.f32.mxu0 0.0
    %2118 = vmatmul.mubr.f32.gmra.mrb[0].mxu0 %v1977
    %v2119 = vpop.f32.mrb[0].mxu0
    %v2120 = vadd.f32 0.0, %v2119
    %v2121 = vpop.f32.mrb[0].mxu0
    %2122 = vmatprep.mubr.f32.mxu0 0.0
    %2123 = vmatmul.mubr.f32.gmra.mrb[0].mxu0 %v1978
    %v2124 = vpop.f32.mrb[0].mxu0
    %v2125 = vadd.f32 0.0, %v2124
    %v2126 = vpop.f32.mrb[0].mxu0
    %2127 = vmatprep.mubr.f32.mxu0 0.0
    %2128 = vmatmul.mubr.f32.gmra.mrb[0].mxu0 %v1979
    %v2129 = vpop.f32.mrb[0].mxu0
    %v2130 = vadd.f32 0.0, %v2129
    %v2131 = vpop.f32.mrb[0].mxu0
    %2132 = vmatprep.mubr.f32.mxu0 0.0
    %2133 = vmatmul.mubr.f32.gmra.mrb[0].mxu0 %v1980
    %v2134 = vpop.f32.mrb[0].mxu0
    %v2135 = vadd.f32 0.0, %v2134
    %v2136 = vpop.f32.mrb[0].mxu0
    %2137 = vmatprep.mubr.f32.mxu0 0.0
    %2138 = vmatmul.mubr.f32.gmra.mrb[0].mxu0 %v1981
    %v2139 = vpop.f32.mrb[0].mxu0
    %v2140 = vadd.f32 0.0, %v2139
    %v2141 = vpop.f32.mrb[0].mxu0
    %2142 = vmatprep.mubr.f32.mxu0 0.0
    %2143 = vmatmul.mubr.f32.gmra.mrb[0].mxu0 %v1982
    %v2144 = vpop.f32.mrb[0].mxu0
    %v2145 = vadd.f32 0.0, %v2144
    %v2146 = vpop.f32.mrb[0].mxu0
    %2147 = vmatprep.mubr.f32.mxu0 0.0
    %2148 = vmatmul.mubr.f32.gmra.mrb[0].mxu0 %v1983
    %v2149 = vpop.f32.mrb[0].mxu0
    %v2150 = vadd.f32 0.0, %v2149
    %v2151 = vpop.f32.mrb[0].mxu0
    %2152 = vmatprep.mubr.f32.mxu0 0.0
    %2153 = vmatmul.mubr.f32.gmra.mrb[0].mxu0 %v1984
    %v2154 = vpop.f32.mrb[0].mxu0
    %v2155 = vadd.f32 0.0, %v2154
    %v2156 = vpop.f32.mrb[0].mxu0
    %2157 = vmatprep.mubr.f32.mxu0 0.0
    %2158 = vmatmul.mubr.f32.gmra.mrb[0].mxu0 %v1985
    %v2159 = vpop.f32.mrb[0].mxu0
    %v2160 = vadd.f32 0.0, %v2159
    %v2161 = vpop.f32.mrb[0].mxu0
    %2162 = vmatprep.mubr.f32.mxu0 0.0
    %2163 = vmatmul.mubr.f32.gmra.mrb[0].mxu0 %v1986
    %v2164 = vpop.f32.mrb[0].mxu0
    %v2165 = vadd.f32 0.0, %v2164
    %v2166 = vpop.f32.mrb[0].mxu0
    %2167 = vmatprep.mubr.f32.mxu0 0.0
    %2168 = vmatmul.mubr.f32.gmra.mrb[0].mxu0 %v1987
    %v2169 = vpop.f32.mrb[0].mxu0
    %v2170 = vadd.f32 0.0, %v2169
    %v2171 = vpop.f32.mrb[0].mxu0
    %2172 = vmatprep.mubr.f32.mxu0 0.0
    %2173 = vmatmul.mubr.f32.gmra.mrb[0].mxu0 %v1988
    %v2174 = vpop.f32.mrb[0].mxu0
    %v2175 = vadd.f32 0.0, %v2174
    %v2176 = vpop.f32.mrb[0].mxu0
    %2177 = vmatprep.mubr.f32.mxu0 0.0
    %2178 = vmatmul.mubr.f32.gmra.mrb[0].mxu0 %v1989
    %v2179 = vpop.f32.mrb[0].mxu0
    %v2180 = vadd.f32 0.0, %v2179
    %v2181 = vpop.f32.mrb[0].mxu0
    %2182 = vdwg.mxu0
    %2187 = vrot.lane.b32.xlu0 %v2125, 8
    %v2188 = vpop.permute.xlu0 %2187
    %2189 = vrot.lane.b32.xlu0 %v2130, 8
    %v2190 = vpop.permute.xlu0 %2189
    %2191 = vrot.lane.b32.xlu0 %v2135, 8
    %v2192 = vpop.permute.xlu0 %2191
    %2193 = vrot.lane.b32.xlu0 %v2140, 8
    %v2194 = vpop.permute.xlu0 %2193
    %2203 = vrot.lane.b32.xlu0 %v2145, 16
    %v2204 = vpop.permute.xlu0 %2203
    %2205 = vrot.lane.b32.xlu0 %v2150, 16
    %v2206 = vpop.permute.xlu0 %2205
    %2207 = vrot.lane.b32.xlu0 %v2155, 16
    %v2208 = vpop.permute.xlu0 %2207
    %2209 = vrot.lane.b32.xlu0 %v2160, 16
    %v2210 = vpop.permute.xlu0 %2209
    %2219 = vrot.lane.b32.xlu0 %v2165, 24
    %v2220 = vpop.permute.xlu0 %2219
    %2221 = vrot.lane.b32.xlu0 %v2170, 24
    %v2222 = vpop.permute.xlu0 %2221
    %2223 = vrot.lane.b32.xlu0 %v2175, 24
    %v2224 = vpop.permute.xlu0 %2223
    %2225 = vrot.lane.b32.xlu0 %v2180, 24
    %v2226 = vpop.permute.xlu0 %2225
    %v2231 = vsel %vm343, %v2105, %v2188
    %v2232 = vsel %vm343, %v2110, %v2190
    %v2233 = vsel %vm343, %v2115, %v2192
    %v2234 = vsel %vm343, %v2120, %v2194
    %v2235 = vsel %vm942, %v2231, %v2204
    %v2236 = vsel %vm942, %v2232, %v2206
    %v2237 = vsel %vm942, %v2233, %v2208
    %v2238 = vsel %vm942, %v2234, %v2210
    %v2239 = vsel %vm947, %v2235, %v2220
    %v2240 = vsel %vm947, %v2236, %v2222
    %v2241 = vsel %vm947, %v2237, %v2224
    %v2242 = vsel %vm947, %v2238, %v2226
    %s2243 = scalar_lea.vmem [#allocation5], 32
    %v2244 = vld [vmem:[%s2243] sm:$0xff]
    %v2245 = vld [vmem:[%s2243 + $0x8] sm:$0xff]
    %v2246 = vld [vmem:[%s2243 + $0x10] sm:$0xff]
    %v2247 = vld [vmem:[%s2243 + $0x18] sm:$0xff]
    %s2248 = scalar_lea.vmem %s6, 1
    %v2249 = vld [vmem:[%s2248] sm:$0x1]
    %v2251 = vlaneseq
    %v2252 = vshrl.u32 %v2251, 7
    %v2253 = vsub.s32 0, %v2252
    %v2254 = vrot.slane %v2249, %v2253
    %v2257 = vsel %vm92, %v2239, 0
    %v2260 = vsel %vm92, %v2240, 0
    %v2263 = vsel %vm92, %v2241, 0
    %v2266 = vsel %vm92, %v2242, 0
    %2268 = vmatprep.subr.mxu0 0.0
    %2269 = vmatpush1.msra.mxu0 %v2244
    %2270 = vmatprep.subr.mxu0 0.0
    %2271 = vmatpush1.msra.mxu0 %v2245
    %2272 = vmatprep.subr.mxu0 0.0
    %2273 = vmatpush1.msra.mxu0 %v2246
    %2274 = vmatprep.subr.mxu0 0.0
    %2275 = vmatpush1.msra.mxu0 %v2247
    %2276 = vmatprep.subr.mxu0 0.0
    %2277 = vmatpush1.msra.mxu0 0.0
    %2278 = vmatprep.subr.mxu0 0.0
    %2279 = vmatpush1.msra.mxu0 0.0
    %2280 = vmatprep.subr.mxu0 0.0
    %2281 = vmatpush1.msra.mxu0 0.0
    %2282 = vmatprep.subr.mxu0 0.0
    %2283 = vmatpush1.msra.mxu0 0.0
    %2284 = vmatprep.subr.mxu0 0.0
    %2285 = vmatpush1.msra.mxu0 0.0
    %2286 = vmatprep.subr.mxu0 0.0
    %2287 = vmatpush1.msra.mxu0 0.0
    %2288 = vmatprep.subr.mxu0 0.0
    %2289 = vmatpush1.msra.mxu0 0.0
    %2290 = vmatprep.subr.mxu0 0.0
    %2291 = vmatpush1.msra.mxu0 0.0
    %2292 = vmatprep.subr.mxu0 0.0
    %2293 = vmatpush1.msra.mxu0 0.0
    %2294 = vmatprep.subr.mxu0 0.0
    %2295 = vmatpush1.msra.mxu0 0.0
    %2296 = vmatprep.subr.mxu0 0.0
    %2297 = vmatpush1.msra.mxu0 0.0
    %2298 = vmatprep.subr.mxu0 0.0
    %2299 = vmatpush1.msra.mxu0 0.0
    %2300 = vmatprep.subr.mxu0 0.0
    %2301 = vmatpush1.msra.mxu0 0.0
    %2302 = vmatprep.subr.mxu0 0.0
    %2303 = vmatpush1.msra.mxu0 0.0
    %2304 = vmatprep.subr.mxu0 0.0
    %2305 = vmatpush1.msra.mxu0 0.0
    %2306 = vmatprep.subr.mxu0 0.0
    %2307 = vmatpush1.msra.mxu0 0.0
    %2308 = vmatprep.subr.mxu0 0.0
    %2309 = vmatpush1.msra.mxu0 0.0
    %2310 = vmatprep.subr.mxu0 0.0
    %2311 = vmatpush1.msra.mxu0 0.0
    %2312 = vmatprep.subr.mxu0 0.0
    %2313 = vmatpush1.msra.mxu0 0.0
    %2314 = vmatprep.subr.mxu0 0.0
    %2315 = vmatpush1.msra.mxu0 0.0
    %2316 = vmatprep.subr.mxu0 0.0
    %2317 = vmatpush1.msra.mxu0 0.0
    %2318 = vmatprep.subr.mxu0 0.0
    %2319 = vmatpush1.msra.mxu0 0.0
    %2320 = vmatprep.subr.mxu0 0.0
    %2321 = vmatpush1.msra.mxu0 0.0
    %2322 = vmatprep.subr.mxu0 0.0
    %2323 = vmatpush1.msra.mxu0 0.0
    %2324 = vmatprep.subr.mxu0 0.0
    %2325 = vmatpush1.msra.mxu0 0.0
    %2326 = vmatprep.subr.mxu0 0.0
    %2327 = vmatpush1.msra.mxu0 0.0
    %2328 = vmatprep.subr.mxu0 0.0
    %2329 = vmatpush1.msra.mxu0 0.0
    %2330 = vmatprep.subr.mxu0 0.0
    %2331 = vmatpush1.msra.mxu0 0.0
    %2332 = vmatprep.mubr.f32.mxu0 0.0
    %2333 = vmatmul.mubr.f32.gmra.mrb[0].mxu0 %v2257
    %v2334 = vpop.f32.mrb[0].mxu0
    %v2335 = vadd.f32 %v2254, %v2334
    %v2336 = vpop.f32.mrb[0].mxu0
    %2337 = vmatprep.mubr.f32.mxu0 0.0
    %2338 = vmatmul.mubr.f32.gmra.mrb[0].mxu0 %v2260
    %v2339 = vpop.f32.mrb[0].mxu0
    %v2340 = vadd.f32 %v2254, %v2339
    %v2341 = vpop.f32.mrb[0].mxu0
    %2342 = vmatprep.mubr.f32.mxu0 0.0
    %2343 = vmatmul.mubr.f32.gmra.mrb[0].mxu0 %v2263
    %v2344 = vpop.f32.mrb[0].mxu0
    %v2345 = vadd.f32 %v2254, %v2344
    %v2346 = vpop.f32.mrb[0].mxu0
    %2347 = vmatprep.mubr.f32.mxu0 0.0
    %2348 = vmatmul.mubr.f32.gmra.mrb[0].mxu0 %v2266
    %v2349 = vpop.f32.mrb[0].mxu0
    %v2350 = vadd.f32 %v2254, %v2349
    %v2351 = vpop.f32.mrb[0].mxu0
    %2352 = vdwg.mxu0
    %v2353 = vadd.f32 %v1378, %v2335
    %v2354 = vadd.f32 %v1379, %v2340
    %v2355 = vadd.f32 %v1380, %v2345
    %v2356 = vadd.f32 %v1381, %v2350
    %s2357 = scalar_lea.vmem %s7, 1
    %v2358 = vld [vmem:[%s2357] sm:$0x1]
    %s2359 = scalar_lea.vmem %s8, 1
    %v2360 = vld [vmem:[%s2359] sm:$0x1]
    %v2361 = vsel %vm92, %v2353, 0.0
    %2362 = vadd.xlane.f32.xlu0 %v2361
    %v2363 = vpop.xlane.xlu0 %2362
    %v2364 = vsel %vm92, %v2354, 0.0
    %2365 = vadd.xlane.f32.xlu0 %v2364
    %v2366 = vpop.xlane.xlu0 %2365
    %v2367 = vsel %vm92, %v2355, 0.0
    %2368 = vadd.xlane.f32.xlu0 %v2367
    %v2369 = vpop.xlane.xlu0 %2368
    %v2370 = vsel %vm92, %v2356, 0.0
    %2371 = vadd.xlane.f32.xlu0 %v2370
    %v2372 = vpop.xlane.xlu0 %2371
    %v2373 = vmul.f32 %v2363, %v105
    %v2374 = vmul.f32 %v2366, %v105
    %v2375 = vmul.f32 %v2369, %v105
    %v2376 = vmul.f32 %v2372, %v105
    %v2377 = vsub.f32 %v2353, %v2373
    %v2378 = vsub.f32 %v2354, %v2374
    %v2379 = vsub.f32 %v2355, %v2375
    %v2380 = vsub.f32 %v2356, %v2376
    %v2381 = vmul.f32 %v2377, %v2377
    %v2382 = vmul.f32 %v2378, %v2378
    %v2383 = vmul.f32 %v2379, %v2379
    %v2384 = vmul.f32 %v2380, %v2380
    %v2385 = vsel %vm92, %v2381, 0.0
    %2386 = vadd.xlane.f32.xlu0 %v2385
    %v2387 = vpop.xlane.xlu0 %2386
    %v2388 = vsel %vm92, %v2382, 0.0
    %2389 = vadd.xlane.f32.xlu0 %v2388
    %v2390 = vpop.xlane.xlu0 %2389
    %v2391 = vsel %vm92, %v2383, 0.0
    %2392 = vadd.xlane.f32.xlu0 %v2391
    %v2393 = vpop.xlane.xlu0 %2392
    %v2394 = vsel %vm92, %v2384, 0.0
    %2395 = vadd.xlane.f32.xlu0 %v2394
    %v2396 = vpop.xlane.xlu0 %2395
    %v2397 = vmul.f32 %v2387, %v105
    %v2398 = vmul.f32 %v2390, %v105
    %v2399 = vmul.f32 %v2393, %v105
    %v2400 = vmul.f32 %v2396, %v105
    %v2401 = vadd.f32 %v2397, 1e-05
    %v2402 = vadd.f32 %v2398, 1e-05
    %v2403 = vadd.f32 %v2399, 1e-05
    %v2404 = vadd.f32 %v2400, 1e-05
    %v2405 = vrsqrt.pop %v2401
    %v2406 = vrsqrt.pop %v2402
    %v2407 = vrsqrt.pop %v2403
    %v2408 = vrsqrt.pop %v2404
    %v2409 = vmul.f32 %v2377, %v2405
    %v2410 = vmul.f32 %v2378, %v2406
    %v2411 = vmul.f32 %v2379, %v2407
    %v2412 = vmul.f32 %v2380, %v2408
    %v2414 = vlaneseq
    %v2415 = vshrl.u32 %v2414, 7
    %v2416 = vsub.s32 0, %v2415
    %v2417 = vrot.slane %v2358, %v2416
    %v2419 = vmul.f32 %v2409, %v2417
    %v2420 = vmul.f32 %v2410, %v2417
    %v2421 = vmul.f32 %v2411, %v2417
    %v2422 = vmul.f32 %v2412, %v2417
    %v2424 = vlaneseq
    %v2425 = vshrl.u32 %v2424, 7
    %v2426 = vsub.s32 0, %v2425
    %v2427 = vrot.slane %v2360, %v2426
    %v2429 = vadd.f32 %v2419, %v2427
    %v2430 = vadd.f32 %v2420, %v2427
    %v2431 = vadd.f32 %v2421, %v2427
    %v2432 = vadd.f32 %v2422, %v2427
    %s2433 = scalar_lea.vmem [#allocation7], 32
    %v2434 = vld [vmem:[%s2433] sm:$0xff]
    %v2435 = vld [vmem:[%s2433 + $0x8] sm:$0xff]
    %v2436 = vld [vmem:[%s2433 + $0x10] sm:$0xff]
    %v2437 = vld [vmem:[%s2433 + $0x18] sm:$0xff]
    %s2438 = scalar_lea.vmem %s10, 1
    %v2439 = vld [vmem:[%s2438] sm:$0x1]
    %v2441 = vlaneseq
    %v2442 = vshrl.u32 %v2441, 7
    %v2443 = vsub.s32 0, %v2442
    %v2444 = vrot.slane %v2439, %v2443
    %v2447 = vsel %vm92, %v2429, 0
    %v2450 = vsel %vm92, %v2430, 0
    %v2453 = vsel %vm92, %v2431, 0
    %v2456 = vsel %vm92, %v2432, 0
    %2458 = vmatprep.subr.mxu0 0.0
    %2459 = vmatpush1.msra.mxu0 %v2434
    %2460 = vmatprep.subr.mxu0 0.0
    %2461 = vmatpush1.msra.mxu0 %v2435
    %2462 = vmatprep.subr.mxu0 0.0
    %2463 = vmatpush1.msra.mxu0 %v2436
    %2464 = vmatprep.subr.mxu0 0.0
    %2465 = vmatpush1.msra.mxu0 %v2437
    %2466 = vmatprep.subr.mxu0 0.0
    %2467 = vmatpush1.msra.mxu0 0.0
    %2468 = vmatprep.subr.mxu0 0.0
    %2469 = vmatpush1.msra.mxu0 0.0
    %2470 = vmatprep.subr.mxu0 0.0
    %2471 = vmatpush1.msra.mxu0 0.0
    %2472 = vmatprep.subr.mxu0 0.0
    %2473 = vmatpush1.msra.mxu0 0.0
    %2474 = vmatprep.subr.mxu0 0.0
    %2475 = vmatpush1.msra.mxu0 0.0
    %2476 = vmatprep.subr.mxu0 0.0
    %2477 = vmatpush1.msra.mxu0 0.0
    %2478 = vmatprep.subr.mxu0 0.0
    %2479 = vmatpush1.msra.mxu0 0.0
    %2480 = vmatprep.subr.mxu0 0.0
    %2481 = vmatpush1.msra.mxu0 0.0
    %2482 = vmatprep.subr.mxu0 0.0
    %2483 = vmatpush1.msra.mxu0 0.0
    %2484 = vmatprep.subr.mxu0 0.0
    %2485 = vmatpush1.msra.mxu0 0.0
    %2486 = vmatprep.subr.mxu0 0.0
    %2487 = vmatpush1.msra.mxu0 0.0
    %2488 = vmatprep.subr.mxu0 0.0
    %2489 = vmatpush1.msra.mxu0 0.0
    %2490 = vmatprep.subr.mxu0 0.0
    %2491 = vmatpush1.msra.mxu0 0.0
    %2492 = vmatprep.subr.mxu0 0.0
    %2493 = vmatpush1.msra.mxu0 0.0
    %2494 = vmatprep.subr.mxu0 0.0
    %2495 = vmatpush1.msra.mxu0 0.0
    %2496 = vmatprep.subr.mxu0 0.0
    %2497 = vmatpush1.msra.mxu0 0.0
    %2498 = vmatprep.subr.mxu0 0.0
    %2499 = vmatpush1.msra.mxu0 0.0
    %2500 = vmatprep.subr.mxu0 0.0
    %2501 = vmatpush1.msra.mxu0 0.0
    %2502 = vmatprep.subr.mxu0 0.0
    %2503 = vmatpush1.msra.mxu0 0.0
    %2504 = vmatprep.subr.mxu0 0.0
    %2505 = vmatpush1.msra.mxu0 0.0
    %2506 = vmatprep.subr.mxu0 0.0
    %2507 = vmatpush1.msra.mxu0 0.0
    %2508 = vmatprep.subr.mxu0 0.0
    %2509 = vmatpush1.msra.mxu0 0.0
    %2510 = vmatprep.subr.mxu0 0.0
    %2511 = vmatpush1.msra.mxu0 0.0
    %2512 = vmatprep.subr.mxu0 0.0
    %2513 = vmatpush1.msra.mxu0 0.0
    %2514 = vmatprep.subr.mxu0 0.0
    %2515 = vmatpush1.msra.mxu0 0.0
    %2516 = vmatprep.subr.mxu0 0.0
    %2517 = vmatpush1.msra.mxu0 0.0
    %2518 = vmatprep.subr.mxu0 0.0
    %2519 = vmatpush1.msra.mxu0 0.0
    %2520 = vmatprep.subr.mxu0 0.0
    %2521 = vmatpush1.msra.mxu0 0.0
    %2522 = vmatprep.mubr.f32.mxu0 0.0
    %2523 = vmatmul.mubr.f32.gmra.mrb[0].mxu0 %v2447
    %v2524 = vpop.f32.mrb[0].mxu0
    %v2525 = vadd.f32 %v2444, %v2524
    %v2526 = vpop.f32.mrb[0].mxu0
    %2527 = vmatprep.mubr.f32.mxu0 0.0
    %2528 = vmatmul.mubr.f32.gmra.mrb[0].mxu0 %v2450
    %v2529 = vpop.f32.mrb[0].mxu0
    %v2530 = vadd.f32 %v2444, %v2529
    %v2531 = vpop.f32.mrb[0].mxu0
    %2532 = vmatprep.mubr.f32.mxu0 0.0
    %2533 = vmatmul.mubr.f32.gmra.mrb[0].mxu0 %v2453
    %v2534 = vpop.f32.mrb[0].mxu0
    %v2535 = vadd.f32 %v2444, %v2534
    %v2536 = vpop.f32.mrb[0].mxu0
    %2537 = vmatprep.mubr.f32.mxu0 0.0
    %2538 = vmatmul.mubr.f32.gmra.mrb[0].mxu0 %v2456
    %v2539 = vpop.f32.mrb[0].mxu0
    %v2540 = vadd.f32 %v2444, %v2539
    %v2541 = vpop.f32.mrb[0].mxu0
    %2542 = vdwg.mxu0
    %v2543 = vmul.f32 %v2525, 0.5
    %v2544 = vmul.f32 %v2530, 0.5
    %v2545 = vmul.f32 %v2535, 0.5
    %v2546 = vmul.f32 %v2540, 0.5
    %v2547 = vmul.f32 %v2525, 0.70710677
    %v2548 = vmul.f32 %v2530, 0.70710677
    %v2549 = vmul.f32 %v2535, 0.70710677
    %v2550 = vmul.f32 %v2540, 0.70710677
    %v2551 = verf.f32.pop %v2547
    %v2552 = verf.f32.pop %v2548
    %v2553 = verf.f32.pop %v2549
    %v2554 = verf.f32.pop %v2550
    %v2555 = vadd.f32 %v2551, 1.0
    %v2556 = vadd.f32 %v2552, 1.0
    %v2557 = vadd.f32 %v2553, 1.0
    %v2558 = vadd.f32 %v2554, 1.0
    %v2559 = vmul.f32 %v2543, %v2555
    %v2560 = vmul.f32 %v2544, %v2556
    %v2561 = vmul.f32 %v2545, %v2557
    %v2562 = vmul.f32 %v2546, %v2558
    %s2563 = scalar_lea.vmem %s11, 128
    %v2564 = vld [vmem:[%s2563] sm:$0xff]
    %v2565 = vld [vmem:[%s2563 + $0x8] sm:$0xff]
    %v2566 = vld [vmem:[%s2563 + $0x10] sm:$0xff]
    %v2567 = vld [vmem:[%s2563 + $0x18] sm:$0xff]
    %v2568 = vld [vmem:[%s2563 + $0x20] sm:$0xff]
    %v2569 = vld [vmem:[%s2563 + $0x28] sm:$0xff]
    %v2570 = vld [vmem:[%s2563 + $0x30] sm:$0xff]
    %v2571 = vld [vmem:[%s2563 + $0x38] sm:$0xff]
    %v2572 = vld [vmem:[%s2563 + $0x40] sm:$0xff]
    %v2573 = vld [vmem:[%s2563 + $0x48] sm:$0xff]
    %v2574 = vld [vmem:[%s2563 + $0x50] sm:$0xff]
    %v2575 = vld [vmem:[%s2563 + $0x58] sm:$0xff]
    %v2576 = vld [vmem:[%s2563 + $0x60] sm:$0xff]
    %v2577 = vld [vmem:[%s2563 + $0x68] sm:$0xff]
    %v2578 = vld [vmem:[%s2563 + $0x70] sm:$0xff]
    %v2579 = vld [vmem:[%s2563 + $0x78] sm:$0xff]
    %2580 = vmatprep.subr.mxu0 0.0
    %2581 = vmatpush1.msra.mxu0 %v2564
    %2582 = vmatprep.subr.mxu0 0.0
    %2583 = vmatpush1.msra.mxu0 %v2565
    %2584 = vmatprep.subr.mxu0 0.0
    %2585 = vmatpush1.msra.mxu0 %v2566
    %2586 = vmatprep.subr.mxu0 0.0
    %2587 = vmatpush1.msra.mxu0 %v2567
    %2588 = vmatprep.subr.mxu0 0.0
    %2589 = vmatpush1.msra.mxu0 %v2568
    %2590 = vmatprep.subr.mxu0 0.0
    %2591 = vmatpush1.msra.mxu0 %v2569
    %2592 = vmatprep.subr.mxu0 0.0
    %2593 = vmatpush1.msra.mxu0 %v2570
    %2594 = vmatprep.subr.mxu0 0.0
    %2595 = vmatpush1.msra.mxu0 %v2571
    %2596 = vmatprep.subr.mxu0 0.0
    %2597 = vmatpush1.msra.mxu0 %v2572
    %2598 = vmatprep.subr.mxu0 0.0
    %2599 = vmatpush1.msra.mxu0 %v2573
    %2600 = vmatprep.subr.mxu0 0.0
    %2601 = vmatpush1.msra.mxu0 %v2574
    %2602 = vmatprep.subr.mxu0 0.0
    %2603 = vmatpush1.msra.mxu0 %v2575
    %2604 = vmatprep.subr.mxu0 0.0
    %2605 = vmatpush1.msra.mxu0 %v2576
    %2606 = vmatprep.subr.mxu0 0.0
    %2607 = vmatpush1.msra.mxu0 %v2577
    %2608 = vmatprep.subr.mxu0 0.0
    %2609 = vmatpush1.msra.mxu0 %v2578
    %2610 = vmatprep.subr.mxu0 0.0
    %2611 = vmatpush1.msra.mxu0 %v2579
    %2612 = vmatprep.subr.mxu0 0.0
    %2613 = vmatpush1.msra.mxu0 0.0
    %2614 = vmatprep.subr.mxu0 0.0
    %2615 = vmatpush1.msra.mxu0 0.0
    %2616 = vmatprep.subr.mxu0 0.0
    %2617 = vmatpush1.msra.mxu0 0.0
    %2618 = vmatprep.subr.mxu0 0.0
    %2619 = vmatpush1.msra.mxu0 0.0
    %2620 = vmatprep.subr.mxu0 0.0
    %2621 = vmatpush1.msra.mxu0 0.0
    %2622 = vmatprep.subr.mxu0 0.0
    %2623 = vmatpush1.msra.mxu0 0.0
    %2624 = vmatprep.subr.mxu0 0.0
    %2625 = vmatpush1.msra.mxu0 0.0
    %2626 = vmatprep.subr.mxu0 0.0
    %2627 = vmatpush1.msra.mxu0 0.0
    %2628 = vmatprep.subr.mxu0 0.0
    %2629 = vmatpush1.msra.mxu0 0.0
    %2630 = vmatprep.subr.mxu0 0.0
    %2631 = vmatpush1.msra.mxu0 0.0
    %2632 = vmatprep.subr.mxu0 0.0
    %2633 = vmatpush1.msra.mxu0 0.0
    %2634 = vmatprep.subr.mxu0 0.0
    %2635 = vmatpush1.msra.mxu0 0.0
    %2636 = vmatprep.subr.mxu0 0.0
    %2637 = vmatpush1.msra.mxu0 0.0
    %2638 = vmatprep.subr.mxu0 0.0
    %2639 = vmatpush1.msra.mxu0 0.0
    %2640 = vmatprep.subr.mxu0 0.0
    %2641 = vmatpush1.msra.mxu0 0.0
    %2642 = vmatprep.subr.mxu0 0.0
    %2643 = vmatpush1.msra.mxu0 0.0
    %2644 = vmatprep.mubr.f32.mxu0 0.0
    %2645 = vmatmul.mubr.f32.gmra.mrb[0].mxu0 %v2559
    %v2646 = vpop.f32.mrb[0].mxu0
    %v2647 = vadd.f32 0.0, %v2646
    %v2648 = vpop.f32.mrb[0].mxu0
    %2649 = vmatprep.mubr.f32.mxu0 0.0
    %2650 = vmatmul.mubr.f32.gmra.mrb[0].mxu0 %v2560
    %v2651 = vpop.f32.mrb[0].mxu0
    %v2652 = vadd.f32 0.0, %v2651
    %v2653 = vpop.f32.mrb[0].mxu0
    %2654 = vmatprep.mubr.f32.mxu0 0.0
    %2655 = vmatmul.mubr.f32.gmra.mrb[0].mxu0 %v2561
    %v2656 = vpop.f32.mrb[0].mxu0
    %v2657 = vadd.f32 0.0, %v2656
    %v2658 = vpop.f32.mrb[0].mxu0
    %2659 = vmatprep.mubr.f32.mxu0 0.0
    %2660 = vmatmul.mubr.f32.gmra.mrb[0].mxu0 %v2562
    %v2661 = vpop.f32.mrb[0].mxu0
    %v2662 = vadd.f32 0.0, %v2661
    %v2663 = vpop.f32.mrb[0].mxu0
    %2664 = vdwg.mxu0
    %v2665 = vadd.f32 %v2353, %v2647
    %v2666 = vadd.f32 %v2354, %v2652
    %v2667 = vadd.f32 %v2355, %v2657
    %v2668 = vadd.f32 %v2356, %v2662
    %s2669 = scalar_lea.vmem %s12, 1
    %v2670 = vld [vmem:[%s2669] sm:$0x1]
    %v2672 = vlaneseq
    %v2673 = vshrl.u32 %v2672, 7
    %v2674 = vsub.s32 0, %v2673
    %v2675 = vrot.slane %v2670, %v2674
    %v2677 = vadd.f32 %v2665, %v2675
    %v2678 = vadd.f32 %v2666, %v2675
    %v2679 = vadd.f32 %v2667, %v2675
    %v2680 = vadd.f32 %v2668, %v2675
    %2681 = vst.msk [vmem:[#allocation8] sm:$0xff] %vm92, %v2677
    %2682 = vst.msk [vmem:[#allocation8 + $0x8] sm:$0xff] %vm92, %v2678
    %2683 = vst.msk [vmem:[#allocation8 + $0x10] sm:$0xff] %vm92, %v2679
    %2684 = vst.msk [vmem:[#allocation8 + $0x18] sm:$0xff] %vm92, %v2680
    // Predicated region
    $region66: #{tpu_custom_call.1} parent=1 // pred_check
      _
    $region67: #{tpu_custom_call.1} parent=1 // pred_check_branch
      %2686 = sbr.rel (0) target = $region69
    $region68: #{tpu_custom_call.1} parent=1 // pred_region
      %s2688 = ssub.s32 512, 512
      %2689 = vsyncadd [#allocation4], %s2688
      %s2690 = sshll.u32 [#allocation8], 4
      %s2691 = int_to_ptr.vmem [resolvable:$true] %s2690
      %2696 = dma.vmem_to_hbm [thread:$0]  %s2691, 512, %s13, [#allocation4], 128, 128, 8
    $region69: #{tpu_custom_call.1} parent=1 // pred_fallthru
      _
    // Predicated region
    $region70: #{tpu_custom_call.1} parent=1 // pred_check
      _
    $region71: #{tpu_custom_call.1} parent=1 // pred_check_branch
      %2698 = sbr.rel (0) target = $region73
    $region72: #{tpu_custom_call.1} parent=1 // pred_region
      %2699 = dma.done [#allocation4], 512
    $region73: #{tpu_custom_call.1} parent=1 // pred_fallthru
      _
    %2700 = vsyncpa [#allocation3], 1
    %2701 = vsyncpa [#allocation6], 1
    %2702 = vsyncpa [#allocation4], 1

</llo_original>
